<compile_context>
chip_gen: v5e
topology: v5e:2x2
jax: 0.10.0
libtpu: 0.0.40
codegen_flags: <defaults>
</compile_context>

<pallas_src>
import jax
import jax.numpy as jnp
from jax.experimental import pallas as pl
from jax.experimental.pallas import tpu as pltpu

_EPS = 1e-5


# ---------------------------------------------------------------------------
# Generation-aware budgets
# ---------------------------------------------------------------------------
def _budgets():
    """(vmem_limit_bytes, stream_budget_bytes) per TPU generation."""
    cap = None
    try:
        info = pltpu.get_tpu_info()
        for attr in ("vmem_capacity_bytes", "vmem_bytes", "vmem_size_bytes"):
            cap = getattr(info, attr, None)
            if cap:
                break
    except Exception:
        cap = None
    if cap is None:
        cap = 64 * 1024 * 1024                     # conservative fallback
    if cap >= 100 * 1024 * 1024:                   # v5e / v6e: 128 MiB per TC
        return 64 * 1024 * 1024, 24 * 1024 * 1024
    return 44 * 1024 * 1024, 14 * 1024 * 1024      # v7x: 64 MiB physical


# ---------------------------------------------------------------------------
# Tiling helper
# ---------------------------------------------------------------------------
def _pick_row_tile(c, hw, itemsize, n_streamed, stream_budget, min_steps=1):
    """Largest channel-row tile that (a) divides C, (b) is sublane-aligned for
    the input dtype, (c) keeps the double-buffered streamed inputs under the
    stream budget and (d) leaves at least `min_steps` grid steps so the
    pipeline has something to overlap."""
    align = 32 // max(1, min(4, itemsize))         # 8 f32, 16 bf16, 32 int8/fp8
    if c % align != 0:
        return c                                   # full-extent block: always legal
    per_row = hw * itemsize
    budget_rows = stream_budget // max(1, per_row * 2 * n_streamed)
    budget_tile = max(align, (budget_rows // align) * align)
    steps_tile = max(align, ((c // max(1, min_steps)) // align) * align)
    tile = min(c, budget_tile, steps_tile)
    while c % tile != 0:                           # terminates at `align`
        tile -= align
    return max(tile, align)


# ---------------------------------------------------------------------------
# Kernels
# ---------------------------------------------------------------------------
def _origin_mask(shape):
    sub = jax.lax.broadcasted_iota(jnp.int32, shape, len(shape) - 2)
    lane = jax.lax.broadcasted_iota(jnp.int32, shape, len(shape) - 1)
    return (sub == 0) & (lane == 0)


def _fused_content_style_kernel(g_ref, c_ref, sm_ref, ss_ref,
                                out_c_ref, out_s_ref):
    """One (batch, channel-tile) step of the fused content + style loss.

    g_ref, c_ref : (tile, HW) decoded / content-target rows (native dtype).
    sm_ref, ss_ref: (C, 1) full per-channel style mean / std (f32, hoisted DMA).
    out_*_ref    : (1, 8, 128) per-(b, j) partial blocks; element [0,0,0] = sum.
    """
    j = pl.program_id(1)
    tile = g_ref.shape[0]
    row0 = pl.multiple_of(j * tile, tile)

    g = g_ref[...].astype(jnp.float32)
    t = c_ref[...].astype(jnp.float32)
    hw = g.shape[-1]
    inv_hw = 1.0 / hw
    inv_n1 = 1.0 / max(hw - 1, 1)                  # unbiased var (torch .var)

    # single pass over the spatial axis: Σx, Σx², Σxy
    sg = jnp.sum(g, axis=-1, keepdims=True)
    sgg = jnp.sum(g * g, axis=-1, keepdims=True)
    st = jnp.sum(t, axis=-1, keepdims=True)
    stt = jnp.sum(t * t, axis=-1, keepdims=True)
    sgt = jnp.sum(g * t, axis=-1, keepdims=True)

    mg = sg * inv_hw
    mt = st * inv_hw
    css_g = jnp.maximum(sgg - hw * mg * mg, 0.0)   # Σ (g - mg)^2, clamped
    css_t = jnp.maximum(stt - hw * mt * mt, 0.0)
    css_gt = sgt - hw * mg * mt

    var_g = css_g * inv_n1 + _EPS
    var_t = css_t * inv_n1 + _EPS
    rs_g = jax.lax.rsqrt(var_g)                    # EUP, off the VALU path
    rs_t = jax.lax.rsqrt(var_t)

    # Σ_s (mvn(g) - mvn(t))^2 per row, expanded algebraically (no 2nd pass).
    content_row = (css_g * (rs_g * rs_g) + css_t * (rs_t * rs_t)
                   - 2.0 * css_gt * (rs_g * rs_t))

    std_g = var_g * rs_g                           # = sqrt(var_g + eps)
    dm = mg - sm_ref[pl.ds(row0, tile), :]
    ds = std_g - ss_ref[pl.ds(row0, tile), :]
    style_row = dm * dm + ds * ds

    origin = _origin_mask(out_c_ref.shape)
    out_c_ref[...] = jnp.where(origin, jnp.sum(content_row), 0.0)
    out_s_ref[...] = jnp.where(origin, jnp.sum(style_row), 0.0)


def _style_only_kernel(g_ref, sm_ref, ss_ref, out_s_ref):
    """Style loss only (levels 0..2): per-row mean/std of g vs. hoisted style
    stats; one lane-dense partial block per (batch, channel-tile) step."""
    j = pl.program_id(1)
    tile = g_ref.shape[0]
    row0 = pl.multiple_of(j * tile, tile)

    g = g_ref[...].astype(jnp.float32)
    hw = g.shape[-1]
    inv_hw = 1.0 / hw
    inv_n1 = 1.0 / max(hw - 1, 1)

    sg = jnp.sum(g, axis=-1, keepdims=True)
    sgg = jnp.sum(g * g, axis=-1, keepdims=True)
    mg = sg * inv_hw
    css_g = jnp.maximum(sgg - hw * mg * mg, 0.0)
    var_g = css_g * inv_n1 + _EPS
    rs_g = jax.lax.rsqrt(var_g)
    std_g = var_g * rs_g                           # = sqrt(var_g + eps)

    dm = mg - sm_ref[pl.ds(row0, tile), :]
    ds = std_g - ss_ref[pl.ds(row0, tile), :]
    style_row = dm * dm + ds * ds

    origin = _origin_mask(out_s_ref.shape)
    out_s_ref[...] = jnp.where(origin, jnp.sum(style_row), 0.0)


def _style_stats_kernel(s_ref, mean_ref, std_ref):
    """Single-pass per-channel mean/std of the batch-1 style features."""
    x = s_ref[...].astype(jnp.float32)
    hw = x.shape[-1]
    inv_hw = 1.0 / hw
    inv_n1 = 1.0 / max(hw - 1, 1)

    sx = jnp.sum(x, axis=-1, keepdims=True)
    sxx = jnp.sum(x * x, axis=-1, keepdims=True)
    m = sx * inv_hw
    css = jnp.maximum(sxx - hw * m * m, 0.0)
    var = css * inv_n1 + _EPS
    mean_ref[...] = m
    std_ref[...] = var * jax.lax.rsqrt(var)        # = sqrt(var + eps)


# ---------------------------------------------------------------------------
# Wrappers
# ---------------------------------------------------------------------------
def _style_target_stats(style_feat, vmem_limit, stream_budget):
    """Per-channel mean/std of the batch-1 style features, computed ONCE in a
    single streaming pass.  Replaces the 3x batch concat of the original
    forward (the tiled copies share the same per-(n, c) stats)."""
    n, c, h, w = style_feat.shape
    assert n == 1, "style features are batch-1 in Net.forward"
    hw = h * w
    v = style_feat.reshape(c, hw)
    tile = _pick_row_tile(c, hw, v.dtype.itemsize, n_streamed=1,
                          stream_budget=stream_budget, min_steps=2)
    nj = c // tile

    cost = pl.CostEstimate(
        flops=4 * c * hw, transcendentals=c,
        bytes_accessed=c * hw * v.dtype.itemsize + 2 * c * 4)

    mean, std = pl.pallas_call(
        _style_stats_kernel,
        out_shape=(jax.ShapeDtypeStruct((c, 1), jnp.float32),
                   jax.ShapeDtypeStruct((c, 1), jnp.float32)),
        grid_spec=pltpu.PrefetchScalarGridSpec(
            num_scalar_prefetch=0,
            grid=(nj,),
            in_specs=[pl.BlockSpec((tile, hw), lambda j: (j, 0))],
            out_specs=(pl.BlockSpec((tile, 1), lambda j: (j, 0)),
                       pl.BlockSpec((tile, 1), lambda j: (j, 0))),
        ),
        compiler_params=pltpu.CompilerParams(
            dimension_semantics=("parallel",),
            vmem_limit_bytes=vmem_limit),
        cost_estimate=cost,
    )(v)
    return mean, std


def _content_style_level(g, content_tgt, s_mean, s_std, vmem_limit, stream_budget):
    """Fused content (mvn MSE) + style (mean/std MSE) losses for one level."""
    n, c, h, w = g.shape
    hw = h * w
    g3 = g.reshape(n, c, hw)
    t3 = content_tgt.reshape(n, c, hw)
    tile = _pick_row_tile(c, hw, g3.dtype.itemsize, n_streamed=2,
                          stream_budget=stream_budget, min_steps=4)
    nj = c // tile

    cost = pl.CostEstimate(
        flops=12 * n * c * hw, transcendentals=2 * n * c,
        bytes_accessed=(2 * n * c * hw * g3.dtype.itemsize + 2 * c * 4
                        + 2 * n * nj * 8 * 128 * 4))

    out_c, out_s = pl.pallas_call(
        _fused_content_style_kernel,
        out_shape=(jax.ShapeDtypeStruct((n, nj, 8, 128), jnp.float32),
                   jax.ShapeDtypeStruct((n, nj, 8, 128), jnp.float32)),
        grid_spec=pltpu.PrefetchScalarGridSpec(
            num_scalar_prefetch=0,
            grid=(n, nj),                                   # (batch, channel tiles)
            in_specs=[
                pl.BlockSpec((None, tile, hw), lambda b, j: (b, j, 0)),
                pl.BlockSpec((None, tile, hw), lambda b, j: (b, j, 0)),
                pl.BlockSpec((c, 1), lambda b, j: (0, 0)),  # hoisted: one DMA
                pl.BlockSpec((c, 1), lambda b, j: (0, 0)),
            ],
            out_specs=(
                pl.BlockSpec((None, 1, 8, 128), lambda b, j: (b, j, 0, 0)),
                pl.BlockSpec((None, 1, 8, 128), lambda b, j: (b, j, 0, 0)),
            ),
        ),
        compiler_params=pltpu.CompilerParams(
            dimension_semantics=("parallel", "parallel"),   # (n*nj)-way split
            vmem_limit_bytes=vmem_limit),
        cost_estimate=cost,
    )(g3, t3, s_mean, s_std)

    loss_c = jnp.sum(out_c[:, :, 0, 0]) / (n * c * hw)   # MSE over all elements
    loss_s = jnp.sum(out_s[:, :, 0, 0]) / (n * c)        # MSE over (N,C,1,1) stats
    return loss_c, loss_s


def _style_only_level(g, s_mean, s_std, vmem_limit, stream_budget):
    """Style loss of one level of the decoded image vs. precomputed style stats."""
    n, c, h, w = g.shape
    hw = h * w
    g3 = g.reshape(n, c, hw)
    tile = _pick_row_tile(c, hw, g3.dtype.itemsize, n_streamed=1,
                          stream_budget=stream_budget, min_steps=2)
    nj = c // tile

    cost = pl.CostEstimate(
        flops=6 * n * c * hw, transcendentals=n * c,
        bytes_accessed=(n * c * hw * g3.dtype.itemsize + 2 * c * 4
                        + n * nj * 8 * 128 * 4))

    out_s = pl.pallas_call(
        _style_only_kernel,
        out_shape=jax.ShapeDtypeStruct((n, nj, 8, 128), jnp.float32),
        grid_spec=pltpu.PrefetchScalarGridSpec(
            num_scalar_prefetch=0,
            grid=(n, nj),
            in_specs=[
                pl.BlockSpec((None, tile, hw), lambda b, j: (b, j, 0)),
                pl.BlockSpec((c, 1), lambda b, j: (0, 0)),
                pl.BlockSpec((c, 1), lambda b, j: (0, 0)),
            ],
            out_specs=pl.BlockSpec((None, 1, 8, 128), lambda b, j: (b, j, 0, 0)),
        ),
        compiler_params=pltpu.CompilerParams(
            dimension_semantics=("parallel", "parallel"),
            vmem_limit_bytes=vmem_limit),
        cost_estimate=cost,
    )(g3, s_mean, s_std)

    return jnp.sum(out_s[:, :, 0, 0]) / (n * c)


def net_forward_losses(g_t_feats, content_feats_l3, content_feats_l4, style_feats):
    """Mirrors the loss section of Net.forward given the intermediate features.

    g_t_feats:            list of 5 feature maps of the decoded image (batch 3).
    content_feats_l3/_l4: concat of the three content streams' level-3/4 feats.
    style_feats:          list of 5 style feature maps (batch 1).  The original
                          forward tiles these x3 along batch; only their
                          per-channel stats are computed (once) and reused for
                          all three decoded streams, which is equivalent.
    """
    vmem_limit, stream_budget = _budgets()

    stats = [_style_target_stats(s, vmem_limit, stream_budget)
             for s in style_feats]

    # Levels 3 & 4: one fused pass computes both the mvn content loss and the
    # style loss, so g_t_feats[3]/[4] are streamed from HBM exactly once.
    c3, s3 = _content_style_level(g_t_feats[3], content_feats_l3, *stats[3],
                                  vmem_limit, stream_budget)
    c4, s4 = _content_style_level(g_t_feats[4], content_feats_l4, *stats[4],
                                  vmem_limit, stream_budget)
    loss_c = c3 + c4

    loss_s = _style_only_level(g_t_feats[0], *stats[0], vmem_limit, stream_budget)
    loss_s = loss_s + _style_only_level(g_t_feats[1], *stats[1],
                                        vmem_limit, stream_budget)
    loss_s = loss_s + _style_only_level(g_t_feats[2], *stats[2],
                                        vmem_limit, stream_budget)
    loss_s = loss_s + s3 + s4
    return loss_c, loss_s


# ---------------------------------------------------------------------------
# Pure-JAX reference (straight transcription of the PyTorch math)
# ---------------------------------------------------------------------------
def _ref_mean_std(f):
    n, c, h, w = f.shape
    v = f.reshape(n, c, -1).astype(jnp.float32)
    var = jnp.var(v, axis=2, ddof=1) + _EPS
    return (jnp.mean(v, axis=2).reshape(n, c, 1, 1),
            jnp.sqrt(var).reshape(n, c, 1, 1))


def _ref_mvn(f):
    m, s = _ref_mean_std(f)
    return (f.astype(jnp.float32) - m) / s


def _ref_content(x, y):
    return jnp.mean((_ref_mvn(x) - _ref_mvn(y)) ** 2)


def _ref_style(x, y):
    mx, sx = _ref_mean_std(x)
    my, sy = _ref_mean_std(y)
    return jnp.mean((mx - my) ** 2) + jnp.mean((sx - sy) ** 2)


# ---------------------------------------------------------------------------
if __name__ == "__main__":
    key = jax.random.PRNGKey(0)

    # Small stand-in feature pyramids (batch 3 = concat of the three content
    # streams, as in the forward pass; style is batch 1).  Real VGG levels have
    # HW >= 256; these tiny shapes only exercise correctness (including the
    # lane-padded HW-not-multiple-of-128 path).
    chans = [8, 16, 32, 32, 32]
    spat = [(16, 16), (8, 8), (8, 8), (4, 4), (4, 4)]

    keys = iter(jax.random.split(key, 16))
    g_t_feats = [jax.random.normal(next(keys), (3, c, h, w), jnp.float32)
                 for c, (h, w) in zip(chans, spat)]
    style_feats = [jax.random.normal(next(keys), (1, c, h, w), jnp.float32)
                   for c, (h, w) in zip(chans, spat)]
    content_feats_l3 = jax.random.normal(next(keys), (3, chans[3], *spat[3]),
                                         jnp.float32)
    content_feats_l4 = jax.random.normal(next(keys), (3, chans[4], *spat[4]),
                                         jnp.float32)

    loss_c, loss_s = jax.jit(net_forward_losses)(
        g_t_feats, content_feats_l3, content_feats_l4, style_feats)
    loss_c = jax.block_until_ready(loss_c)
    loss_s = jax.block_until_ready(loss_s)

    # Cross-check against the pure-JAX transcription of the PyTorch math
    # (including the x3 style-batch tiling of the original forward).
    ref_c = _ref_content(g_t_feats[3], content_feats_l3) + \
            _ref_content(g_t_feats[4], content_feats_l4)
    style_rep = [jnp.concatenate((s, s, s), axis=0) for s in style_feats]
    ref_s = sum(_ref_style(g_t_feats[i], style_rep[i]) for i in range(5))

    assert jnp.allclose(loss_c, ref_c, rtol=1e-3, atol=1e-3), (loss_c, ref_c)
    assert jnp.allclose(loss_s, ref_s, rtol=1e-3, atol=1e-3), (loss_s, ref_s)

    print("KERNEL_OK")
</pallas_src>

<mosaic_0001>
module attributes {stable_mosaic.version = 11 : i64} {
  func.func @_style_stats_kernel(%arg0: i32, %arg1: memref<8x64xf32, #tpu.memory_space<vmem>>, %arg2: memref<8x1xf32, #tpu.memory_space<vmem>>, %arg3: memref<8x1xf32, #tpu.memory_space<vmem>>) attributes {dimension_semantics = [#tpu.dimension_semantics<parallel>], iteration_bounds = array<i64: 2>, scalar_prefetch = 0 : i64, scratch_operands = 0 : i64, tpu.core_type = #tpu.core_type<tc>, window_params = [{transform_indices = @transform_0, window_bounds = array<i64: 8, 64>}, {transform_indices = @transform_1, window_bounds = array<i64: 8, 1>}, {transform_indices = @transform_2, window_bounds = array<i64: 8, 1>}]} {
    %c0 = arith.constant 0 : index
    %c0_0 = arith.constant 0 : index
    %0 = vector.load %arg1[%c0, %c0_0] : memref<8x64xf32, #tpu.memory_space<vmem>>, vector<8x64xf32>
    %cst = arith.constant dense<0.000000e+00> : vector<8xf32>
    %1 = vector.multi_reduction <add>, %0, %cst [1] : vector<8x64xf32> to vector<8xf32>
    %2 = vector.shape_cast %1 : vector<8xf32> to vector<8x1xf32>
    %3 = arith.mulf %0, %0 : vector<8x64xf32>
    %cst_1 = arith.constant dense<0.000000e+00> : vector<8xf32>
    %4 = vector.multi_reduction <add>, %3, %cst_1 [1] : vector<8x64xf32> to vector<8xf32>
    %5 = vector.shape_cast %4 : vector<8xf32> to vector<8x1xf32>
    %cst_2 = arith.constant 1.562500e-02 : f32
    %6 = vector.broadcast %cst_2 : f32 to vector<8x1xf32>
    %7 = arith.mulf %2, %6 : vector<8x1xf32>
    %cst_3 = arith.constant 6.400000e+01 : f32
    %8 = vector.broadcast %cst_3 : f32 to vector<8x1xf32>
    %9 = arith.mulf %8, %7 : vector<8x1xf32>
    %10 = arith.mulf %9, %7 : vector<8x1xf32>
    %11 = arith.subf %5, %10 : vector<8x1xf32>
    %cst_4 = arith.constant 0.000000e+00 : f32
    %12 = vector.broadcast %cst_4 : f32 to vector<8x1xf32>
    %13 = arith.maximumf %11, %12 : vector<8x1xf32>
    %cst_5 = arith.constant 0.0158730168 : f32
    %14 = vector.broadcast %cst_5 : f32 to vector<8x1xf32>
    %15 = arith.mulf %13, %14 : vector<8x1xf32>
    %cst_6 = arith.constant 9.99999974E-6 : f32
    %16 = vector.broadcast %cst_6 : f32 to vector<8x1xf32>
    %17 = arith.addf %15, %16 : vector<8x1xf32>
    %c0_7 = arith.constant 0 : index
    %c0_8 = arith.constant 0 : index
    %18 = vector.load %arg2[%c0_7, %c0_8] : memref<8x1xf32, #tpu.memory_space<vmem>>, vector<8x1xf32>
    tpu.vector_store %arg2[%c0_7, %c0_8], %7 {strides = array<i32>} : memref<8x1xf32, #tpu.memory_space<vmem>>, vector<8x1xf32>,
    %19 = math.rsqrt %17 : vector<8x1xf32>
    %20 = arith.mulf %17, %19 : vector<8x1xf32>
    %c0_9 = arith.constant 0 : index
    %c0_10 = arith.constant 0 : index
    %21 = vector.load %arg3[%c0_9, %c0_10] : memref<8x1xf32, #tpu.memory_space<vmem>>, vector<8x1xf32>
    tpu.vector_store %arg3[%c0_9, %c0_10], %20 {strides = array<i32>} : memref<8x1xf32, #tpu.memory_space<vmem>>, vector<8x1xf32>,
    return
  }
  func.func @transform_0(%arg0: i32) -> (i32, i32) {
    %c0_i32 = arith.constant 0 : i32
    %c0_i32_0 = arith.constant 0 : i32
    return %arg0, %c0_i32 : i32, i32
  }
  func.func @transform_1(%arg0: i32) -> (i32, i32) {
    %c0_i32 = arith.constant 0 : i32
    %c0_i32_0 = arith.constant 0 : i32
    return %arg0, %c0_i32 : i32, i32
  }
  func.func @transform_2(%arg0: i32) -> (i32, i32) {
    %c0_i32 = arith.constant 0 : i32
    %c0_i32_0 = arith.constant 0 : i32
    return %arg0, %c0_i32 : i32, i32
  }
}

module attributes {stable_mosaic.version = 11 : i64} {
  func.func @_style_only_kernel(%arg0: i32, %arg1: i32, %arg2: memref<1x8x64xf32, #tpu.memory_space<vmem>>, %arg3: memref<16x1xf32, #tpu.memory_space<vmem>>, %arg4: memref<16x1xf32, #tpu.memory_space<vmem>>, %arg5: memref<1x1x8x128xf32, #tpu.memory_space<vmem>>) attributes {dimension_semantics = [#tpu.dimension_semantics<parallel>, #tpu.dimension_semantics<parallel>], iteration_bounds = array<i64: 3, 2>, scalar_prefetch = 0 : i64, scratch_operands = 0 : i64, tpu.core_type = #tpu.core_type<tc>, window_params = [{transform_indices = @transform_0, window_bounds = array<i64: 1, 8, 64>}, {pipeline_mode = #tpu.pipeline_mode<synchronous>, transform_indices = @transform_1, window_bounds = array<i64: 16, 1>}, {pipeline_mode = #tpu.pipeline_mode<synchronous>, transform_indices = @transform_2, window_bounds = array<i64: 16, 1>}, {transform_indices = @transform_3, window_bounds = array<i64: 1, 1, 8, 128>}]} {
    %c8_i32 = arith.constant 8 : i32
    %0 = arith.muli %arg1, %c8_i32 : i32
    %1 = tpu.assume_multiple %0, 8 : i32
    %c0 = arith.constant 0 : index
    %c0_0 = arith.constant 0 : index
    %c0_1 = arith.constant 0 : index
    %2 = vector.load %arg2[%c0, %c0_0, %c0_1] : memref<1x8x64xf32, #tpu.memory_space<vmem>>, vector<1x8x64xf32>
    %3 = vector.shape_cast %2 : vector<1x8x64xf32> to vector<8x64xf32>
    %cst = arith.constant dense<0.000000e+00> : vector<8xf32>
    %4 = vector.multi_reduction <add>, %3, %cst [1] : vector<8x64xf32> to vector<8xf32>
    %5 = vector.shape_cast %4 : vector<8xf32> to vector<8x1xf32>
    %6 = arith.mulf %3, %3 : vector<8x64xf32>
    %cst_2 = arith.constant dense<0.000000e+00> : vector<8xf32>
    %7 = vector.multi_reduction <add>, %6, %cst_2 [1] : vector<8x64xf32> to vector<8xf32>
    %8 = vector.shape_cast %7 : vector<8xf32> to vector<8x1xf32>
    %cst_3 = arith.constant 1.562500e-02 : f32
    %9 = vector.broadcast %cst_3 : f32 to vector<8x1xf32>
    %10 = arith.mulf %5, %9 : vector<8x1xf32>
    %cst_4 = arith.constant 6.400000e+01 : f32
    %11 = vector.broadcast %cst_4 : f32 to vector<8x1xf32>
    %12 = arith.mulf %11, %10 : vector<8x1xf32>
    %13 = arith.mulf %12, %10 : vector<8x1xf32>
    %14 = arith.subf %8, %13 : vector<8x1xf32>
    %cst_5 = arith.constant 0.000000e+00 : f32
    %15 = vector.broadcast %cst_5 : f32 to vector<8x1xf32>
    %16 = arith.maximumf %14, %15 : vector<8x1xf32>
    %cst_6 = arith.constant 0.0158730168 : f32
    %17 = vector.broadcast %cst_6 : f32 to vector<8x1xf32>
    %18 = arith.mulf %16, %17 : vector<8x1xf32>
    %cst_7 = arith.constant 9.99999974E-6 : f32
    %19 = vector.broadcast %cst_7 : f32 to vector<8x1xf32>
    %20 = arith.addf %18, %19 : vector<8x1xf32>
    %21 = math.rsqrt %20 : vector<8x1xf32>
    %22 = arith.mulf %20, %21 : vector<8x1xf32>
    %23 = arith.index_cast %1 : i32 to index
    %c0_8 = arith.constant 0 : index
    %24 = vector.load %arg3[%23, %c0_8] : memref<16x1xf32, #tpu.memory_space<vmem>>, vector<8x1xf32>
    %25 = arith.subf %10, %24 : vector<8x1xf32>
    %26 = arith.index_cast %1 : i32 to index
    %c0_9 = arith.constant 0 : index
    %27 = vector.load %arg4[%26, %c0_9] : memref<16x1xf32, #tpu.memory_space<vmem>>, vector<8x1xf32>
    %28 = arith.subf %22, %27 : vector<8x1xf32>
    %29 = arith.mulf %25, %25 : vector<8x1xf32>
    %30 = arith.mulf %28, %28 : vector<8x1xf32>
    %31 = arith.addf %29, %30 : vector<8x1xf32>
    %32 = tpu.iota {dimensions = array<i32: 1>} : vector<1x8x128xi32>
    %33 = tpu.iota {dimensions = array<i32: 2>} : vector<1x8x128xi32>
    %c0_i32 = arith.constant 0 : i32
    %34 = vector.broadcast %c0_i32 : i32 to vector<1x8x128xi32>
    %35 = arith.cmpi eq, %32, %34 : vector<1x8x128xi32>
    %c0_i32_10 = arith.constant 0 : i32
    %36 = vector.broadcast %c0_i32_10 : i32 to vector<1x8x128xi32>
    %37 = arith.cmpi eq, %33, %36 : vector<1x8x128xi32>
    %38 = arith.andi %35, %37 : vector<1x8x128xi1>
    %39 = vector.shape_cast %31 : vector<8x1xf32> to vector<1x8x1xf32>
    %cst_11 = arith.constant dense<0.000000e+00> : vector<1xf32>
    %40 = vector.multi_reduction <add>, %39, %cst_11 [1, 2] : vector<1x8x1xf32> to vector<1xf32>
    %41 = vector.shape_cast %40 : vector<1xf32> to vector<1x1x1xf32>
    %42 = vector.extract %41[0, 0, 0] : f32 from vector<1x1x1xf32>
    %cst_12 = arith.constant 0.000000e+00 : f32
    %43 = vector.broadcast %42 : f32 to vector<1x8x128xf32>
    %44 = vector.broadcast %cst_12 : f32 to vector<1x8x128xf32>
    %45 = arith.select %38, %43, %44 : vector<1x8x128xi1>, vector<1x8x128xf32>
    %c0_13 = arith.constant 0 : index
    %c0_14 = arith.constant 0 : index
    %c0_15 = arith.constant 0 : index
    %c0_16 = arith.constant 0 : index
    %46 = vector.load %arg5[%c0_13, %c0_14, %c0_15, %c0_16] : memref<1x1x8x128xf32, #tpu.memory_space<vmem>>, vector<1x1x8x128xf32>
    %47 = vector.shape_cast %46 : vector<1x1x8x128xf32> to vector<1x8x128xf32>
    %48 = vector.shape_cast %45 : vector<1x8x128xf32> to vector<1x1x8x128xf32>
    tpu.vector_store %arg5[%c0_13, %c0_14, %c0_15, %c0_16], %48 {strides = array<i32>} : memref<1x1x8x128xf32, #tpu.memory_space<vmem>>, vector<1x1x8x128xf32>,
    return
  }
  func.func @transform_0(%arg0: i32, %arg1: i32) -> (i32, i32, i32) {
    %c0_i32 = arith.constant 0 : i32
    %c0_i32_0 = arith.constant 0 : i32
    return %arg0, %arg1, %c0_i32 : i32, i32, i32
  }
  func.func @transform_1(%arg0: i32, %arg1: i32) -> (i32, i32) {
    %c0_i32 = arith.constant 0 : i32
    %c0_i32_0 = arith.constant 0 : i32
    %c0_i32_1 = arith.constant 0 : i32
    return %c0_i32, %c0_i32_0 : i32, i32
  }
  func.func @transform_2(%arg0: i32, %arg1: i32) -> (i32, i32) {
    %c0_i32 = arith.constant 0 : i32
    %c0_i32_0 = arith.constant 0 : i32
    %c0_i32_1 = arith.constant 0 : i32
    return %c0_i32, %c0_i32_0 : i32, i32
  }
  func.func @transform_3(%arg0: i32, %arg1: i32) -> (i32, i32, i32, i32) {
    %c0_i32 = arith.constant 0 : i32
    %c0_i32_0 = arith.constant 0 : i32
    %c0_i32_1 = arith.constant 0 : i32
    return %arg0, %arg1, %c0_i32, %c0_i32_0 : i32, i32, i32, i32
  }
}

module attributes {stable_mosaic.version = 11 : i64} {
  func.func @_style_stats_kernel(%arg0: i32, %arg1: memref<8x256xf32, #tpu.memory_space<vmem>>, %arg2: memref<8x1xf32, #tpu.memory_space<vmem>>, %arg3: memref<8x1xf32, #tpu.memory_space<vmem>>) attributes {dimension_semantics = [#tpu.dimension_semantics<parallel>], iteration_bounds = array<i64: 1>, scalar_prefetch = 0 : i64, scratch_operands = 0 : i64, tpu.core_type = #tpu.core_type<tc>, window_params = [{transform_indices = @transform_0, window_bounds = array<i64: 8, 256>}, {transform_indices = @transform_1, window_bounds = array<i64: 8, 1>}, {transform_indices = @transform_2, window_bounds = array<i64: 8, 1>}]} {
    %c0 = arith.constant 0 : index
    %c0_0 = arith.constant 0 : index
    %0 = vector.load %arg1[%c0, %c0_0] : memref<8x256xf32, #tpu.memory_space<vmem>>, vector<8x256xf32>
    %cst = arith.constant dense<0.000000e+00> : vector<8xf32>
    %1 = vector.multi_reduction <add>, %0, %cst [1] : vector<8x256xf32> to vector<8xf32>
    %2 = vector.shape_cast %1 : vector<8xf32> to vector<8x1xf32>
    %3 = arith.mulf %0, %0 : vector<8x256xf32>
    %cst_1 = arith.constant dense<0.000000e+00> : vector<8xf32>
    %4 = vector.multi_reduction <add>, %3, %cst_1 [1] : vector<8x256xf32> to vector<8xf32>
    %5 = vector.shape_cast %4 : vector<8xf32> to vector<8x1xf32>
    %cst_2 = arith.constant 3.906250e-03 : f32
    %6 = vector.broadcast %cst_2 : f32 to vector<8x1xf32>
    %7 = arith.mulf %2, %6 : vector<8x1xf32>
    %cst_3 = arith.constant 2.560000e+02 : f32
    %8 = vector.broadcast %cst_3 : f32 to vector<8x1xf32>
    %9 = arith.mulf %8, %7 : vector<8x1xf32>
    %10 = arith.mulf %9, %7 : vector<8x1xf32>
    %11 = arith.subf %5, %10 : vector<8x1xf32>
    %cst_4 = arith.constant 0.000000e+00 : f32
    %12 = vector.broadcast %cst_4 : f32 to vector<8x1xf32>
    %13 = arith.maximumf %11, %12 : vector<8x1xf32>
    %cst_5 = arith.constant 0.00392156886 : f32
    %14 = vector.broadcast %cst_5 : f32 to vector<8x1xf32>
    %15 = arith.mulf %13, %14 : vector<8x1xf32>
    %cst_6 = arith.constant 9.99999974E-6 : f32
    %16 = vector.broadcast %cst_6 : f32 to vector<8x1xf32>
    %17 = arith.addf %15, %16 : vector<8x1xf32>
    %c0_7 = arith.constant 0 : index
    %c0_8 = arith.constant 0 : index
    %18 = vector.load %arg2[%c0_7, %c0_8] : memref<8x1xf32, #tpu.memory_space<vmem>>, vector<8x1xf32>
    tpu.vector_store %arg2[%c0_7, %c0_8], %7 {strides = array<i32>} : memref<8x1xf32, #tpu.memory_space<vmem>>, vector<8x1xf32>,
    %19 = math.rsqrt %17 : vector<8x1xf32>
    %20 = arith.mulf %17, %19 : vector<8x1xf32>
    %c0_9 = arith.constant 0 : index
    %c0_10 = arith.constant 0 : index
    %21 = vector.load %arg3[%c0_9, %c0_10] : memref<8x1xf32, #tpu.memory_space<vmem>>, vector<8x1xf32>
    tpu.vector_store %arg3[%c0_9, %c0_10], %20 {strides = array<i32>} : memref<8x1xf32, #tpu.memory_space<vmem>>, vector<8x1xf32>,
    return
  }
  func.func @transform_0(%arg0: i32) -> (i32, i32) {
    %c0_i32 = arith.constant 0 : i32
    %c0_i32_0 = arith.constant 0 : i32
    return %arg0, %c0_i32 : i32, i32
  }
  func.func @transform_1(%arg0: i32) -> (i32, i32) {
    %c0_i32 = arith.constant 0 : i32
    %c0_i32_0 = arith.constant 0 : i32
    return %arg0, %c0_i32 : i32, i32
  }
  func.func @transform_2(%arg0: i32) -> (i32, i32) {
    %c0_i32 = arith.constant 0 : i32
    %c0_i32_0 = arith.constant 0 : i32
    return %arg0, %c0_i32 : i32, i32
  }
}

module attributes {stable_mosaic.version = 11 : i64} {
  func.func @_style_stats_kernel(%arg0: i32, %arg1: memref<16x64xf32, #tpu.memory_space<vmem>>, %arg2: memref<16x1xf32, #tpu.memory_space<vmem>>, %arg3: memref<16x1xf32, #tpu.memory_space<vmem>>) attributes {dimension_semantics = [#tpu.dimension_semantics<parallel>], iteration_bounds = array<i64: 2>, scalar_prefetch = 0 : i64, scratch_operands = 0 : i64, tpu.core_type = #tpu.core_type<tc>, window_params = [{transform_indices = @transform_0, window_bounds = array<i64: 16, 64>}, {transform_indices = @transform_1, window_bounds = array<i64: 16, 1>}, {transform_indices = @transform_2, window_bounds = array<i64: 16, 1>}]} {
    %c0 = arith.constant 0 : index
    %c0_0 = arith.constant 0 : index
    %0 = vector.load %arg1[%c0, %c0_0] : memref<16x64xf32, #tpu.memory_space<vmem>>, vector<16x64xf32>
    %cst = arith.constant dense<0.000000e+00> : vector<16xf32>
    %1 = vector.multi_reduction <add>, %0, %cst [1] : vector<16x64xf32> to vector<16xf32>
    %2 = vector.shape_cast %1 : vector<16xf32> to vector<16x1xf32>
    %3 = arith.mulf %0, %0 : vector<16x64xf32>
    %cst_1 = arith.constant dense<0.000000e+00> : vector<16xf32>
    %4 = vector.multi_reduction <add>, %3, %cst_1 [1] : vector<16x64xf32> to vector<16xf32>
    %5 = vector.shape_cast %4 : vector<16xf32> to vector<16x1xf32>
    %cst_2 = arith.constant 1.562500e-02 : f32
    %6 = vector.broadcast %cst_2 : f32 to vector<16x1xf32>
    %7 = arith.mulf %2, %6 : vector<16x1xf32>
    %cst_3 = arith.constant 6.400000e+01 : f32
    %8 = vector.broadcast %cst_3 : f32 to vector<16x1xf32>
    %9 = arith.mulf %8, %7 : vector<16x1xf32>
    %10 = arith.mulf %9, %7 : vector<16x1xf32>
    %11 = arith.subf %5, %10 : vector<16x1xf32>
    %cst_4 = arith.constant 0.000000e+00 : f32
    %12 = vector.broadcast %cst_4 : f32 to vector<16x1xf32>
    %13 = arith.maximumf %11, %12 : vector<16x1xf32>
    %cst_5 = arith.constant 0.0158730168 : f32
    %14 = vector.broadcast %cst_5 : f32 to vector<16x1xf32>
    %15 = arith.mulf %13, %14 : vector<16x1xf32>
    %cst_6 = arith.constant 9.99999974E-6 : f32
    %16 = vector.broadcast %cst_6 : f32 to vector<16x1xf32>
    %17 = arith.addf %15, %16 : vector<16x1xf32>
    %c0_7 = arith.constant 0 : index
    %c0_8 = arith.constant 0 : index
    %18 = vector.load %arg2[%c0_7, %c0_8] : memref<16x1xf32, #tpu.memory_space<vmem>>, vector<16x1xf32>
    tpu.vector_store %arg2[%c0_7, %c0_8], %7 {strides = array<i32>} : memref<16x1xf32, #tpu.memory_space<vmem>>, vector<16x1xf32>,
    %19 = math.rsqrt %17 : vector<16x1xf32>
    %20 = arith.mulf %17, %19 : vector<16x1xf32>
    %c0_9 = arith.constant 0 : index
    %c0_10 = arith.constant 0 : index
    %21 = vector.load %arg3[%c0_9, %c0_10] : memref<16x1xf32, #tpu.memory_space<vmem>>, vector<16x1xf32>
    tpu.vector_store %arg3[%c0_9, %c0_10], %20 {strides = array<i32>} : memref<16x1xf32, #tpu.memory_space<vmem>>, vector<16x1xf32>,
    return
  }
  func.func @transform_0(%arg0: i32) -> (i32, i32) {
    %c0_i32 = arith.constant 0 : i32
    %c0_i32_0 = arith.constant 0 : i32
    return %arg0, %c0_i32 : i32, i32
  }
  func.func @transform_1(%arg0: i32) -> (i32, i32) {
    %c0_i32 = arith.constant 0 : i32
    %c0_i32_0 = arith.constant 0 : i32
    return %arg0, %c0_i32 : i32, i32
  }
  func.func @transform_2(%arg0: i32) -> (i32, i32) {
    %c0_i32 = arith.constant 0 : i32
    %c0_i32_0 = arith.constant 0 : i32
    return %arg0, %c0_i32 : i32, i32
  }
}

module attributes {stable_mosaic.version = 11 : i64} {
  func.func @_style_only_kernel(%arg0: i32, %arg1: i32, %arg2: memref<1x16x64xf32, #tpu.memory_space<vmem>>, %arg3: memref<32x1xf32, #tpu.memory_space<vmem>>, %arg4: memref<32x1xf32, #tpu.memory_space<vmem>>, %arg5: memref<1x1x8x128xf32, #tpu.memory_space<vmem>>) attributes {dimension_semantics = [#tpu.dimension_semantics<parallel>, #tpu.dimension_semantics<parallel>], iteration_bounds = array<i64: 3, 2>, scalar_prefetch = 0 : i64, scratch_operands = 0 : i64, tpu.core_type = #tpu.core_type<tc>, window_params = [{transform_indices = @transform_0, window_bounds = array<i64: 1, 16, 64>}, {pipeline_mode = #tpu.pipeline_mode<synchronous>, transform_indices = @transform_1, window_bounds = array<i64: 32, 1>}, {pipeline_mode = #tpu.pipeline_mode<synchronous>, transform_indices = @transform_2, window_bounds = array<i64: 32, 1>}, {transform_indices = @transform_3, window_bounds = array<i64: 1, 1, 8, 128>}]} {
    %c16_i32 = arith.constant 16 : i32
    %0 = arith.muli %arg1, %c16_i32 : i32
    %1 = tpu.assume_multiple %0, 16 : i32
    %c0 = arith.constant 0 : index
    %c0_0 = arith.constant 0 : index
    %c0_1 = arith.constant 0 : index
    %2 = vector.load %arg2[%c0, %c0_0, %c0_1] : memref<1x16x64xf32, #tpu.memory_space<vmem>>, vector<1x16x64xf32>
    %3 = vector.shape_cast %2 : vector<1x16x64xf32> to vector<16x64xf32>
    %cst = arith.constant dense<0.000000e+00> : vector<16xf32>
    %4 = vector.multi_reduction <add>, %3, %cst [1] : vector<16x64xf32> to vector<16xf32>
    %5 = vector.shape_cast %4 : vector<16xf32> to vector<16x1xf32>
    %6 = arith.mulf %3, %3 : vector<16x64xf32>
    %cst_2 = arith.constant dense<0.000000e+00> : vector<16xf32>
    %7 = vector.multi_reduction <add>, %6, %cst_2 [1] : vector<16x64xf32> to vector<16xf32>
    %8 = vector.shape_cast %7 : vector<16xf32> to vector<16x1xf32>
    %cst_3 = arith.constant 1.562500e-02 : f32
    %9 = vector.broadcast %cst_3 : f32 to vector<16x1xf32>
    %10 = arith.mulf %5, %9 : vector<16x1xf32>
    %cst_4 = arith.constant 6.400000e+01 : f32
    %11 = vector.broadcast %cst_4 : f32 to vector<16x1xf32>
    %12 = arith.mulf %11, %10 : vector<16x1xf32>
    %13 = arith.mulf %12, %10 : vector<16x1xf32>
    %14 = arith.subf %8, %13 : vector<16x1xf32>
    %cst_5 = arith.constant 0.000000e+00 : f32
    %15 = vector.broadcast %cst_5 : f32 to vector<16x1xf32>
    %16 = arith.maximumf %14, %15 : vector<16x1xf32>
    %cst_6 = arith.constant 0.0158730168 : f32
    %17 = vector.broadcast %cst_6 : f32 to vector<16x1xf32>
    %18 = arith.mulf %16, %17 : vector<16x1xf32>
    %cst_7 = arith.constant 9.99999974E-6 : f32
    %19 = vector.broadcast %cst_7 : f32 to vector<16x1xf32>
    %20 = arith.addf %18, %19 : vector<16x1xf32>
    %21 = math.rsqrt %20 : vector<16x1xf32>
    %22 = arith.mulf %20, %21 : vector<16x1xf32>
    %23 = arith.index_cast %1 : i32 to index
    %c0_8 = arith.constant 0 : index
    %24 = vector.load %arg3[%23, %c0_8] : memref<32x1xf32, #tpu.memory_space<vmem>>, vector<16x1xf32>
    %25 = arith.subf %10, %24 : vector<16x1xf32>
    %26 = arith.index_cast %1 : i32 to index
    %c0_9 = arith.constant 0 : index
    %27 = vector.load %arg4[%26, %c0_9] : memref<32x1xf32, #tpu.memory_space<vmem>>, vector<16x1xf32>
    %28 = arith.subf %22, %27 : vector<16x1xf32>
    %29 = arith.mulf %25, %25 : vector<16x1xf32>
    %30 = arith.mulf %28, %28 : vector<16x1xf32>
    %31 = arith.addf %29, %30 : vector<16x1xf32>
    %32 = tpu.iota {dimensions = array<i32: 1>} : vector<1x8x128xi32>
    %33 = tpu.iota {dimensions = array<i32: 2>} : vector<1x8x128xi32>
    %c0_i32 = arith.constant 0 : i32
    %34 = vector.broadcast %c0_i32 : i32 to vector<1x8x128xi32>
    %35 = arith.cmpi eq, %32, %34 : vector<1x8x128xi32>
    %c0_i32_10 = arith.constant 0 : i32
    %36 = vector.broadcast %c0_i32_10 : i32 to vector<1x8x128xi32>
    %37 = arith.cmpi eq, %33, %36 : vector<1x8x128xi32>
    %38 = arith.andi %35, %37 : vector<1x8x128xi1>
    %39 = vector.shape_cast %31 : vector<16x1xf32> to vector<1x16x1xf32>
    %cst_11 = arith.constant dense<0.000000e+00> : vector<1xf32>
    %40 = vector.multi_reduction <add>, %39, %cst_11 [1, 2] : vector<1x16x1xf32> to vector<1xf32>
    %41 = vector.shape_cast %40 : vector<1xf32> to vector<1x1x1xf32>
    %42 = vector.extract %41[0, 0, 0] : f32 from vector<1x1x1xf32>
    %cst_12 = arith.constant 0.000000e+00 : f32
    %43 = vector.broadcast %42 : f32 to vector<1x8x128xf32>
    %44 = vector.broadcast %cst_12 : f32 to vector<1x8x128xf32>
    %45 = arith.select %38, %43, %44 : vector<1x8x128xi1>, vector<1x8x128xf32>
    %c0_13 = arith.constant 0 : index
    %c0_14 = arith.constant 0 : index
    %c0_15 = arith.constant 0 : index
    %c0_16 = arith.constant 0 : index
    %46 = vector.load %arg5[%c0_13, %c0_14, %c0_15, %c0_16] : memref<1x1x8x128xf32, #tpu.memory_space<vmem>>, vector<1x1x8x128xf32>
    %47 = vector.shape_cast %46 : vector<1x1x8x128xf32> to vector<1x8x128xf32>
    %48 = vector.shape_cast %45 : vector<1x8x128xf32> to vector<1x1x8x128xf32>
    tpu.vector_store %arg5[%c0_13, %c0_14, %c0_15, %c0_16], %48 {strides = array<i32>} : memref<1x1x8x128xf32, #tpu.memory_space<vmem>>, vector<1x1x8x128xf32>,
    return
  }
  func.func @transform_0(%arg0: i32, %arg1: i32) -> (i32, i32, i32) {
    %c0_i32 = arith.constant 0 : i32
    %c0_i32_0 = arith.constant 0 : i32
    return %arg0, %arg1, %c0_i32 : i32, i32, i32
  }
  func.func @transform_1(%arg0: i32, %arg1: i32) -> (i32, i32) {
    %c0_i32 = arith.constant 0 : i32
    %c0_i32_0 = arith.constant 0 : i32
    %c0_i32_1 = arith.constant 0 : i32
    return %c0_i32, %c0_i32_0 : i32, i32
  }
  func.func @transform_2(%arg0: i32, %arg1: i32) -> (i32, i32) {
    %c0_i32 = arith.constant 0 : i32
    %c0_i32_0 = arith.constant 0 : i32
    %c0_i32_1 = arith.constant 0 : i32
    return %c0_i32, %c0_i32_0 : i32, i32
  }
  func.func @transform_3(%arg0: i32, %arg1: i32) -> (i32, i32, i32, i32) {
    %c0_i32 = arith.constant 0 : i32
    %c0_i32_0 = arith.constant 0 : i32
    %c0_i32_1 = arith.constant 0 : i32
    return %arg0, %arg1, %c0_i32, %c0_i32_0 : i32, i32, i32, i32
  }
}

module attributes {stable_mosaic.version = 11 : i64} {
  func.func @_style_only_kernel(%arg0: i32, %arg1: i32, %arg2: memref<1x8x256xf32, #tpu.memory_space<vmem>>, %arg3: memref<8x1xf32, #tpu.memory_space<vmem>>, %arg4: memref<8x1xf32, #tpu.memory_space<vmem>>, %arg5: memref<1x1x8x128xf32, #tpu.memory_space<vmem>>) attributes {dimension_semantics = [#tpu.dimension_semantics<parallel>, #tpu.dimension_semantics<parallel>], iteration_bounds = array<i64: 3, 1>, scalar_prefetch = 0 : i64, scratch_operands = 0 : i64, tpu.core_type = #tpu.core_type<tc>, window_params = [{transform_indices = @transform_0, window_bounds = array<i64: 1, 8, 256>}, {pipeline_mode = #tpu.pipeline_mode<synchronous>, transform_indices = @transform_1, window_bounds = array<i64: 8, 1>}, {pipeline_mode = #tpu.pipeline_mode<synchronous>, transform_indices = @transform_2, window_bounds = array<i64: 8, 1>}, {transform_indices = @transform_3, window_bounds = array<i64: 1, 1, 8, 128>}]} {
    %c8_i32 = arith.constant 8 : i32
    %0 = arith.muli %arg1, %c8_i32 : i32
    %1 = tpu.assume_multiple %0, 8 : i32
    %c0 = arith.constant 0 : index
    %c0_0 = arith.constant 0 : index
    %c0_1 = arith.constant 0 : index
    %2 = vector.load %arg2[%c0, %c0_0, %c0_1] : memref<1x8x256xf32, #tpu.memory_space<vmem>>, vector<1x8x256xf32>
    %3 = vector.shape_cast %2 : vector<1x8x256xf32> to vector<8x256xf32>
    %cst = arith.constant dense<0.000000e+00> : vector<8xf32>
    %4 = vector.multi_reduction <add>, %3, %cst [1] : vector<8x256xf32> to vector<8xf32>
    %5 = vector.shape_cast %4 : vector<8xf32> to vector<8x1xf32>
    %6 = arith.mulf %3, %3 : vector<8x256xf32>
    %cst_2 = arith.constant dense<0.000000e+00> : vector<8xf32>
    %7 = vector.multi_reduction <add>, %6, %cst_2 [1] : vector<8x256xf32> to vector<8xf32>
    %8 = vector.shape_cast %7 : vector<8xf32> to vector<8x1xf32>
    %cst_3 = arith.constant 3.906250e-03 : f32
    %9 = vector.broadcast %cst_3 : f32 to vector<8x1xf32>
    %10 = arith.mulf %5, %9 : vector<8x1xf32>
    %cst_4 = arith.constant 2.560000e+02 : f32
    %11 = vector.broadcast %cst_4 : f32 to vector<8x1xf32>
    %12 = arith.mulf %11, %10 : vector<8x1xf32>
    %13 = arith.mulf %12, %10 : vector<8x1xf32>
    %14 = arith.subf %8, %13 : vector<8x1xf32>
    %cst_5 = arith.constant 0.000000e+00 : f32
    %15 = vector.broadcast %cst_5 : f32 to vector<8x1xf32>
    %16 = arith.maximumf %14, %15 : vector<8x1xf32>
    %cst_6 = arith.constant 0.00392156886 : f32
    %17 = vector.broadcast %cst_6 : f32 to vector<8x1xf32>
    %18 = arith.mulf %16, %17 : vector<8x1xf32>
    %cst_7 = arith.constant 9.99999974E-6 : f32
    %19 = vector.broadcast %cst_7 : f32 to vector<8x1xf32>
    %20 = arith.addf %18, %19 : vector<8x1xf32>
    %21 = math.rsqrt %20 : vector<8x1xf32>
    %22 = arith.mulf %20, %21 : vector<8x1xf32>
    %23 = arith.index_cast %1 : i32 to index
    %c0_8 = arith.constant 0 : index
    %24 = vector.load %arg3[%23, %c0_8] : memref<8x1xf32, #tpu.memory_space<vmem>>, vector<8x1xf32>
    %25 = arith.subf %10, %24 : vector<8x1xf32>
    %26 = arith.index_cast %1 : i32 to index
    %c0_9 = arith.constant 0 : index
    %27 = vector.load %arg4[%26, %c0_9] : memref<8x1xf32, #tpu.memory_space<vmem>>, vector<8x1xf32>
    %28 = arith.subf %22, %27 : vector<8x1xf32>
    %29 = arith.mulf %25, %25 : vector<8x1xf32>
    %30 = arith.mulf %28, %28 : vector<8x1xf32>
    %31 = arith.addf %29, %30 : vector<8x1xf32>
    %32 = tpu.iota {dimensions = array<i32: 1>} : vector<1x8x128xi32>
    %33 = tpu.iota {dimensions = array<i32: 2>} : vector<1x8x128xi32>
    %c0_i32 = arith.constant 0 : i32
    %34 = vector.broadcast %c0_i32 : i32 to vector<1x8x128xi32>
    %35 = arith.cmpi eq, %32, %34 : vector<1x8x128xi32>
    %c0_i32_10 = arith.constant 0 : i32
    %36 = vector.broadcast %c0_i32_10 : i32 to vector<1x8x128xi32>
    %37 = arith.cmpi eq, %33, %36 : vector<1x8x128xi32>
    %38 = arith.andi %35, %37 : vector<1x8x128xi1>
    %39 = vector.shape_cast %31 : vector<8x1xf32> to vector<1x8x1xf32>
    %cst_11 = arith.constant dense<0.000000e+00> : vector<1xf32>
    %40 = vector.multi_reduction <add>, %39, %cst_11 [1, 2] : vector<1x8x1xf32> to vector<1xf32>
    %41 = vector.shape_cast %40 : vector<1xf32> to vector<1x1x1xf32>
    %42 = vector.extract %41[0, 0, 0] : f32 from vector<1x1x1xf32>
    %cst_12 = arith.constant 0.000000e+00 : f32
    %43 = vector.broadcast %42 : f32 to vector<1x8x128xf32>
    %44 = vector.broadcast %cst_12 : f32 to vector<1x8x128xf32>
    %45 = arith.select %38, %43, %44 : vector<1x8x128xi1>, vector<1x8x128xf32>
    %c0_13 = arith.constant 0 : index
    %c0_14 = arith.constant 0 : index
    %c0_15 = arith.constant 0 : index
    %c0_16 = arith.constant 0 : index
    %46 = vector.load %arg5[%c0_13, %c0_14, %c0_15, %c0_16] : memref<1x1x8x128xf32, #tpu.memory_space<vmem>>, vector<1x1x8x128xf32>
    %47 = vector.shape_cast %46 : vector<1x1x8x128xf32> to vector<1x8x128xf32>
    %48 = vector.shape_cast %45 : vector<1x8x128xf32> to vector<1x1x8x128xf32>
    tpu.vector_store %arg5[%c0_13, %c0_14, %c0_15, %c0_16], %48 {strides = array<i32>} : memref<1x1x8x128xf32, #tpu.memory_space<vmem>>, vector<1x1x8x128xf32>,
    return
  }
  func.func @transform_0(%arg0: i32, %arg1: i32) -> (i32, i32, i32) {
    %c0_i32 = arith.constant 0 : i32
    %c0_i32_0 = arith.constant 0 : i32
    return %arg0, %arg1, %c0_i32 : i32, i32, i32
  }
  func.func @transform_1(%arg0: i32, %arg1: i32) -> (i32, i32) {
    %c0_i32 = arith.constant 0 : i32
    %c0_i32_0 = arith.constant 0 : i32
    %c0_i32_1 = arith.constant 0 : i32
    return %c0_i32, %c0_i32_0 : i32, i32
  }
  func.func @transform_2(%arg0: i32, %arg1: i32) -> (i32, i32) {
    %c0_i32 = arith.constant 0 : i32
    %c0_i32_0 = arith.constant 0 : i32
    %c0_i32_1 = arith.constant 0 : i32
    return %c0_i32, %c0_i32_0 : i32, i32
  }
  func.func @transform_3(%arg0: i32, %arg1: i32) -> (i32, i32, i32, i32) {
    %c0_i32 = arith.constant 0 : i32
    %c0_i32_0 = arith.constant 0 : i32
    %c0_i32_1 = arith.constant 0 : i32
    return %arg0, %arg1, %c0_i32, %c0_i32_0 : i32, i32, i32, i32
  }
}

module attributes {stable_mosaic.version = 11 : i64} {
  func.func @_style_stats_kernel(%arg0: i32, %arg1: memref<16x16xf32, #tpu.memory_space<vmem>>, %arg2: memref<16x1xf32, #tpu.memory_space<vmem>>, %arg3: memref<16x1xf32, #tpu.memory_space<vmem>>) attributes {dimension_semantics = [#tpu.dimension_semantics<parallel>], iteration_bounds = array<i64: 2>, scalar_prefetch = 0 : i64, scratch_operands = 0 : i64, tpu.core_type = #tpu.core_type<tc>, window_params = [{transform_indices = @transform_0, window_bounds = array<i64: 16, 16>}, {transform_indices = @transform_1, window_bounds = array<i64: 16, 1>}, {transform_indices = @transform_2, window_bounds = array<i64: 16, 1>}]} {
    %c0 = arith.constant 0 : index
    %c0_0 = arith.constant 0 : index
    %0 = vector.load %arg1[%c0, %c0_0] : memref<16x16xf32, #tpu.memory_space<vmem>>, vector<16x16xf32>
    %cst = arith.constant dense<0.000000e+00> : vector<16xf32>
    %1 = vector.multi_reduction <add>, %0, %cst [1] : vector<16x16xf32> to vector<16xf32>
    %2 = vector.shape_cast %1 : vector<16xf32> to vector<16x1xf32>
    %3 = arith.mulf %0, %0 : vector<16x16xf32>
    %cst_1 = arith.constant dense<0.000000e+00> : vector<16xf32>
    %4 = vector.multi_reduction <add>, %3, %cst_1 [1] : vector<16x16xf32> to vector<16xf32>
    %5 = vector.shape_cast %4 : vector<16xf32> to vector<16x1xf32>
    %cst_2 = arith.constant 6.250000e-02 : f32
    %6 = vector.broadcast %cst_2 : f32 to vector<16x1xf32>
    %7 = arith.mulf %2, %6 : vector<16x1xf32>
    %cst_3 = arith.constant 1.600000e+01 : f32
    %8 = vector.broadcast %cst_3 : f32 to vector<16x1xf32>
    %9 = arith.mulf %8, %7 : vector<16x1xf32>
    %10 = arith.mulf %9, %7 : vector<16x1xf32>
    %11 = arith.subf %5, %10 : vector<16x1xf32>
    %cst_4 = arith.constant 0.000000e+00 : f32
    %12 = vector.broadcast %cst_4 : f32 to vector<16x1xf32>
    %13 = arith.maximumf %11, %12 : vector<16x1xf32>
    %cst_5 = arith.constant 0.0666666701 : f32
    %14 = vector.broadcast %cst_5 : f32 to vector<16x1xf32>
    %15 = arith.mulf %13, %14 : vector<16x1xf32>
    %cst_6 = arith.constant 9.99999974E-6 : f32
    %16 = vector.broadcast %cst_6 : f32 to vector<16x1xf32>
    %17 = arith.addf %15, %16 : vector<16x1xf32>
    %c0_7 = arith.constant 0 : index
    %c0_8 = arith.constant 0 : index
    %18 = vector.load %arg2[%c0_7, %c0_8] : memref<16x1xf32, #tpu.memory_space<vmem>>, vector<16x1xf32>
    tpu.vector_store %arg2[%c0_7, %c0_8], %7 {strides = array<i32>} : memref<16x1xf32, #tpu.memory_space<vmem>>, vector<16x1xf32>,
    %19 = math.rsqrt %17 : vector<16x1xf32>
    %20 = arith.mulf %17, %19 : vector<16x1xf32>
    %c0_9 = arith.constant 0 : index
    %c0_10 = arith.constant 0 : index
    %21 = vector.load %arg3[%c0_9, %c0_10] : memref<16x1xf32, #tpu.memory_space<vmem>>, vector<16x1xf32>
    tpu.vector_store %arg3[%c0_9, %c0_10], %20 {strides = array<i32>} : memref<16x1xf32, #tpu.memory_space<vmem>>, vector<16x1xf32>,
    return
  }
  func.func @transform_0(%arg0: i32) -> (i32, i32) {
    %c0_i32 = arith.constant 0 : i32
    %c0_i32_0 = arith.constant 0 : i32
    return %arg0, %c0_i32 : i32, i32
  }
  func.func @transform_1(%arg0: i32) -> (i32, i32) {
    %c0_i32 = arith.constant 0 : i32
    %c0_i32_0 = arith.constant 0 : i32
    return %arg0, %c0_i32 : i32, i32
  }
  func.func @transform_2(%arg0: i32) -> (i32, i32) {
    %c0_i32 = arith.constant 0 : i32
    %c0_i32_0 = arith.constant 0 : i32
    return %arg0, %c0_i32 : i32, i32
  }
}

module attributes {stable_mosaic.version = 11 : i64} {
  func.func @_fused_content_style_kernel(%arg0: i32, %arg1: i32, %arg2: memref<1x8x16xf32, #tpu.memory_space<vmem>>, %arg3: memref<1x8x16xf32, #tpu.memory_space<vmem>>, %arg4: memref<32x1xf32, #tpu.memory_space<vmem>>, %arg5: memref<32x1xf32, #tpu.memory_space<vmem>>, %arg6: memref<1x1x8x128xf32, #tpu.memory_space<vmem>>, %arg7: memref<1x1x8x128xf32, #tpu.memory_space<vmem>>) attributes {dimension_semantics = [#tpu.dimension_semantics<parallel>, #tpu.dimension_semantics<parallel>], iteration_bounds = array<i64: 3, 4>, scalar_prefetch = 0 : i64, scratch_operands = 0 : i64, tpu.core_type = #tpu.core_type<tc>, window_params = [{transform_indices = @transform_0, window_bounds = array<i64: 1, 8, 16>}, {transform_indices = @transform_1, window_bounds = array<i64: 1, 8, 16>}, {pipeline_mode = #tpu.pipeline_mode<synchronous>, transform_indices = @transform_2, window_bounds = array<i64: 32, 1>}, {pipeline_mode = #tpu.pipeline_mode<synchronous>, transform_indices = @transform_3, window_bounds = array<i64: 32, 1>}, {transform_indices = @transform_4, window_bounds = array<i64: 1, 1, 8, 128>}, {transform_indices = @transform_5, window_bounds = array<i64: 1, 1, 8, 128>}]} {
    %c8_i32 = arith.constant 8 : i32
    %0 = arith.muli %arg1, %c8_i32 : i32
    %1 = tpu.assume_multiple %0, 8 : i32
    %c0 = arith.constant 0 : index
    %c0_0 = arith.constant 0 : index
    %c0_1 = arith.constant 0 : index
    %2 = vector.load %arg2[%c0, %c0_0, %c0_1] : memref<1x8x16xf32, #tpu.memory_space<vmem>>, vector<1x8x16xf32>
    %3 = vector.shape_cast %2 : vector<1x8x16xf32> to vector<8x16xf32>
    %c0_2 = arith.constant 0 : index
    %c0_3 = arith.constant 0 : index
    %c0_4 = arith.constant 0 : index
    %4 = vector.load %arg3[%c0_2, %c0_3, %c0_4] : memref<1x8x16xf32, #tpu.memory_space<vmem>>, vector<1x8x16xf32>
    %5 = vector.shape_cast %4 : vector<1x8x16xf32> to vector<8x16xf32>
    %cst = arith.constant dense<0.000000e+00> : vector<8xf32>
    %6 = vector.multi_reduction <add>, %3, %cst [1] : vector<8x16xf32> to vector<8xf32>
    %7 = vector.shape_cast %6 : vector<8xf32> to vector<8x1xf32>
    %8 = arith.mulf %3, %3 : vector<8x16xf32>
    %cst_5 = arith.constant dense<0.000000e+00> : vector<8xf32>
    %9 = vector.multi_reduction <add>, %8, %cst_5 [1] : vector<8x16xf32> to vector<8xf32>
    %10 = vector.shape_cast %9 : vector<8xf32> to vector<8x1xf32>
    %cst_6 = arith.constant dense<0.000000e+00> : vector<8xf32>
    %11 = vector.multi_reduction <add>, %5, %cst_6 [1] : vector<8x16xf32> to vector<8xf32>
    %12 = vector.shape_cast %11 : vector<8xf32> to vector<8x1xf32>
    %13 = arith.mulf %5, %5 : vector<8x16xf32>
    %cst_7 = arith.constant dense<0.000000e+00> : vector<8xf32>
    %14 = vector.multi_reduction <add>, %13, %cst_7 [1] : vector<8x16xf32> to vector<8xf32>
    %15 = vector.shape_cast %14 : vector<8xf32> to vector<8x1xf32>
    %16 = arith.mulf %3, %5 : vector<8x16xf32>
    %cst_8 = arith.constant dense<0.000000e+00> : vector<8xf32>
    %17 = vector.multi_reduction <add>, %16, %cst_8 [1] : vector<8x16xf32> to vector<8xf32>
    %18 = vector.shape_cast %17 : vector<8xf32> to vector<8x1xf32>
    %cst_9 = arith.constant 6.250000e-02 : f32
    %19 = vector.broadcast %cst_9 : f32 to vector<8x1xf32>
    %20 = arith.mulf %7, %19 : vector<8x1xf32>
    %cst_10 = arith.constant 6.250000e-02 : f32
    %21 = vector.broadcast %cst_10 : f32 to vector<8x1xf32>
    %22 = arith.mulf %12, %21 : vector<8x1xf32>
    %cst_11 = arith.constant 1.600000e+01 : f32
    %23 = vector.broadcast %cst_11 : f32 to vector<8x1xf32>
    %24 = arith.mulf %23, %20 : vector<8x1xf32>
    %25 = arith.mulf %24, %20 : vector<8x1xf32>
    %26 = arith.subf %10, %25 : vector<8x1xf32>
    %cst_12 = arith.constant 0.000000e+00 : f32
    %27 = vector.broadcast %cst_12 : f32 to vector<8x1xf32>
    %28 = arith.maximumf %26, %27 : vector<8x1xf32>
    %cst_13 = arith.constant 1.600000e+01 : f32
    %29 = vector.broadcast %cst_13 : f32 to vector<8x1xf32>
    %30 = arith.mulf %29, %22 : vector<8x1xf32>
    %31 = arith.mulf %30, %22 : vector<8x1xf32>
    %32 = arith.subf %15, %31 : vector<8x1xf32>
    %cst_14 = arith.constant 0.000000e+00 : f32
    %33 = vector.broadcast %cst_14 : f32 to vector<8x1xf32>
    %34 = arith.maximumf %32, %33 : vector<8x1xf32>
    %cst_15 = arith.constant 1.600000e+01 : f32
    %35 = vector.broadcast %cst_15 : f32 to vector<8x1xf32>
    %36 = arith.mulf %35, %20 : vector<8x1xf32>
    %37 = arith.mulf %36, %22 : vector<8x1xf32>
    %38 = arith.subf %18, %37 : vector<8x1xf32>
    %cst_16 = arith.constant 0.0666666701 : f32
    %39 = vector.broadcast %cst_16 : f32 to vector<8x1xf32>
    %40 = arith.mulf %28, %39 : vector<8x1xf32>
    %cst_17 = arith.constant 9.99999974E-6 : f32
    %41 = vector.broadcast %cst_17 : f32 to vector<8x1xf32>
    %42 = arith.addf %40, %41 : vector<8x1xf32>
    %cst_18 = arith.constant 0.0666666701 : f32
    %43 = vector.broadcast %cst_18 : f32 to vector<8x1xf32>
    %44 = arith.mulf %34, %43 : vector<8x1xf32>
    %cst_19 = arith.constant 9.99999974E-6 : f32
    %45 = vector.broadcast %cst_19 : f32 to vector<8x1xf32>
    %46 = arith.addf %44, %45 : vector<8x1xf32>
    %47 = math.rsqrt %42 : vector<8x1xf32>
    %48 = math.rsqrt %46 : vector<8x1xf32>
    %49 = arith.mulf %47, %47 : vector<8x1xf32>
    %50 = arith.mulf %28, %49 : vector<8x1xf32>
    %51 = arith.mulf %48, %48 : vector<8x1xf32>
    %52 = arith.mulf %34, %51 : vector<8x1xf32>
    %53 = arith.addf %50, %52 : vector<8x1xf32>
    %cst_20 = arith.constant 2.000000e+00 : f32
    %54 = vector.broadcast %cst_20 : f32 to vector<8x1xf32>
    %55 = arith.mulf %54, %38 : vector<8x1xf32>
    %56 = arith.mulf %47, %48 : vector<8x1xf32>
    %57 = arith.mulf %55, %56 : vector<8x1xf32>
    %58 = arith.subf %53, %57 : vector<8x1xf32>
    %59 = arith.mulf %42, %47 : vector<8x1xf32>
    %60 = arith.index_cast %1 : i32 to index
    %c0_21 = arith.constant 0 : index
    %61 = vector.load %arg4[%60, %c0_21] : memref<32x1xf32, #tpu.memory_space<vmem>>, vector<8x1xf32>
    %62 = arith.subf %20, %61 : vector<8x1xf32>
    %63 = arith.index_cast %1 : i32 to index
    %c0_22 = arith.constant 0 : index
    %64 = vector.load %arg5[%63, %c0_22] : memref<32x1xf32, #tpu.memory_space<vmem>>, vector<8x1xf32>
    %65 = arith.subf %59, %64 : vector<8x1xf32>
    %66 = arith.mulf %62, %62 : vector<8x1xf32>
    %67 = arith.mulf %65, %65 : vector<8x1xf32>
    %68 = arith.addf %66, %67 : vector<8x1xf32>
    %69 = tpu.iota {dimensions = array<i32: 1>} : vector<1x8x128xi32>
    %70 = tpu.iota {dimensions = array<i32: 2>} : vector<1x8x128xi32>
    %c0_i32 = arith.constant 0 : i32
    %71 = vector.broadcast %c0_i32 : i32 to vector<1x8x128xi32>
    %72 = arith.cmpi eq, %69, %71 : vector<1x8x128xi32>
    %c0_i32_23 = arith.constant 0 : i32
    %73 = vector.broadcast %c0_i32_23 : i32 to vector<1x8x128xi32>
    %74 = arith.cmpi eq, %70, %73 : vector<1x8x128xi32>
    %75 = arith.andi %72, %74 : vector<1x8x128xi1>
    %76 = vector.shape_cast %58 : vector<8x1xf32> to vector<1x8x1xf32>
    %cst_24 = arith.constant dense<0.000000e+00> : vector<1xf32>
    %77 = vector.multi_reduction <add>, %76, %cst_24 [1, 2] : vector<1x8x1xf32> to vector<1xf32>
    %78 = vector.shape_cast %77 : vector<1xf32> to vector<1x1x1xf32>
    %79 = vector.extract %78[0, 0, 0] : f32 from vector<1x1x1xf32>
    %cst_25 = arith.constant 0.000000e+00 : f32
    %80 = vector.broadcast %79 : f32 to vector<1x8x128xf32>
    %81 = vector.broadcast %cst_25 : f32 to vector<1x8x128xf32>
    %82 = arith.select %75, %80, %81 : vector<1x8x128xi1>, vector<1x8x128xf32>
    %c0_26 = arith.constant 0 : index
    %c0_27 = arith.constant 0 : index
    %c0_28 = arith.constant 0 : index
    %c0_29 = arith.constant 0 : index
    %83 = vector.load %arg6[%c0_26, %c0_27, %c0_28, %c0_29] : memref<1x1x8x128xf32, #tpu.memory_space<vmem>>, vector<1x1x8x128xf32>
    %84 = vector.shape_cast %83 : vector<1x1x8x128xf32> to vector<1x8x128xf32>
    %85 = vector.shape_cast %82 : vector<1x8x128xf32> to vector<1x1x8x128xf32>
    tpu.vector_store %arg6[%c0_26, %c0_27, %c0_28, %c0_29], %85 {strides = array<i32>} : memref<1x1x8x128xf32, #tpu.memory_space<vmem>>, vector<1x1x8x128xf32>,
    %86 = vector.shape_cast %68 : vector<8x1xf32> to vector<1x8x1xf32>
    %cst_30 = arith.constant dense<0.000000e+00> : vector<1xf32>
    %87 = vector.multi_reduction <add>, %86, %cst_30 [1, 2] : vector<1x8x1xf32> to vector<1xf32>
    %88 = vector.shape_cast %87 : vector<1xf32> to vector<1x1x1xf32>
    %89 = vector.extract %88[0, 0, 0] : f32 from vector<1x1x1xf32>
    %cst_31 = arith.constant 0.000000e+00 : f32
    %90 = vector.broadcast %89 : f32 to vector<1x8x128xf32>
    %91 = vector.broadcast %cst_31 : f32 to vector<1x8x128xf32>
    %92 = arith.select %75, %90, %91 : vector<1x8x128xi1>, vector<1x8x128xf32>
    %c0_32 = arith.constant 0 : index
    %c0_33 = arith.constant 0 : index
    %c0_34 = arith.constant 0 : index
    %c0_35 = arith.constant 0 : index
    %93 = vector.load %arg7[%c0_32, %c0_33, %c0_34, %c0_35] : memref<1x1x8x128xf32, #tpu.memory_space<vmem>>, vector<1x1x8x128xf32>
    %94 = vector.shape_cast %93 : vector<1x1x8x128xf32> to vector<1x8x128xf32>
    %95 = vector.shape_cast %92 : vector<1x8x128xf32> to vector<1x1x8x128xf32>
    tpu.vector_store %arg7[%c0_32, %c0_33, %c0_34, %c0_35], %95 {strides = array<i32>} : memref<1x1x8x128xf32, #tpu.memory_space<vmem>>, vector<1x1x8x128xf32>,
    return
  }
  func.func @transform_0(%arg0: i32, %arg1: i32) -> (i32, i32, i32) {
    %c0_i32 = arith.constant 0 : i32
    %c0_i32_0 = arith.constant 0 : i32
    return %arg0, %arg1, %c0_i32 : i32, i32, i32
  }
  func.func @transform_1(%arg0: i32, %arg1: i32) -> (i32, i32, i32) {
    %c0_i32 = arith.constant 0 : i32
    %c0_i32_0 = arith.constant 0 : i32
    return %arg0, %arg1, %c0_i32 : i32, i32, i32
  }
  func.func @transform_2(%arg0: i32, %arg1: i32) -> (i32, i32) {
    %c0_i32 = arith.constant 0 : i32
    %c0_i32_0 = arith.constant 0 : i32
    %c0_i32_1 = arith.constant 0 : i32
    return %c0_i32, %c0_i32_0 : i32, i32
  }
  func.func @transform_3(%arg0: i32, %arg1: i32) -> (i32, i32) {
    %c0_i32 = arith.constant 0 : i32
    %c0_i32_0 = arith.constant 0 : i32
    %c0_i32_1 = arith.constant 0 : i32
    return %c0_i32, %c0_i32_0 : i32, i32
  }
  func.func @transform_4(%arg0: i32, %arg1: i32) -> (i32, i32, i32, i32) {
    %c0_i32 = arith.constant 0 : i32
    %c0_i32_0 = arith.constant 0 : i32
    %c0_i32_1 = arith.constant 0 : i32
    return %arg0, %arg1, %c0_i32, %c0_i32_0 : i32, i32, i32, i32
  }
  func.func @transform_5(%arg0: i32, %arg1: i32) -> (i32, i32, i32, i32) {
    %c0_i32 = arith.constant 0 : i32
    %c0_i32_0 = arith.constant 0 : i32
    %c0_i32_1 = arith.constant 0 : i32
    return %arg0, %arg1, %c0_i32, %c0_i32_0 : i32, i32, i32, i32
  }
}

</mosaic_0001>

<llo_original>
// kernel: net_forward_losses.18
$region0: #{net_forward_losses.18}
  #allocation0 [shape = 'u32[]', space=smem, size = 0x4, offset = 0x4, fixed_abs, tag = 'smem constant byte address 0x4 - core index']
  #allocation1 [shape = 'u32[72,128]{1,0:T(1,128)}', space=vmem, size = 0x9000, scoped, tag = 'internal scratch']
  %s0 = inlined_call_operand.vmem [shape: f32[3,16,64], index: 0, kind: input, shape index: {}]
  %s1 = inlined_call_operand.vmem [shape: f32[16,1], index: 1, kind: input, shape index: {}]
  %s2 = inlined_call_operand.vmem [shape: f32[16,1], index: 2, kind: input, shape index: {}]
  %s3 = inlined_call_operand.vmem [shape: f32[3,2,8,128], index: 3, kind: output, shape index: {}]
  %s4 = sld [smem:[#allocation0]]
  $region45: #{net_forward_losses.18} parent=0
    _
  %s6 = ssub.s32 1, %s4
  %s7 = scalar_select 0, %s6, %s4
  loop: start=0, step=1, limit=8
  $region2: #{net_forward_losses.18} parent=0 // loop_pre_header
    _
  $region3: #{net_forward_losses.18} parent=0 // loop_header
    %s9 = sphi 0, %s13
    %p10 = scmp.ge.s32.totalorder %s9, 8
    %s16 = sphi 0, %s28
    %s17 = sphi 0, %s24
    %s18 = sphi 0, %s16
    %s19 = sphi 0, %s17
    %s20 = sphi 0, %s18
    %s21 = sphi 0, %s19
    %s33 = sphi 0, %s35
    %s36 = sphi 0, %s33
    %s37 = sphi 0, %s36
    %s53 = sphi 0, %s37
    %s57 = sphi 0, %s57
    %s59 = sphi 0, %s57
    %s60 = sphi 0, %s59
    %s74 = sphi 0, %s60
    %s78 = sphi 0, %s78
    %s80 = sphi 0, %s78
    %s81 = sphi 0, %s80
    %s95 = sphi 0, %s81
    %s103 = sphi 0, %s105
    %s106 = sphi 0, %s103
    %s107 = sphi 0, %s106
    %s123 = sphi 0, %s107
  $region4: #{net_forward_losses.18} parent=0 // loop_header_branch
    %12 = sbr.rel (%p10) target = $region8
  $region5: #{net_forward_losses.18} parent=0 // loop_body
    %s14 = ssub.s32 %s9, 1
    %s15 = ssub.s32 %s9, 2
    %s22 = sadd.s32 1, %s17
    %p23 = scmp.ge.s32.totalorder %s22, 2
    %s24 = scalar_select %p23, 0, %s22
    %s25 = sadd.s32 1, %s16
    %s26 = scalar_select %p23, %s25, %s16
    %p27 = scmp.ge.s32.totalorder %s26, 3
    %s28 = scalar_select %p27, 0, %s26
    %s29 = ssub.s32 %s16, %s28
    %s30 = ssub.s32 %s17, %s24
    %s31 = sor.u32 %s29, %s30
    %p32 = scmp.eq.s32.totalorder %s31, 0
    %s34 = sadd.s32 %s33, 1
    %s35 = scalar_select %p32, %s33, %s34
    %p38 = pneg %p32
    %p39 = scmp.eq.s32.totalorder %s9, 5
    %p40 = por %p38, %p39
    %p41 = scmp.ne.s32.totalorder %s33, %s36
    %p42 = scmp.eq.s32.totalorder %s9, 0
    %p43 = por %p41, %p42
    %p44 = scmp.ne.s32.totalorder %s33, %s36
    %p45 = scmp.eq.s32.totalorder %s14, 5
    %p46 = por %p44, %p45
    %p47 = scmp.ne.s32.totalorder %s36, %s37
    %p48 = scmp.eq.s32.totalorder %s14, 0
    %p49 = por %p47, %p48
    %p50 = scmp.ne.s32.totalorder %s36, %s37
    %p51 = scmp.eq.s32.totalorder %s15, 5
    %p52 = por %p50, %p51
    %p54 = scmp.ne.s32.totalorder %s37, %s53
    %p55 = scmp.eq.s32.totalorder %s15, 0
    %p56 = por %p54, %p55
    %s58 = sadd.s32 %s57, 1
    %p61 = scmp.eq.s32.totalorder %s9, 5
    %p62 = scmp.ne.s32.totalorder %s57, %s59
    %p63 = scmp.eq.s32.totalorder %s9, 0
    %p64 = por %p62, %p63
    %p65 = scmp.ne.s32.totalorder %s57, %s59
    %p66 = scmp.eq.s32.totalorder %s14, 5
    %p67 = por %p65, %p66
    %p68 = scmp.ne.s32.totalorder %s59, %s60
    %p69 = scmp.eq.s32.totalorder %s14, 0
    %p70 = por %p68, %p69
    %p71 = scmp.ne.s32.totalorder %s59, %s60
    %p72 = scmp.eq.s32.totalorder %s15, 5
    %p73 = por %p71, %p72
    %p75 = scmp.ne.s32.totalorder %s60, %s74
    %p76 = scmp.eq.s32.totalorder %s15, 0
    %p77 = por %p75, %p76
    %s79 = sadd.s32 %s78, 1
    %p82 = scmp.eq.s32.totalorder %s9, 5
    %p83 = scmp.ne.s32.totalorder %s78, %s80
    %p84 = scmp.eq.s32.totalorder %s9, 0
    %p85 = por %p83, %p84
    %p86 = scmp.ne.s32.totalorder %s78, %s80
    %p87 = scmp.eq.s32.totalorder %s14, 5
    %p88 = por %p86, %p87
    %p89 = scmp.ne.s32.totalorder %s80, %s81
    %p90 = scmp.eq.s32.totalorder %s14, 0
    %p91 = por %p89, %p90
    %p92 = scmp.ne.s32.totalorder %s80, %s81
    %p93 = scmp.eq.s32.totalorder %s15, 5
    %p94 = por %p92, %p93
    %p96 = scmp.ne.s32.totalorder %s81, %s95
    %p97 = scmp.eq.s32.totalorder %s15, 0
    %p98 = por %p96, %p97
    %s99 = ssub.s32 %s16, %s28
    %s100 = ssub.s32 %s17, %s24
    %s101 = sor.u32 %s99, %s100
    %p102 = scmp.eq.s32.totalorder %s101, 0
    %s104 = sadd.s32 %s103, 1
    %s105 = scalar_select %p102, %s103, %s104
    %p108 = pneg %p102
    %p109 = scmp.eq.s32.totalorder %s9, 5
    %p110 = por %p108, %p109
    %p111 = scmp.ne.s32.totalorder %s103, %s106
    %p112 = scmp.eq.s32.totalorder %s9, 0
    %p113 = por %p111, %p112
    %p114 = scmp.ne.s32.totalorder %s103, %s106
    %p115 = scmp.eq.s32.totalorder %s14, 5
    %p116 = por %p114, %p115
    %p117 = scmp.ne.s32.totalorder %s106, %s107
    %p118 = scmp.eq.s32.totalorder %s14, 0
    %p119 = por %p117, %p118
    %p120 = scmp.ne.s32.totalorder %s106, %s107
    %p121 = scmp.eq.s32.totalorder %s15, 5
    %p122 = por %p120, %p121
    %p124 = scmp.ne.s32.totalorder %s107, %s123
    %p125 = scmp.eq.s32.totalorder %s15, 0
    %p126 = por %p124, %p125
    %p127 = scmp.le.s32.totalorder 1, %s9
    %p128 = scmp.lt.s32.totalorder %s9, 7
    %p129 = pnand %p127, %p128
    %p130 = pneg %p129
    // Predicated region
    $region9: #{net_forward_losses.18} parent=5 // pred_check
      _
    $region10: #{net_forward_losses.18} parent=5 // pred_check_branch
      %132 = sbr.rel (%p129) target = $region12
    $region11: #{net_forward_losses.18} parent=5 // pred_region
      %s133 = ssub.s32 %s9, 1
      // Predicated region
      $region13: #{net_forward_losses.18} parent=11 // pred_check
        %p134 = pneg %p70
      $region14: #{net_forward_losses.18} parent=11 // pred_check_branch
        %136 = sbr.rel (%p134) target = $region16
      $region15: #{net_forward_losses.18} parent=11 // pred_region
        _
      $region16: #{net_forward_losses.18} parent=11 // pred_fallthru
        _
      // Predicated region
      $region17: #{net_forward_losses.18} parent=11 // pred_check
        %p137 = pneg %p91
      $region18: #{net_forward_losses.18} parent=11 // pred_check_branch
        %139 = sbr.rel (%p137) target = $region20
      $region19: #{net_forward_losses.18} parent=11 // pred_region
        _
      $region20: #{net_forward_losses.18} parent=11 // pred_fallthru
        _
    $region12: #{net_forward_losses.18} parent=5 // pred_fallthru
      _
    %p140 = scmp.lt.s32.totalorder %s9, 6
    // Predicated region
    $region21: #{net_forward_losses.18} parent=5 // pred_check
      %p141 = pneg %p140
    $region22: #{net_forward_losses.18} parent=5 // pred_check_branch
      %143 = sbr.rel (%p141) target = $region24
    $region23: #{net_forward_losses.18} parent=5 // pred_region
      // Predicated region
      $region25: #{net_forward_losses.18} parent=23 // pred_check
        %p144 = pneg %p43
      $region26: #{net_forward_losses.18} parent=23 // pred_check_branch
        %146 = sbr.rel (%p144) target = $region28
      $region27: #{net_forward_losses.18} parent=23 // pred_region
        %p147 = scmp.lt.s32.totalorder %s16, 2
        %s148 = scalar_select %p147, %s16, 2
        %p149 = scmp.lt.s32.totalorder %s17, 1
        %s150 = scalar_select %p149, %s17, 1
        %s151 = smul.addr %s148, 2
        %s152 = sadd.s32 %s150, %s151
        %s153 = smul.addr %s152, 8
        %s154 = scalar_lea.vmem %s0, %s153
      $region28: #{net_forward_losses.18} parent=23 // pred_fallthru
        _
    $region24: #{net_forward_losses.18} parent=5 // pred_fallthru
      _
    %p155 = scmp.le.s32.totalorder 1, %s9
    %p156 = scmp.lt.s32.totalorder %s9, 7
    %p157 = pnand %p155, %p156
    %p158 = pneg %p157
    // Predicated region
    $region29: #{net_forward_losses.18} parent=5 // pred_check
      _
    $region30: #{net_forward_losses.18} parent=5 // pred_check_branch
      %160 = sbr.rel (%p157) target = $region32
    $region31: #{net_forward_losses.18} parent=5 // pred_region
      %s161 = ssub.s32 %s9, 1
      %p162 = scmp.lt.s32.totalorder %s18, 2
      %s163 = scalar_select %p162, %s18, 2
      %p164 = scmp.lt.s32.totalorder %s19, 1
      %s165 = scalar_select %p164, %s19, 1
      %s166 = smul.addr %s163, 2
      %s167 = sadd.s32 %s165, %s166
      %s168 = smul.addr %s167, 8
      %s169 = scalar_lea.vmem %s0, %s168
      %p170 = pneg %p49
      %p171 = pneg %p46
      %p172 = pneg %p70
      %p173 = pneg %p67
      %p174 = pneg %p91
      %p175 = pneg %p88
      %p176 = pneg %p119
      %p177 = pneg %p116
      %p178 = scmp.lt.s32.totalorder %s18, 2
      %s179 = scalar_select %p178, %s18, 2
      %p180 = scmp.lt.s32.totalorder %s19, 1
      %s181 = scalar_select %p180, %s19, 1
      %s182 = smul.addr %s179, 2
      %s183 = sadd.s32 %s181, %s182
      %s184 = smul.addr %s183, 8
      %s185 = scalar_lea.vmem %s3, %s184
      %p186 = scmp.lt.s32.totalorder %s18, 2
      %s187 = scalar_select %p186, %s18, 2
      %p188 = scmp.lt.s32.totalorder %s19, 1
      %s189 = scalar_select %p188, %s19, 1
      %s190 = smul.addr %s187, 2
      %s191 = sadd.s32 %s189, %s190
      %s192 = smul.addr %s191, 8
      %s193 = scalar_lea.vmem %s0, %s192
      %p194 = scmp.lt.s32.totalorder %s18, 2
      %s195 = scalar_select %p194, %s18, 2
      %p196 = scmp.lt.s32.totalorder %s19, 1
      %s197 = scalar_select %p196, %s19, 1
      %s198 = smul.addr %s195, 2
      %s199 = sadd.s32 %s197, %s198
      %s200 = smul.addr %s199, 8
      %s201 = scalar_lea.vmem %s3, %s200
      %s202 = smul.u32 %s19, 8
      %v203 = vld [vmem:[%s193] sm:$0xff]
      %vm204 = vcmask 523264
      %v205 = vsel %vm204, %v203, 0.0
      %206 = vadd.xlane.f32.xlu0 %v205
      %v207 = vpop.xlane.xlu0 %206
      %v208 = vmul.f32 %v203, %v203
      %v209 = vsel %vm204, %v208, 0.0
      %210 = vadd.xlane.f32.xlu0 %v209
      %v211 = vpop.xlane.xlu0 %210
      %v212 = vmul.f32 %v207, 0.015625
      %v213 = vmul.f32 %v212, 64.0
      %v214 = vmul.f32 %v213, %v212
      %v215 = vsub.f32 %v211, %v214
      %v216 = vmax.f32 %v215, 0.0
      %v217 = vmul.f32 %v216, 0.015873017
      %v218 = vadd.f32 %v217, 1e-05
      %v219 = vrsqrt.pop %v218
      %v220 = vmul.f32 %v219, %v218
      %v221 = vmul.f32 %v220, %v219
      %v222 = vmul.f32 0.5, %v221
      %v223 = vsub.f32 1.5, %v222
      %v224 = vmul.f32 %v219, %v223
      %vm225 = vweird.f32 %v218
      %vm226 = vweird.f32 %v219
      %vm227 = vmor %vm225, %vm226
      %v228 = vsel %vm227, %v219, %v224
      %v229 = vmul.f32 %v218, %v228
      %s230 = scalar_lea.vmem %s1, %s202
      %v231 = vld [vmem:[%s230] sm:$0xff]
      %v232 = vsub.f32 %v212, %v231
      %s233 = scalar_lea.vmem %s2, %s202
      %v234 = vld [vmem:[%s233] sm:$0xff]
      %v235 = vsub.f32 %v229, %v234
      %v236 = vmul.f32 %v232, %v232
      %v237 = vmul.f32 %v235, %v235
      %v238 = vadd.f32 %v236, %v237
      %v239 = vlaneseq
      %v240 = vshrl.u32 %v239, 7
      %v241 = vlaneseq
      %v242 = vand.u32 %v241, 127
      %vm243 = vcmp.eq.s32.totalorder %v240, 0
      %vm244 = vcmp.eq.s32.totalorder %v242, 0
      %vm245 = vmand %vm243, %vm244
      %vm246 = vcmask 7168
      %v247 = vsel %vm246, %v238, 0.0
      %248 = vadd.xlane.f32.xlu0 %v247
      %v249 = vpop.xlane.xlu0 %248
      %v250 = vrot.slane %v249, 4
      %v251 = vadd.f32 %v249, %v250
      %v252 = vrot.slane %v251, 2
      %v253 = vadd.f32 %v251, %v252
      %v254 = vrot.slane %v253, 1
      %v255 = vadd.f32 %v253, %v254
      %s256 = vtos %v255
      %v257 = vstv %s256
      %v258 = vsel %vm245, %v257, 0.0
      %259 = vst [vmem:[%s201] sm:$0xff] %v258
      %p260 = scmp.lt.s32.totalorder %s18, 2
      %s261 = scalar_select %p260, %s18, 2
      %p262 = scmp.lt.s32.totalorder %s19, 1
      %s263 = scalar_select %p262, %s19, 1
      %s264 = smul.addr %s261, 2
      %s265 = sadd.s32 %s263, %s264
      %s266 = smul.addr %s265, 8
      %s267 = scalar_lea.vmem %s3, %s266
      // Predicated region
      $region33: #{net_forward_losses.18} parent=31 // pred_check
        %p268 = pneg %p116
      $region34: #{net_forward_losses.18} parent=31 // pred_check_branch
        %270 = sbr.rel (%p268) target = $region36
      $region35: #{net_forward_losses.18} parent=31 // pred_region
        _
      $region36: #{net_forward_losses.18} parent=31 // pred_fallthru
        _
    $region32: #{net_forward_losses.18} parent=5 // pred_fallthru
      _
    %p271 = scmp.le.s32.totalorder 2, %s9
    // Predicated region
    $region37: #{net_forward_losses.18} parent=5 // pred_check
      %p272 = pneg %p271
    $region38: #{net_forward_losses.18} parent=5 // pred_check_branch
      %274 = sbr.rel (%p272) target = $region40
    $region39: #{net_forward_losses.18} parent=5 // pred_region
      %s275 = ssub.s32 %s9, 2
      // Predicated region
      $region41: #{net_forward_losses.18} parent=39 // pred_check
        %p276 = pneg %p122
      $region42: #{net_forward_losses.18} parent=39 // pred_check_branch
        %278 = sbr.rel (%p276) target = $region44
      $region43: #{net_forward_losses.18} parent=39 // pred_region
        %p279 = scmp.lt.s32.totalorder %s20, 2
        %s280 = scalar_select %p279, %s20, 2
        %p281 = scmp.lt.s32.totalorder %s21, 1
        %s282 = scalar_select %p281, %s21, 1
        %s283 = smul.addr %s280, 2
        %s284 = sadd.s32 %s282, %s283
        %s285 = smul.addr %s284, 8
        %s286 = scalar_lea.vmem %s3, %s285
      $region44: #{net_forward_losses.18} parent=39 // pred_fallthru
        _
    $region40: #{net_forward_losses.18} parent=5 // pred_fallthru
      _
  $region6: #{net_forward_losses.18} parent=0 // loop_footer
    %s13 = sadd.s32 1, %s9
  $region7: #{net_forward_losses.18} parent=0 // loop_footer_branch
    %8 = sbr.rel target = $region3
  $region8: #{net_forward_losses.18} parent=0 // loop_exit
    _

// kernel: net_forward_losses.11
$region0: #{net_forward_losses.11}
  #allocation0 [shape = 'u32[]', space=smem, size = 0x4, offset = 0x4, fixed_abs, tag = 'smem constant byte address 0x4 - core index']
  #allocation1 [shape = 'u32[72,128]{1,0:T(1,128)}', space=vmem, size = 0x9000, scoped, tag = 'internal scratch']
  %s0 = inlined_call_operand.vmem [shape: f32[16,64], index: 0, kind: input, shape index: {}]
  %s1 = inlined_call_operand.vmem [shape: f32[16,1], index: 1, kind: output, shape index: {0}]
  %s2 = inlined_call_operand.vmem [shape: f32[16,1], index: 2, kind: output, shape index: {1}]
  %3 = xla_tuple %s1, %s2
  %s4 = sld [smem:[#allocation0]]
  $region45: #{net_forward_losses.11} parent=0
    _
  %s6 = ssub.s32 1, %s4
  %s7 = scalar_select 0, %s6, %s4
  loop: start=0, step=1, limit=4
  $region2: #{net_forward_losses.11} parent=0 // loop_pre_header
    _
  $region3: #{net_forward_losses.11} parent=0 // loop_header
    %s9 = sphi 0, %s13
    %p10 = scmp.ge.s32.totalorder %s9, 4
    %s19 = sphi 0, %s21
    %s22 = sphi 0, %s19
    %s23 = sphi 0, %s22
    %s39 = sphi 0, %s23
    %s45 = sphi 0, %s47
    %s48 = sphi 0, %s45
    %s49 = sphi 0, %s48
    %s65 = sphi 0, %s49
    %s71 = sphi 0, %s73
    %s74 = sphi 0, %s71
    %s75 = sphi 0, %s74
    %s91 = sphi 0, %s75
  $region4: #{net_forward_losses.11} parent=0 // loop_header_branch
    %12 = sbr.rel (%p10) target = $region8
  $region5: #{net_forward_losses.11} parent=0 // loop_body
    %s14 = ssub.s32 %s9, 1
    %s15 = ssub.s32 %s9, 2
    %s16 = sadd.s32 %s9, 1
    %s17 = ssub.s32 %s9, %s16
    %p18 = scmp.eq.s32.totalorder %s17, 0
    %s20 = sadd.s32 %s19, 1
    %s21 = scalar_select %p18, %s19, %s20
    %p24 = pneg %p18
    %p25 = scmp.eq.s32.totalorder %s9, 1
    %p26 = por %p24, %p25
    %p27 = scmp.ne.s32.totalorder %s19, %s22
    %p28 = scmp.eq.s32.totalorder %s9, 0
    %p29 = por %p27, %p28
    %p30 = scmp.ne.s32.totalorder %s19, %s22
    %p31 = scmp.eq.s32.totalorder %s14, 1
    %p32 = por %p30, %p31
    %p33 = scmp.ne.s32.totalorder %s22, %s23
    %p34 = scmp.eq.s32.totalorder %s14, 0
    %p35 = por %p33, %p34
    %p36 = scmp.ne.s32.totalorder %s22, %s23
    %p37 = scmp.eq.s32.totalorder %s15, 1
    %p38 = por %p36, %p37
    %p40 = scmp.ne.s32.totalorder %s23, %s39
    %p41 = scmp.eq.s32.totalorder %s15, 0
    %p42 = por %p40, %p41
    %s43 = ssub.s32 %s9, %s16
    %p44 = scmp.eq.s32.totalorder %s43, 0
    %s46 = sadd.s32 %s45, 1
    %s47 = scalar_select %p44, %s45, %s46
    %p50 = pneg %p44
    %p51 = scmp.eq.s32.totalorder %s9, 1
    %p52 = por %p50, %p51
    %p53 = scmp.ne.s32.totalorder %s45, %s48
    %p54 = scmp.eq.s32.totalorder %s9, 0
    %p55 = por %p53, %p54
    %p56 = scmp.ne.s32.totalorder %s45, %s48
    %p57 = scmp.eq.s32.totalorder %s14, 1
    %p58 = por %p56, %p57
    %p59 = scmp.ne.s32.totalorder %s48, %s49
    %p60 = scmp.eq.s32.totalorder %s14, 0
    %p61 = por %p59, %p60
    %p62 = scmp.ne.s32.totalorder %s48, %s49
    %p63 = scmp.eq.s32.totalorder %s15, 1
    %p64 = por %p62, %p63
    %p66 = scmp.ne.s32.totalorder %s49, %s65
    %p67 = scmp.eq.s32.totalorder %s15, 0
    %p68 = por %p66, %p67
    %s69 = ssub.s32 %s9, %s16
    %p70 = scmp.eq.s32.totalorder %s69, 0
    %s72 = sadd.s32 %s71, 1
    %s73 = scalar_select %p70, %s71, %s72
    %p76 = pneg %p70
    %p77 = scmp.eq.s32.totalorder %s9, 1
    %p78 = por %p76, %p77
    %p79 = scmp.ne.s32.totalorder %s71, %s74
    %p80 = scmp.eq.s32.totalorder %s9, 0
    %p81 = por %p79, %p80
    %p82 = scmp.ne.s32.totalorder %s71, %s74
    %p83 = scmp.eq.s32.totalorder %s14, 1
    %p84 = por %p82, %p83
    %p85 = scmp.ne.s32.totalorder %s74, %s75
    %p86 = scmp.eq.s32.totalorder %s14, 0
    %p87 = por %p85, %p86
    %p88 = scmp.ne.s32.totalorder %s74, %s75
    %p89 = scmp.eq.s32.totalorder %s15, 1
    %p90 = por %p88, %p89
    %p92 = scmp.ne.s32.totalorder %s75, %s91
    %p93 = scmp.eq.s32.totalorder %s15, 0
    %p94 = por %p92, %p93
    %p95 = scmp.le.s32.totalorder 1, %s9
    %p96 = scmp.lt.s32.totalorder %s9, 3
    %p97 = pnand %p95, %p96
    %p98 = pneg %p97
    // Predicated region
    $region9: #{net_forward_losses.11} parent=5 // pred_check
      _
    $region10: #{net_forward_losses.11} parent=5 // pred_check_branch
      %100 = sbr.rel (%p97) target = $region12
    $region11: #{net_forward_losses.11} parent=5 // pred_region
      %s101 = ssub.s32 %s9, 1
    $region12: #{net_forward_losses.11} parent=5 // pred_fallthru
      _
    %p102 = scmp.lt.s32.totalorder %s9, 2
    // Predicated region
    $region13: #{net_forward_losses.11} parent=5 // pred_check
      %p103 = pneg %p102
    $region14: #{net_forward_losses.11} parent=5 // pred_check_branch
      %105 = sbr.rel (%p103) target = $region16
    $region15: #{net_forward_losses.11} parent=5 // pred_region
      // Predicated region
      $region17: #{net_forward_losses.11} parent=15 // pred_check
        %p106 = pneg %p29
      $region18: #{net_forward_losses.11} parent=15 // pred_check_branch
        %108 = sbr.rel (%p106) target = $region20
      $region19: #{net_forward_losses.11} parent=15 // pred_region
        %p109 = scmp.lt.s32.totalorder %s9, 1
        %s110 = scalar_select %p109, %s9, 1
        %s111 = smul.addr %s110, 8
        %s112 = scalar_lea.vmem %s0, %s111
      $region20: #{net_forward_losses.11} parent=15 // pred_fallthru
        _
    $region16: #{net_forward_losses.11} parent=5 // pred_fallthru
      _
    %p113 = scmp.le.s32.totalorder 1, %s9
    %p114 = scmp.lt.s32.totalorder %s9, 3
    %p115 = pnand %p113, %p114
    %p116 = pneg %p115
    // Predicated region
    $region21: #{net_forward_losses.11} parent=5 // pred_check
      _
    $region22: #{net_forward_losses.11} parent=5 // pred_check_branch
      %118 = sbr.rel (%p115) target = $region24
    $region23: #{net_forward_losses.11} parent=5 // pred_region
      %s119 = ssub.s32 %s9, 1
      %p120 = scmp.lt.s32.totalorder %s14, 1
      %s121 = scalar_select %p120, %s14, 1
      %s122 = smul.addr %s121, 8
      %s123 = scalar_lea.vmem %s0, %s122
      %p124 = pneg %p35
      %p125 = pneg %p32
      %p126 = pneg %p61
      %p127 = pneg %p58
      %p128 = scmp.lt.s32.totalorder %s14, 1
      %s129 = scalar_select %p128, %s14, 1
      %s130 = smul.addr %s129, 8
      %s131 = scalar_lea.vmem %s1, %s130
      %p132 = pneg %p87
      %p133 = pneg %p84
      %p134 = scmp.lt.s32.totalorder %s14, 1
      %s135 = scalar_select %p134, %s14, 1
      %s136 = smul.addr %s135, 8
      %s137 = scalar_lea.vmem %s2, %s136
      %p138 = scmp.lt.s32.totalorder %s14, 1
      %s139 = scalar_select %p138, %s14, 1
      %s140 = smul.addr %s139, 8
      %s141 = scalar_lea.vmem %s0, %s140
      %p142 = scmp.lt.s32.totalorder %s14, 1
      %s143 = scalar_select %p142, %s14, 1
      %s144 = smul.addr %s143, 8
      %s145 = scalar_lea.vmem %s1, %s144
      %p146 = scmp.lt.s32.totalorder %s14, 1
      %s147 = scalar_select %p146, %s14, 1
      %s148 = smul.addr %s147, 8
      %s149 = scalar_lea.vmem %s2, %s148
      %v150 = vld [vmem:[%s141] sm:$0xff]
      %vm151 = vcmask 523264
      %v152 = vsel %vm151, %v150, 0.0
      %153 = vadd.xlane.f32.xlu0 %v152
      %v154 = vpop.xlane.xlu0 %153
      %v155 = vmul.f32 %v150, %v150
      %v156 = vsel %vm151, %v155, 0.0
      %157 = vadd.xlane.f32.xlu0 %v156
      %v158 = vpop.xlane.xlu0 %157
      %v159 = vmul.f32 %v154, 0.015625
      %v160 = vmul.f32 %v159, 64.0
      %v161 = vmul.f32 %v160, %v159
      %v162 = vsub.f32 %v158, %v161
      %v163 = vmax.f32 %v162, 0.0
      %v164 = vmul.f32 %v163, 0.015873017
      %v165 = vadd.f32 %v164, 1e-05
      %vm166 = vcmask 7168
      %167 = vst.msk [vmem:[%s145] sm:$0xff] %vm166, %v159
      %v168 = vrsqrt.pop %v165
      %v169 = vmul.f32 %v168, %v165
      %v170 = vmul.f32 %v169, %v168
      %v171 = vmul.f32 0.5, %v170
      %v172 = vsub.f32 1.5, %v171
      %v173 = vmul.f32 %v168, %v172
      %vm174 = vweird.f32 %v165
      %vm175 = vweird.f32 %v168
      %vm176 = vmor %vm174, %vm175
      %v177 = vsel %vm176, %v168, %v173
      %v178 = vmul.f32 %v165, %v177
      %179 = vst.msk [vmem:[%s149] sm:$0xff] %vm166, %v178
      %p180 = scmp.lt.s32.totalorder %s14, 1
      %s181 = scalar_select %p180, %s14, 1
      %s182 = smul.addr %s181, 8
      %s183 = scalar_lea.vmem %s1, %s182
      %p184 = scmp.lt.s32.totalorder %s14, 1
      %s185 = scalar_select %p184, %s14, 1
      %s186 = smul.addr %s185, 8
      %s187 = scalar_lea.vmem %s2, %s186
      // Predicated region
      $region25: #{net_forward_losses.11} parent=23 // pred_check
        %p188 = pneg %p58
      $region26: #{net_forward_losses.11} parent=23 // pred_check_branch
        %190 = sbr.rel (%p188) target = $region28
      $region27: #{net_forward_losses.11} parent=23 // pred_region
        _
      $region28: #{net_forward_losses.11} parent=23 // pred_fallthru
        _
      // Predicated region
      $region29: #{net_forward_losses.11} parent=23 // pred_check
        %p191 = pneg %p84
      $region30: #{net_forward_losses.11} parent=23 // pred_check_branch
        %193 = sbr.rel (%p191) target = $region32
      $region31: #{net_forward_losses.11} parent=23 // pred_region
        _
      $region32: #{net_forward_losses.11} parent=23 // pred_fallthru
        _
    $region24: #{net_forward_losses.11} parent=5 // pred_fallthru
      _
    %p194 = scmp.le.s32.totalorder 2, %s9
    // Predicated region
    $region33: #{net_forward_losses.11} parent=5 // pred_check
      %p195 = pneg %p194
    $region34: #{net_forward_losses.11} parent=5 // pred_check_branch
      %197 = sbr.rel (%p195) target = $region36
    $region35: #{net_forward_losses.11} parent=5 // pred_region
      %s198 = ssub.s32 %s9, 2
      // Predicated region
      $region37: #{net_forward_losses.11} parent=35 // pred_check
        %p199 = pneg %p64
      $region38: #{net_forward_losses.11} parent=35 // pred_check_branch
        %201 = sbr.rel (%p199) target = $region40
      $region39: #{net_forward_losses.11} parent=35 // pred_region
        %p202 = scmp.lt.s32.totalorder %s15, 1
        %s203 = scalar_select %p202, %s15, 1
        %s204 = smul.addr %s203, 8
        %s205 = scalar_lea.vmem %s1, %s204
      $region40: #{net_forward_losses.11} parent=35 // pred_fallthru
        _
      // Predicated region
      $region41: #{net_forward_losses.11} parent=35 // pred_check
        %p206 = pneg %p90
      $region42: #{net_forward_losses.11} parent=35 // pred_check_branch
        %208 = sbr.rel (%p206) target = $region44
      $region43: #{net_forward_losses.11} parent=35 // pred_region
        %p209 = scmp.lt.s32.totalorder %s15, 1
        %s210 = scalar_select %p209, %s15, 1
        %s211 = smul.addr %s210, 8
        %s212 = scalar_lea.vmem %s2, %s211
      $region44: #{net_forward_losses.11} parent=35 // pred_fallthru
        _
    $region36: #{net_forward_losses.11} parent=5 // pred_fallthru
      _
  $region6: #{net_forward_losses.11} parent=0 // loop_footer
    %s13 = sadd.s32 1, %s9
  $region7: #{net_forward_losses.11} parent=0 // loop_footer_branch
    %8 = sbr.rel target = $region3
  $region8: #{net_forward_losses.11} parent=0 // loop_exit
    _

// kernel: net_forward_losses.10
$region0: #{net_forward_losses.10}
  #allocation0 [shape = 'u32[]', space=smem, size = 0x4, offset = 0x4, fixed_abs, tag = 'smem constant byte address 0x4 - core index']
  #allocation1 [shape = 'u32[72,128]{1,0:T(1,128)}', space=vmem, size = 0x9000, scoped, tag = 'internal scratch']
  %s0 = inlined_call_operand.vmem [shape: f32[8,256], index: 0, kind: input, shape index: {}]
  %s1 = inlined_call_operand.vmem [shape: f32[8,1], index: 1, kind: output, shape index: {0}]
  %s2 = inlined_call_operand.vmem [shape: f32[8,1], index: 2, kind: output, shape index: {1}]
  %3 = xla_tuple %s1, %s2
  %s4 = sld [smem:[#allocation0]]
  $region22: #{net_forward_losses.10} parent=0
    _
  %s6 = ssub.s32 1, %s4
  %s7 = scalar_select 0, %s6, %s4
  // Predicated region
  $region2: #{net_forward_losses.10} parent=0 // pred_check
    _
  $region3: #{net_forward_losses.10} parent=0 // pred_check_branch
    %9 = sbr.rel (0) target = $region5
  $region4: #{net_forward_losses.10} parent=0 // pred_region
    _
  $region5: #{net_forward_losses.10} parent=0 // pred_fallthru
    _
  %v10 = vld [vmem:[%s0] sm:$0xff]
  %v11 = vld [vmem:[%s0 + $0x8] sm:$0xff]
  %v12 = vadd.f32 %v10, %v11
  %13 = vadd.xlane.f32.xlu0 %v12
  %v14 = vpop.xlane.xlu0 %13
  %v15 = vmul.f32 %v10, %v10
  %v16 = vmul.f32 %v11, %v11
  %v17 = vadd.f32 %v15, %v16
  %18 = vadd.xlane.f32.xlu0 %v17
  %v19 = vpop.xlane.xlu0 %18
  %v20 = vmul.f32 %v14, 0.00390625
  %v21 = vmul.f32 %v20, 256.0
  %v22 = vmul.f32 %v21, %v20
  %v23 = vsub.f32 %v19, %v22
  %v24 = vmax.f32 %v23, 0.0
  %v25 = vmul.f32 %v24, 0.003921569
  %v26 = vadd.f32 %v25, 1e-05
  %vm27 = vcmask 7168
  %28 = vst.msk [vmem:[%s1] sm:$0xff] %vm27, %v20
  %v29 = vrsqrt.pop %v26
  %v30 = vmul.f32 %v29, %v26
  %v31 = vmul.f32 %v30, %v29
  %v32 = vmul.f32 0.5, %v31
  %v33 = vsub.f32 1.5, %v32
  %v34 = vmul.f32 %v29, %v33
  %vm35 = vweird.f32 %v26
  %vm36 = vweird.f32 %v29
  %vm37 = vmor %vm35, %vm36
  %v38 = vsel %vm37, %v29, %v34
  %v39 = vmul.f32 %v26, %v38
  %40 = vst.msk [vmem:[%s2] sm:$0xff] %vm27, %v39
  // Predicated region
  $region6: #{net_forward_losses.10} parent=0 // pred_check
    _
  $region7: #{net_forward_losses.10} parent=0 // pred_check_branch
    %42 = sbr.rel (0) target = $region9
  $region8: #{net_forward_losses.10} parent=0 // pred_region
    _
  $region9: #{net_forward_losses.10} parent=0 // pred_fallthru
    _
  // Predicated region
  $region10: #{net_forward_losses.10} parent=0 // pred_check
    _
  $region11: #{net_forward_losses.10} parent=0 // pred_check_branch
    %44 = sbr.rel (0) target = $region13
  $region12: #{net_forward_losses.10} parent=0 // pred_region
    _
  $region13: #{net_forward_losses.10} parent=0 // pred_fallthru
    _
  // Predicated region
  $region14: #{net_forward_losses.10} parent=0 // pred_check
    _
  $region15: #{net_forward_losses.10} parent=0 // pred_check_branch
    %46 = sbr.rel (0) target = $region17
  $region16: #{net_forward_losses.10} parent=0 // pred_region
    _
  $region17: #{net_forward_losses.10} parent=0 // pred_fallthru
    _
  // Predicated region
  $region18: #{net_forward_losses.10} parent=0 // pred_check
    _
  $region19: #{net_forward_losses.10} parent=0 // pred_check_branch
    %48 = sbr.rel (0) target = $region21
  $region20: #{net_forward_losses.10} parent=0 // pred_region
    _
  $region21: #{net_forward_losses.10} parent=0 // pred_fallthru
    _

// kernel: net_forward_losses.12
$region0: #{net_forward_losses.12}
  #allocation0 [shape = 'u32[]', space=smem, size = 0x4, offset = 0x4, fixed_abs, tag = 'smem constant byte address 0x4 - core index']
  #allocation1 [shape = 'u32[72,128]{1,0:T(1,128)}', space=vmem, size = 0x9000, scoped, tag = 'internal scratch']
  %s0 = inlined_call_operand.vmem [shape: f32[32,64], index: 0, kind: input, shape index: {}]
  %s1 = inlined_call_operand.vmem [shape: f32[32,1], index: 1, kind: output, shape index: {0}]
  %s2 = inlined_call_operand.vmem [shape: f32[32,1], index: 2, kind: output, shape index: {1}]
  %3 = xla_tuple %s1, %s2
  %s4 = sld [smem:[#allocation0]]
  $region45: #{net_forward_losses.12} parent=0
    _
  %s6 = ssub.s32 1, %s4
  %s7 = scalar_select 0, %s6, %s4
  loop: start=0, step=1, limit=4
  $region2: #{net_forward_losses.12} parent=0 // loop_pre_header
    _
  $region3: #{net_forward_losses.12} parent=0 // loop_header
    %s9 = sphi 0, %s13
    %p10 = scmp.ge.s32.totalorder %s9, 4
    %s19 = sphi 0, %s21
    %s22 = sphi 0, %s19
    %s23 = sphi 0, %s22
    %s39 = sphi 0, %s23
    %s45 = sphi 0, %s47
    %s48 = sphi 0, %s45
    %s49 = sphi 0, %s48
    %s65 = sphi 0, %s49
    %s71 = sphi 0, %s73
    %s74 = sphi 0, %s71
    %s75 = sphi 0, %s74
    %s91 = sphi 0, %s75
  $region4: #{net_forward_losses.12} parent=0 // loop_header_branch
    %12 = sbr.rel (%p10) target = $region8
  $region5: #{net_forward_losses.12} parent=0 // loop_body
    %s14 = ssub.s32 %s9, 1
    %s15 = ssub.s32 %s9, 2
    %s16 = sadd.s32 %s9, 1
    %s17 = ssub.s32 %s9, %s16
    %p18 = scmp.eq.s32.totalorder %s17, 0
    %s20 = sadd.s32 %s19, 1
    %s21 = scalar_select %p18, %s19, %s20
    %p24 = pneg %p18
    %p25 = scmp.eq.s32.totalorder %s9, 1
    %p26 = por %p24, %p25
    %p27 = scmp.ne.s32.totalorder %s19, %s22
    %p28 = scmp.eq.s32.totalorder %s9, 0
    %p29 = por %p27, %p28
    %p30 = scmp.ne.s32.totalorder %s19, %s22
    %p31 = scmp.eq.s32.totalorder %s14, 1
    %p32 = por %p30, %p31
    %p33 = scmp.ne.s32.totalorder %s22, %s23
    %p34 = scmp.eq.s32.totalorder %s14, 0
    %p35 = por %p33, %p34
    %p36 = scmp.ne.s32.totalorder %s22, %s23
    %p37 = scmp.eq.s32.totalorder %s15, 1
    %p38 = por %p36, %p37
    %p40 = scmp.ne.s32.totalorder %s23, %s39
    %p41 = scmp.eq.s32.totalorder %s15, 0
    %p42 = por %p40, %p41
    %s43 = ssub.s32 %s9, %s16
    %p44 = scmp.eq.s32.totalorder %s43, 0
    %s46 = sadd.s32 %s45, 1
    %s47 = scalar_select %p44, %s45, %s46
    %p50 = pneg %p44
    %p51 = scmp.eq.s32.totalorder %s9, 1
    %p52 = por %p50, %p51
    %p53 = scmp.ne.s32.totalorder %s45, %s48
    %p54 = scmp.eq.s32.totalorder %s9, 0
    %p55 = por %p53, %p54
    %p56 = scmp.ne.s32.totalorder %s45, %s48
    %p57 = scmp.eq.s32.totalorder %s14, 1
    %p58 = por %p56, %p57
    %p59 = scmp.ne.s32.totalorder %s48, %s49
    %p60 = scmp.eq.s32.totalorder %s14, 0
    %p61 = por %p59, %p60
    %p62 = scmp.ne.s32.totalorder %s48, %s49
    %p63 = scmp.eq.s32.totalorder %s15, 1
    %p64 = por %p62, %p63
    %p66 = scmp.ne.s32.totalorder %s49, %s65
    %p67 = scmp.eq.s32.totalorder %s15, 0
    %p68 = por %p66, %p67
    %s69 = ssub.s32 %s9, %s16
    %p70 = scmp.eq.s32.totalorder %s69, 0
    %s72 = sadd.s32 %s71, 1
    %s73 = scalar_select %p70, %s71, %s72
    %p76 = pneg %p70
    %p77 = scmp.eq.s32.totalorder %s9, 1
    %p78 = por %p76, %p77
    %p79 = scmp.ne.s32.totalorder %s71, %s74
    %p80 = scmp.eq.s32.totalorder %s9, 0
    %p81 = por %p79, %p80
    %p82 = scmp.ne.s32.totalorder %s71, %s74
    %p83 = scmp.eq.s32.totalorder %s14, 1
    %p84 = por %p82, %p83
    %p85 = scmp.ne.s32.totalorder %s74, %s75
    %p86 = scmp.eq.s32.totalorder %s14, 0
    %p87 = por %p85, %p86
    %p88 = scmp.ne.s32.totalorder %s74, %s75
    %p89 = scmp.eq.s32.totalorder %s15, 1
    %p90 = por %p88, %p89
    %p92 = scmp.ne.s32.totalorder %s75, %s91
    %p93 = scmp.eq.s32.totalorder %s15, 0
    %p94 = por %p92, %p93
    %p95 = scmp.le.s32.totalorder 1, %s9
    %p96 = scmp.lt.s32.totalorder %s9, 3
    %p97 = pnand %p95, %p96
    %p98 = pneg %p97
    // Predicated region
    $region9: #{net_forward_losses.12} parent=5 // pred_check
      _
    $region10: #{net_forward_losses.12} parent=5 // pred_check_branch
      %100 = sbr.rel (%p97) target = $region12
    $region11: #{net_forward_losses.12} parent=5 // pred_region
      %s101 = ssub.s32 %s9, 1
    $region12: #{net_forward_losses.12} parent=5 // pred_fallthru
      _
    %p102 = scmp.lt.s32.totalorder %s9, 2
    // Predicated region
    $region13: #{net_forward_losses.12} parent=5 // pred_check
      %p103 = pneg %p102
    $region14: #{net_forward_losses.12} parent=5 // pred_check_branch
      %105 = sbr.rel (%p103) target = $region16
    $region15: #{net_forward_losses.12} parent=5 // pred_region
      // Predicated region
      $region17: #{net_forward_losses.12} parent=15 // pred_check
        %p106 = pneg %p29
      $region18: #{net_forward_losses.12} parent=15 // pred_check_branch
        %108 = sbr.rel (%p106) target = $region20
      $region19: #{net_forward_losses.12} parent=15 // pred_region
        %s109 = smul.u32 2, %s9
        %p110 = scmp.lt.s32.totalorder %s109, 3
        %s111 = scalar_select %p110, %s109, 3
        %s112 = smul.addr %s111, 8
        %s113 = scalar_lea.vmem %s0, %s112
        %s114 = smul.u32 2, %s9
      $region20: #{net_forward_losses.12} parent=15 // pred_fallthru
        _
    $region16: #{net_forward_losses.12} parent=5 // pred_fallthru
      _
    %p115 = scmp.le.s32.totalorder 1, %s9
    %p116 = scmp.lt.s32.totalorder %s9, 3
    %p117 = pnand %p115, %p116
    %p118 = pneg %p117
    // Predicated region
    $region21: #{net_forward_losses.12} parent=5 // pred_check
      _
    $region22: #{net_forward_losses.12} parent=5 // pred_check_branch
      %120 = sbr.rel (%p117) target = $region24
    $region23: #{net_forward_losses.12} parent=5 // pred_region
      %s121 = ssub.s32 %s9, 1
      %s122 = smul.u32 2, %s14
      %p123 = scmp.lt.s32.totalorder %s122, 3
      %s124 = scalar_select %p123, %s122, 3
      %s125 = smul.addr %s124, 8
      %s126 = scalar_lea.vmem %s0, %s125
      %p127 = pneg %p35
      %p128 = pneg %p32
      %p129 = pneg %p61
      %p130 = pneg %p58
      %s131 = smul.u32 2, %s14
      %p132 = scmp.lt.s32.totalorder %s131, 3
      %s133 = scalar_select %p132, %s131, 3
      %s134 = smul.addr %s133, 8
      %s135 = scalar_lea.vmem %s1, %s134
      %p136 = pneg %p87
      %p137 = pneg %p84
      %s138 = smul.u32 2, %s14
      %p139 = scmp.lt.s32.totalorder %s138, 3
      %s140 = scalar_select %p139, %s138, 3
      %s141 = smul.addr %s140, 8
      %s142 = scalar_lea.vmem %s2, %s141
      %s143 = smul.u32 2, %s14
      %p144 = scmp.lt.s32.totalorder %s143, 3
      %s145 = scalar_select %p144, %s143, 3
      %s146 = smul.addr %s145, 8
      %s147 = scalar_lea.vmem %s0, %s146
      %s148 = smul.u32 2, %s14
      %s149 = smul.u32 2, %s14
      %p150 = scmp.lt.s32.totalorder %s149, 3
      %s151 = scalar_select %p150, %s149, 3
      %s152 = smul.addr %s151, 8
      %s153 = scalar_lea.vmem %s1, %s152
      %s154 = smul.u32 2, %s14
      %s155 = smul.u32 2, %s14
      %p156 = scmp.lt.s32.totalorder %s155, 3
      %s157 = scalar_select %p156, %s155, 3
      %s158 = smul.addr %s157, 8
      %s159 = scalar_lea.vmem %s2, %s158
      %s160 = smul.u32 2, %s14
      %v161 = vld [vmem:[%s147] sm:$0xff]
      %v162 = vld [vmem:[%s147 + $0x8] sm:$0xff]
      %vm163 = vcmask 523264
      %v164 = vsel %vm163, %v161, 0.0
      %165 = vadd.xlane.f32.xlu0 %v164
      %v166 = vpop.xlane.xlu0 %165
      %v167 = vsel %vm163, %v162, 0.0
      %168 = vadd.xlane.f32.xlu0 %v167
      %v169 = vpop.xlane.xlu0 %168
      %v170 = vmul.f32 %v161, %v161
      %v171 = vmul.f32 %v162, %v162
      %v172 = vsel %vm163, %v170, 0.0
      %173 = vadd.xlane.f32.xlu0 %v172
      %v174 = vpop.xlane.xlu0 %173
      %v175 = vsel %vm163, %v171, 0.0
      %176 = vadd.xlane.f32.xlu0 %v175
      %v177 = vpop.xlane.xlu0 %176
      %v178 = vmul.f32 %v166, 0.015625
      %v179 = vmul.f32 %v169, 0.015625
      %v180 = vmul.f32 %v178, 64.0
      %v181 = vmul.f32 %v179, 64.0
      %v182 = vmul.f32 %v180, %v178
      %v183 = vmul.f32 %v181, %v179
      %v184 = vsub.f32 %v174, %v182
      %v185 = vsub.f32 %v177, %v183
      %v186 = vmax.f32 %v184, 0.0
      %v187 = vmax.f32 %v185, 0.0
      %v188 = vmul.f32 %v186, 0.015873017
      %v189 = vmul.f32 %v187, 0.015873017
      %v190 = vadd.f32 %v188, 1e-05
      %v191 = vadd.f32 %v189, 1e-05
      %vm192 = vcmask 7168
      %193 = vst.msk [vmem:[%s153] sm:$0xff] %vm192, %v178
      %194 = vst.msk [vmem:[%s153 + $0x8] sm:$0xff] %vm192, %v179
      %v195 = vrsqrt.pop %v190
      %v196 = vmul.f32 %v195, %v190
      %v197 = vmul.f32 %v196, %v195
      %v198 = vmul.f32 0.5, %v197
      %v199 = vsub.f32 1.5, %v198
      %v200 = vmul.f32 %v195, %v199
      %vm201 = vweird.f32 %v190
      %vm202 = vweird.f32 %v195
      %vm203 = vmor %vm201, %vm202
      %v204 = vsel %vm203, %v195, %v200
      %v205 = vrsqrt.pop %v191
      %v206 = vmul.f32 %v205, %v191
      %v207 = vmul.f32 %v206, %v205
      %v208 = vmul.f32 0.5, %v207
      %v209 = vsub.f32 1.5, %v208
      %v210 = vmul.f32 %v205, %v209
      %vm211 = vweird.f32 %v191
      %vm212 = vweird.f32 %v205
      %vm213 = vmor %vm211, %vm212
      %v214 = vsel %vm213, %v205, %v210
      %v215 = vmul.f32 %v190, %v204
      %v216 = vmul.f32 %v191, %v214
      %217 = vst.msk [vmem:[%s159] sm:$0xff] %vm192, %v215
      %218 = vst.msk [vmem:[%s159 + $0x8] sm:$0xff] %vm192, %v216
      %s219 = smul.u32 2, %s14
      %p220 = scmp.lt.s32.totalorder %s219, 3
      %s221 = scalar_select %p220, %s219, 3
      %s222 = smul.addr %s221, 8
      %s223 = scalar_lea.vmem %s1, %s222
      %s224 = smul.u32 2, %s14
      %p225 = scmp.lt.s32.totalorder %s224, 3
      %s226 = scalar_select %p225, %s224, 3
      %s227 = smul.addr %s226, 8
      %s228 = scalar_lea.vmem %s2, %s227
      // Predicated region
      $region25: #{net_forward_losses.12} parent=23 // pred_check
        %p229 = pneg %p58
      $region26: #{net_forward_losses.12} parent=23 // pred_check_branch
        %231 = sbr.rel (%p229) target = $region28
      $region27: #{net_forward_losses.12} parent=23 // pred_region
        %s232 = smul.u32 2, %s14
      $region28: #{net_forward_losses.12} parent=23 // pred_fallthru
        _
      // Predicated region
      $region29: #{net_forward_losses.12} parent=23 // pred_check
        %p233 = pneg %p84
      $region30: #{net_forward_losses.12} parent=23 // pred_check_branch
        %235 = sbr.rel (%p233) target = $region32
      $region31: #{net_forward_losses.12} parent=23 // pred_region
        %s236 = smul.u32 2, %s14
      $region32: #{net_forward_losses.12} parent=23 // pred_fallthru
        _
    $region24: #{net_forward_losses.12} parent=5 // pred_fallthru
      _
    %p237 = scmp.le.s32.totalorder 2, %s9
    // Predicated region
    $region33: #{net_forward_losses.12} parent=5 // pred_check
      %p238 = pneg %p237
    $region34: #{net_forward_losses.12} parent=5 // pred_check_branch
      %240 = sbr.rel (%p238) target = $region36
    $region35: #{net_forward_losses.12} parent=5 // pred_region
      %s241 = ssub.s32 %s9, 2
      // Predicated region
      $region37: #{net_forward_losses.12} parent=35 // pred_check
        %p242 = pneg %p64
      $region38: #{net_forward_losses.12} parent=35 // pred_check_branch
        %244 = sbr.rel (%p242) target = $region40
      $region39: #{net_forward_losses.12} parent=35 // pred_region
        %s245 = smul.u32 2, %s15
        %p246 = scmp.lt.s32.totalorder %s245, 3
        %s247 = scalar_select %p246, %s245, 3
        %s248 = smul.addr %s247, 8
        %s249 = scalar_lea.vmem %s1, %s248
      $region40: #{net_forward_losses.12} parent=35 // pred_fallthru
        _
      // Predicated region
      $region41: #{net_forward_losses.12} parent=35 // pred_check
        %p250 = pneg %p90
      $region42: #{net_forward_losses.12} parent=35 // pred_check_branch
        %252 = sbr.rel (%p250) target = $region44
      $region43: #{net_forward_losses.12} parent=35 // pred_region
        %s253 = smul.u32 2, %s15
        %p254 = scmp.lt.s32.totalorder %s253, 3
        %s255 = scalar_select %p254, %s253, 3
        %s256 = smul.addr %s255, 8
        %s257 = scalar_lea.vmem %s2, %s256
      $region44: #{net_forward_losses.12} parent=35 // pred_fallthru
        _
    $region36: #{net_forward_losses.12} parent=5 // pred_fallthru
      _
  $region6: #{net_forward_losses.12} parent=0 // loop_footer
    %s13 = sadd.s32 1, %s9
  $region7: #{net_forward_losses.12} parent=0 // loop_footer_branch
    %8 = sbr.rel target = $region3
  $region8: #{net_forward_losses.12} parent=0 // loop_exit
    _

// kernel: net_forward_losses.19
$region0: #{net_forward_losses.19}
  #allocation0 [shape = 'u32[]', space=smem, size = 0x4, offset = 0x4, fixed_abs, tag = 'smem constant byte address 0x4 - core index']
  #allocation1 [shape = 'u32[72,128]{1,0:T(1,128)}', space=vmem, size = 0x9000, scoped, tag = 'internal scratch']
  %s0 = inlined_call_operand.vmem [shape: f32[3,32,64], index: 0, kind: input, shape index: {}]
  %s1 = inlined_call_operand.vmem [shape: f32[32,1], index: 1, kind: input, shape index: {}]
  %s2 = inlined_call_operand.vmem [shape: f32[32,1], index: 2, kind: input, shape index: {}]
  %s3 = inlined_call_operand.vmem [shape: f32[3,2,8,128], index: 3, kind: output, shape index: {}]
  %s4 = sld [smem:[#allocation0]]
  $region45: #{net_forward_losses.19} parent=0
    _
  %s6 = ssub.s32 1, %s4
  %s7 = scalar_select 0, %s6, %s4
  loop: start=0, step=1, limit=8
  $region2: #{net_forward_losses.19} parent=0 // loop_pre_header
    _
  $region3: #{net_forward_losses.19} parent=0 // loop_header
    %s9 = sphi 0, %s13
    %p10 = scmp.ge.s32.totalorder %s9, 8
    %s16 = sphi 0, %s28
    %s17 = sphi 0, %s24
    %s18 = sphi 0, %s16
    %s19 = sphi 0, %s17
    %s20 = sphi 0, %s18
    %s21 = sphi 0, %s19
    %s33 = sphi 0, %s35
    %s36 = sphi 0, %s33
    %s37 = sphi 0, %s36
    %s53 = sphi 0, %s37
    %s57 = sphi 0, %s57
    %s59 = sphi 0, %s57
    %s60 = sphi 0, %s59
    %s74 = sphi 0, %s60
    %s78 = sphi 0, %s78
    %s80 = sphi 0, %s78
    %s81 = sphi 0, %s80
    %s95 = sphi 0, %s81
    %s103 = sphi 0, %s105
    %s106 = sphi 0, %s103
    %s107 = sphi 0, %s106
    %s123 = sphi 0, %s107
  $region4: #{net_forward_losses.19} parent=0 // loop_header_branch
    %12 = sbr.rel (%p10) target = $region8
  $region5: #{net_forward_losses.19} parent=0 // loop_body
    %s14 = ssub.s32 %s9, 1
    %s15 = ssub.s32 %s9, 2
    %s22 = sadd.s32 1, %s17
    %p23 = scmp.ge.s32.totalorder %s22, 2
    %s24 = scalar_select %p23, 0, %s22
    %s25 = sadd.s32 1, %s16
    %s26 = scalar_select %p23, %s25, %s16
    %p27 = scmp.ge.s32.totalorder %s26, 3
    %s28 = scalar_select %p27, 0, %s26
    %s29 = ssub.s32 %s16, %s28
    %s30 = ssub.s32 %s17, %s24
    %s31 = sor.u32 %s29, %s30
    %p32 = scmp.eq.s32.totalorder %s31, 0
    %s34 = sadd.s32 %s33, 1
    %s35 = scalar_select %p32, %s33, %s34
    %p38 = pneg %p32
    %p39 = scmp.eq.s32.totalorder %s9, 5
    %p40 = por %p38, %p39
    %p41 = scmp.ne.s32.totalorder %s33, %s36
    %p42 = scmp.eq.s32.totalorder %s9, 0
    %p43 = por %p41, %p42
    %p44 = scmp.ne.s32.totalorder %s33, %s36
    %p45 = scmp.eq.s32.totalorder %s14, 5
    %p46 = por %p44, %p45
    %p47 = scmp.ne.s32.totalorder %s36, %s37
    %p48 = scmp.eq.s32.totalorder %s14, 0
    %p49 = por %p47, %p48
    %p50 = scmp.ne.s32.totalorder %s36, %s37
    %p51 = scmp.eq.s32.totalorder %s15, 5
    %p52 = por %p50, %p51
    %p54 = scmp.ne.s32.totalorder %s37, %s53
    %p55 = scmp.eq.s32.totalorder %s15, 0
    %p56 = por %p54, %p55
    %s58 = sadd.s32 %s57, 1
    %p61 = scmp.eq.s32.totalorder %s9, 5
    %p62 = scmp.ne.s32.totalorder %s57, %s59
    %p63 = scmp.eq.s32.totalorder %s9, 0
    %p64 = por %p62, %p63
    %p65 = scmp.ne.s32.totalorder %s57, %s59
    %p66 = scmp.eq.s32.totalorder %s14, 5
    %p67 = por %p65, %p66
    %p68 = scmp.ne.s32.totalorder %s59, %s60
    %p69 = scmp.eq.s32.totalorder %s14, 0
    %p70 = por %p68, %p69
    %p71 = scmp.ne.s32.totalorder %s59, %s60
    %p72 = scmp.eq.s32.totalorder %s15, 5
    %p73 = por %p71, %p72
    %p75 = scmp.ne.s32.totalorder %s60, %s74
    %p76 = scmp.eq.s32.totalorder %s15, 0
    %p77 = por %p75, %p76
    %s79 = sadd.s32 %s78, 1
    %p82 = scmp.eq.s32.totalorder %s9, 5
    %p83 = scmp.ne.s32.totalorder %s78, %s80
    %p84 = scmp.eq.s32.totalorder %s9, 0
    %p85 = por %p83, %p84
    %p86 = scmp.ne.s32.totalorder %s78, %s80
    %p87 = scmp.eq.s32.totalorder %s14, 5
    %p88 = por %p86, %p87
    %p89 = scmp.ne.s32.totalorder %s80, %s81
    %p90 = scmp.eq.s32.totalorder %s14, 0
    %p91 = por %p89, %p90
    %p92 = scmp.ne.s32.totalorder %s80, %s81
    %p93 = scmp.eq.s32.totalorder %s15, 5
    %p94 = por %p92, %p93
    %p96 = scmp.ne.s32.totalorder %s81, %s95
    %p97 = scmp.eq.s32.totalorder %s15, 0
    %p98 = por %p96, %p97
    %s99 = ssub.s32 %s16, %s28
    %s100 = ssub.s32 %s17, %s24
    %s101 = sor.u32 %s99, %s100
    %p102 = scmp.eq.s32.totalorder %s101, 0
    %s104 = sadd.s32 %s103, 1
    %s105 = scalar_select %p102, %s103, %s104
    %p108 = pneg %p102
    %p109 = scmp.eq.s32.totalorder %s9, 5
    %p110 = por %p108, %p109
    %p111 = scmp.ne.s32.totalorder %s103, %s106
    %p112 = scmp.eq.s32.totalorder %s9, 0
    %p113 = por %p111, %p112
    %p114 = scmp.ne.s32.totalorder %s103, %s106
    %p115 = scmp.eq.s32.totalorder %s14, 5
    %p116 = por %p114, %p115
    %p117 = scmp.ne.s32.totalorder %s106, %s107
    %p118 = scmp.eq.s32.totalorder %s14, 0
    %p119 = por %p117, %p118
    %p120 = scmp.ne.s32.totalorder %s106, %s107
    %p121 = scmp.eq.s32.totalorder %s15, 5
    %p122 = por %p120, %p121
    %p124 = scmp.ne.s32.totalorder %s107, %s123
    %p125 = scmp.eq.s32.totalorder %s15, 0
    %p126 = por %p124, %p125
    %p127 = scmp.le.s32.totalorder 1, %s9
    %p128 = scmp.lt.s32.totalorder %s9, 7
    %p129 = pnand %p127, %p128
    %p130 = pneg %p129
    // Predicated region
    $region9: #{net_forward_losses.19} parent=5 // pred_check
      _
    $region10: #{net_forward_losses.19} parent=5 // pred_check_branch
      %132 = sbr.rel (%p129) target = $region12
    $region11: #{net_forward_losses.19} parent=5 // pred_region
      %s133 = ssub.s32 %s9, 1
      // Predicated region
      $region13: #{net_forward_losses.19} parent=11 // pred_check
        %p134 = pneg %p70
      $region14: #{net_forward_losses.19} parent=11 // pred_check_branch
        %136 = sbr.rel (%p134) target = $region16
      $region15: #{net_forward_losses.19} parent=11 // pred_region
        _
      $region16: #{net_forward_losses.19} parent=11 // pred_fallthru
        _
      // Predicated region
      $region17: #{net_forward_losses.19} parent=11 // pred_check
        %p137 = pneg %p91
      $region18: #{net_forward_losses.19} parent=11 // pred_check_branch
        %139 = sbr.rel (%p137) target = $region20
      $region19: #{net_forward_losses.19} parent=11 // pred_region
        _
      $region20: #{net_forward_losses.19} parent=11 // pred_fallthru
        _
    $region12: #{net_forward_losses.19} parent=5 // pred_fallthru
      _
    %p140 = scmp.lt.s32.totalorder %s9, 6
    // Predicated region
    $region21: #{net_forward_losses.19} parent=5 // pred_check
      %p141 = pneg %p140
    $region22: #{net_forward_losses.19} parent=5 // pred_check_branch
      %143 = sbr.rel (%p141) target = $region24
    $region23: #{net_forward_losses.19} parent=5 // pred_region
      // Predicated region
      $region25: #{net_forward_losses.19} parent=23 // pred_check
        %p144 = pneg %p43
      $region26: #{net_forward_losses.19} parent=23 // pred_check_branch
        %146 = sbr.rel (%p144) target = $region28
      $region27: #{net_forward_losses.19} parent=23 // pred_region
        %s147 = smul.u32 2, %s17
        %p148 = scmp.lt.s32.totalorder %s16, 2
        %s149 = scalar_select %p148, %s16, 2
        %p150 = scmp.lt.s32.totalorder %s147, 3
        %s151 = scalar_select %p150, %s147, 3
        %s152 = smul.addr %s149, 4
        %s153 = sadd.s32 %s151, %s152
        %s154 = smul.addr %s153, 8
        %s155 = scalar_lea.vmem %s0, %s154
        %s156 = smul.u32 2, %s17
      $region28: #{net_forward_losses.19} parent=23 // pred_fallthru
        _
    $region24: #{net_forward_losses.19} parent=5 // pred_fallthru
      _
    %p157 = scmp.le.s32.totalorder 1, %s9
    %p158 = scmp.lt.s32.totalorder %s9, 7
    %p159 = pnand %p157, %p158
    %p160 = pneg %p159
    // Predicated region
    $region29: #{net_forward_losses.19} parent=5 // pred_check
      _
    $region30: #{net_forward_losses.19} parent=5 // pred_check_branch
      %162 = sbr.rel (%p159) target = $region32
    $region31: #{net_forward_losses.19} parent=5 // pred_region
      %s163 = ssub.s32 %s9, 1
      %s164 = smul.u32 2, %s19
      %p165 = scmp.lt.s32.totalorder %s18, 2
      %s166 = scalar_select %p165, %s18, 2
      %p167 = scmp.lt.s32.totalorder %s164, 3
      %s168 = scalar_select %p167, %s164, 3
      %s169 = smul.addr %s166, 4
      %s170 = sadd.s32 %s168, %s169
      %s171 = smul.addr %s170, 8
      %s172 = scalar_lea.vmem %s0, %s171
      %p173 = pneg %p49
      %p174 = pneg %p46
      %p175 = pneg %p70
      %p176 = pneg %p67
      %p177 = pneg %p91
      %p178 = pneg %p88
      %p179 = pneg %p119
      %p180 = pneg %p116
      %p181 = scmp.lt.s32.totalorder %s18, 2
      %s182 = scalar_select %p181, %s18, 2
      %p183 = scmp.lt.s32.totalorder %s19, 1
      %s184 = scalar_select %p183, %s19, 1
      %s185 = smul.addr %s182, 2
      %s186 = sadd.s32 %s184, %s185
      %s187 = smul.addr %s186, 8
      %s188 = scalar_lea.vmem %s3, %s187
      %s189 = smul.u32 2, %s19
      %p190 = scmp.lt.s32.totalorder %s18, 2
      %s191 = scalar_select %p190, %s18, 2
      %p192 = scmp.lt.s32.totalorder %s189, 3
      %s193 = scalar_select %p192, %s189, 3
      %s194 = smul.addr %s191, 4
      %s195 = sadd.s32 %s193, %s194
      %s196 = smul.addr %s195, 8
      %s197 = scalar_lea.vmem %s0, %s196
      %s198 = smul.u32 2, %s19
      %p199 = scmp.lt.s32.totalorder %s18, 2
      %s200 = scalar_select %p199, %s18, 2
      %p201 = scmp.lt.s32.totalorder %s19, 1
      %s202 = scalar_select %p201, %s19, 1
      %s203 = smul.addr %s200, 2
      %s204 = sadd.s32 %s202, %s203
      %s205 = smul.addr %s204, 8
      %s206 = scalar_lea.vmem %s3, %s205
      %s207 = smul.u32 %s19, 16
      %v208 = vld [vmem:[%s197] sm:$0xff]
      %v209 = vld [vmem:[%s197 + $0x8] sm:$0xff]
      %vm210 = vcmask 523264
      %v211 = vsel %vm210, %v208, 0.0
      %212 = vadd.xlane.f32.xlu0 %v211
      %v213 = vpop.xlane.xlu0 %212
      %v214 = vsel %vm210, %v209, 0.0
      %215 = vadd.xlane.f32.xlu0 %v214
      %v216 = vpop.xlane.xlu0 %215
      %v217 = vmul.f32 %v208, %v208
      %v218 = vmul.f32 %v209, %v209
      %v219 = vsel %vm210, %v217, 0.0
      %220 = vadd.xlane.f32.xlu0 %v219
      %v221 = vpop.xlane.xlu0 %220
      %v222 = vsel %vm210, %v218, 0.0
      %223 = vadd.xlane.f32.xlu0 %v222
      %v224 = vpop.xlane.xlu0 %223
      %v225 = vmul.f32 %v213, 0.015625
      %v226 = vmul.f32 %v216, 0.015625
      %v227 = vmul.f32 %v225, 64.0
      %v228 = vmul.f32 %v226, 64.0
      %v229 = vmul.f32 %v227, %v225
      %v230 = vmul.f32 %v228, %v226
      %v231 = vsub.f32 %v221, %v229
      %v232 = vsub.f32 %v224, %v230
      %v233 = vmax.f32 %v231, 0.0
      %v234 = vmax.f32 %v232, 0.0
      %v235 = vmul.f32 %v233, 0.015873017
      %v236 = vmul.f32 %v234, 0.015873017
      %v237 = vadd.f32 %v235, 1e-05
      %v238 = vadd.f32 %v236, 1e-05
      %v239 = vrsqrt.pop %v237
      %v240 = vmul.f32 %v239, %v237
      %v241 = vmul.f32 %v240, %v239
      %v242 = vmul.f32 0.5, %v241
      %v243 = vsub.f32 1.5, %v242
      %v244 = vmul.f32 %v239, %v243
      %vm245 = vweird.f32 %v237
      %vm246 = vweird.f32 %v239
      %vm247 = vmor %vm245, %vm246
      %v248 = vsel %vm247, %v239, %v244
      %v249 = vrsqrt.pop %v238
      %v250 = vmul.f32 %v249, %v238
      %v251 = vmul.f32 %v250, %v249
      %v252 = vmul.f32 0.5, %v251
      %v253 = vsub.f32 1.5, %v252
      %v254 = vmul.f32 %v249, %v253
      %vm255 = vweird.f32 %v238
      %vm256 = vweird.f32 %v249
      %vm257 = vmor %vm255, %vm256
      %v258 = vsel %vm257, %v249, %v254
      %v259 = vmul.f32 %v237, %v248
      %v260 = vmul.f32 %v238, %v258
      %s261 = scalar_lea.vmem %s1, %s207
      %v262 = vld [vmem:[%s261] sm:$0xff]
      %v263 = vld [vmem:[%s261 + $0x8] sm:$0xff]
      %v264 = vsub.f32 %v225, %v262
      %v265 = vsub.f32 %v226, %v263
      %s266 = scalar_lea.vmem %s2, %s207
      %v267 = vld [vmem:[%s266] sm:$0xff]
      %v268 = vld [vmem:[%s266 + $0x8] sm:$0xff]
      %v269 = vsub.f32 %v259, %v267
      %v270 = vsub.f32 %v260, %v268
      %v271 = vmul.f32 %v264, %v264
      %v272 = vmul.f32 %v265, %v265
      %v273 = vmul.f32 %v269, %v269
      %v274 = vmul.f32 %v270, %v270
      %v275 = vadd.f32 %v271, %v273
      %v276 = vadd.f32 %v272, %v274
      %v277 = vlaneseq
      %v278 = vshrl.u32 %v277, 7
      %v279 = vlaneseq
      %v280 = vand.u32 %v279, 127
      %vm281 = vcmp.eq.s32.totalorder %v278, 0
      %vm282 = vcmp.eq.s32.totalorder %v280, 0
      %vm283 = vmand %vm281, %vm282
      %vm284 = vcmask 7168
      %v285 = vsel %vm284, %v275, 0.0
      %v286 = vsel %vm284, %v276, 0.0
      %v287 = vadd.f32 %v285, %v286
      %288 = vadd.xlane.f32.xlu0 %v287
      %v289 = vpop.xlane.xlu0 %288
      %v290 = vrot.slane %v289, 4
      %v291 = vadd.f32 %v289, %v290
      %v292 = vrot.slane %v291, 2
      %v293 = vadd.f32 %v291, %v292
      %v294 = vrot.slane %v293, 1
      %v295 = vadd.f32 %v293, %v294
      %s296 = vtos %v295
      %v297 = vstv %s296
      %v298 = vsel %vm283, %v297, 0.0
      %299 = vst [vmem:[%s206] sm:$0xff] %v298
      %p300 = scmp.lt.s32.totalorder %s18, 2
      %s301 = scalar_select %p300, %s18, 2
      %p302 = scmp.lt.s32.totalorder %s19, 1
      %s303 = scalar_select %p302, %s19, 1
      %s304 = smul.addr %s301, 2
      %s305 = sadd.s32 %s303, %s304
      %s306 = smul.addr %s305, 8
      %s307 = scalar_lea.vmem %s3, %s306
      // Predicated region
      $region33: #{net_forward_losses.19} parent=31 // pred_check
        %p308 = pneg %p116
      $region34: #{net_forward_losses.19} parent=31 // pred_check_branch
        %310 = sbr.rel (%p308) target = $region36
      $region35: #{net_forward_losses.19} parent=31 // pred_region
        _
      $region36: #{net_forward_losses.19} parent=31 // pred_fallthru
        _
    $region32: #{net_forward_losses.19} parent=5 // pred_fallthru
      _
    %p311 = scmp.le.s32.totalorder 2, %s9
    // Predicated region
    $region37: #{net_forward_losses.19} parent=5 // pred_check
      %p312 = pneg %p311
    $region38: #{net_forward_losses.19} parent=5 // pred_check_branch
      %314 = sbr.rel (%p312) target = $region40
    $region39: #{net_forward_losses.19} parent=5 // pred_region
      %s315 = ssub.s32 %s9, 2
      // Predicated region
      $region41: #{net_forward_losses.19} parent=39 // pred_check
        %p316 = pneg %p122
      $region42: #{net_forward_losses.19} parent=39 // pred_check_branch
        %318 = sbr.rel (%p316) target = $region44
      $region43: #{net_forward_losses.19} parent=39 // pred_region
        %p319 = scmp.lt.s32.totalorder %s20, 2
        %s320 = scalar_select %p319, %s20, 2
        %p321 = scmp.lt.s32.totalorder %s21, 1
        %s322 = scalar_select %p321, %s21, 1
        %s323 = smul.addr %s320, 2
        %s324 = sadd.s32 %s322, %s323
        %s325 = smul.addr %s324, 8
        %s326 = scalar_lea.vmem %s3, %s325
      $region44: #{net_forward_losses.19} parent=39 // pred_fallthru
        _
    $region40: #{net_forward_losses.19} parent=5 // pred_fallthru
      _
  $region6: #{net_forward_losses.19} parent=0 // loop_footer
    %s13 = sadd.s32 1, %s9
  $region7: #{net_forward_losses.19} parent=0 // loop_footer_branch
    %8 = sbr.rel target = $region3
  $region8: #{net_forward_losses.19} parent=0 // loop_exit
    _

// kernel: net_forward_losses.17
$region0: #{net_forward_losses.17}
  #allocation0 [shape = 'u32[]', space=smem, size = 0x4, offset = 0x4, fixed_abs, tag = 'smem constant byte address 0x4 - core index']
  #allocation1 [shape = 'u32[72,128]{1,0:T(1,128)}', space=vmem, size = 0x9000, scoped, tag = 'internal scratch']
  %s0 = inlined_call_operand.vmem [shape: f32[3,8,256], index: 0, kind: input, shape index: {}]
  %s1 = inlined_call_operand.vmem [shape: f32[8,1], index: 1, kind: input, shape index: {}]
  %s2 = inlined_call_operand.vmem [shape: f32[8,1], index: 2, kind: input, shape index: {}]
  %s3 = inlined_call_operand.vmem [shape: f32[3,1,8,128], index: 3, kind: output, shape index: {}]
  %s4 = sld [smem:[#allocation0]]
  $region45: #{net_forward_losses.17} parent=0
    _
  %s6 = ssub.s32 1, %s4
  %s7 = scalar_select 0, %s6, %s4
  loop: start=0, step=1, limit=5
  $region2: #{net_forward_losses.17} parent=0 // loop_pre_header
    _
  $region3: #{net_forward_losses.17} parent=0 // loop_header
    %s9 = sphi 0, %s13
    %p10 = scmp.ge.s32.totalorder %s9, 5
    %s16 = sphi 0, %s28
    %s17 = sphi 0, %s24
    %s18 = sphi 0, %s16
    %s19 = sphi 0, %s17
    %s20 = sphi 0, %s18
    %s21 = sphi 0, %s19
    %s33 = sphi 0, %s35
    %s36 = sphi 0, %s33
    %s37 = sphi 0, %s36
    %s53 = sphi 0, %s37
    %s57 = sphi 0, %s57
    %s59 = sphi 0, %s57
    %s60 = sphi 0, %s59
    %s74 = sphi 0, %s60
    %s78 = sphi 0, %s78
    %s80 = sphi 0, %s78
    %s81 = sphi 0, %s80
    %s95 = sphi 0, %s81
    %s103 = sphi 0, %s105
    %s106 = sphi 0, %s103
    %s107 = sphi 0, %s106
    %s123 = sphi 0, %s107
  $region4: #{net_forward_losses.17} parent=0 // loop_header_branch
    %12 = sbr.rel (%p10) target = $region8
  $region5: #{net_forward_losses.17} parent=0 // loop_body
    %s14 = ssub.s32 %s9, 1
    %s15 = ssub.s32 %s9, 2
    %s22 = sadd.s32 1, %s17
    %p23 = scmp.ge.s32.totalorder %s22, 1
    %s24 = scalar_select %p23, 0, %s22
    %s25 = sadd.s32 1, %s16
    %s26 = scalar_select %p23, %s25, %s16
    %p27 = scmp.ge.s32.totalorder %s26, 3
    %s28 = scalar_select %p27, 0, %s26
    %s29 = ssub.s32 %s16, %s28
    %s30 = ssub.s32 %s17, %s24
    %s31 = sor.u32 %s29, %s30
    %p32 = scmp.eq.s32.totalorder %s31, 0
    %s34 = sadd.s32 %s33, 1
    %s35 = scalar_select %p32, %s33, %s34
    %p38 = pneg %p32
    %p39 = scmp.eq.s32.totalorder %s9, 2
    %p40 = por %p38, %p39
    %p41 = scmp.ne.s32.totalorder %s33, %s36
    %p42 = scmp.eq.s32.totalorder %s9, 0
    %p43 = por %p41, %p42
    %p44 = scmp.ne.s32.totalorder %s33, %s36
    %p45 = scmp.eq.s32.totalorder %s14, 2
    %p46 = por %p44, %p45
    %p47 = scmp.ne.s32.totalorder %s36, %s37
    %p48 = scmp.eq.s32.totalorder %s14, 0
    %p49 = por %p47, %p48
    %p50 = scmp.ne.s32.totalorder %s36, %s37
    %p51 = scmp.eq.s32.totalorder %s15, 2
    %p52 = por %p50, %p51
    %p54 = scmp.ne.s32.totalorder %s37, %s53
    %p55 = scmp.eq.s32.totalorder %s15, 0
    %p56 = por %p54, %p55
    %s58 = sadd.s32 %s57, 1
    %p61 = scmp.eq.s32.totalorder %s9, 2
    %p62 = scmp.ne.s32.totalorder %s57, %s59
    %p63 = scmp.eq.s32.totalorder %s9, 0
    %p64 = por %p62, %p63
    %p65 = scmp.ne.s32.totalorder %s57, %s59
    %p66 = scmp.eq.s32.totalorder %s14, 2
    %p67 = por %p65, %p66
    %p68 = scmp.ne.s32.totalorder %s59, %s60
    %p69 = scmp.eq.s32.totalorder %s14, 0
    %p70 = por %p68, %p69
    %p71 = scmp.ne.s32.totalorder %s59, %s60
    %p72 = scmp.eq.s32.totalorder %s15, 2
    %p73 = por %p71, %p72
    %p75 = scmp.ne.s32.totalorder %s60, %s74
    %p76 = scmp.eq.s32.totalorder %s15, 0
    %p77 = por %p75, %p76
    %s79 = sadd.s32 %s78, 1
    %p82 = scmp.eq.s32.totalorder %s9, 2
    %p83 = scmp.ne.s32.totalorder %s78, %s80
    %p84 = scmp.eq.s32.totalorder %s9, 0
    %p85 = por %p83, %p84
    %p86 = scmp.ne.s32.totalorder %s78, %s80
    %p87 = scmp.eq.s32.totalorder %s14, 2
    %p88 = por %p86, %p87
    %p89 = scmp.ne.s32.totalorder %s80, %s81
    %p90 = scmp.eq.s32.totalorder %s14, 0
    %p91 = por %p89, %p90
    %p92 = scmp.ne.s32.totalorder %s80, %s81
    %p93 = scmp.eq.s32.totalorder %s15, 2
    %p94 = por %p92, %p93
    %p96 = scmp.ne.s32.totalorder %s81, %s95
    %p97 = scmp.eq.s32.totalorder %s15, 0
    %p98 = por %p96, %p97
    %s99 = ssub.s32 %s16, %s28
    %s100 = ssub.s32 %s17, %s24
    %s101 = sor.u32 %s99, %s100
    %p102 = scmp.eq.s32.totalorder %s101, 0
    %s104 = sadd.s32 %s103, 1
    %s105 = scalar_select %p102, %s103, %s104
    %p108 = pneg %p102
    %p109 = scmp.eq.s32.totalorder %s9, 2
    %p110 = por %p108, %p109
    %p111 = scmp.ne.s32.totalorder %s103, %s106
    %p112 = scmp.eq.s32.totalorder %s9, 0
    %p113 = por %p111, %p112
    %p114 = scmp.ne.s32.totalorder %s103, %s106
    %p115 = scmp.eq.s32.totalorder %s14, 2
    %p116 = por %p114, %p115
    %p117 = scmp.ne.s32.totalorder %s106, %s107
    %p118 = scmp.eq.s32.totalorder %s14, 0
    %p119 = por %p117, %p118
    %p120 = scmp.ne.s32.totalorder %s106, %s107
    %p121 = scmp.eq.s32.totalorder %s15, 2
    %p122 = por %p120, %p121
    %p124 = scmp.ne.s32.totalorder %s107, %s123
    %p125 = scmp.eq.s32.totalorder %s15, 0
    %p126 = por %p124, %p125
    %p127 = scmp.le.s32.totalorder 1, %s9
    %p128 = scmp.lt.s32.totalorder %s9, 4
    %p129 = pnand %p127, %p128
    %p130 = pneg %p129
    // Predicated region
    $region9: #{net_forward_losses.17} parent=5 // pred_check
      _
    $region10: #{net_forward_losses.17} parent=5 // pred_check_branch
      %132 = sbr.rel (%p129) target = $region12
    $region11: #{net_forward_losses.17} parent=5 // pred_region
      %s133 = ssub.s32 %s9, 1
      // Predicated region
      $region13: #{net_forward_losses.17} parent=11 // pred_check
        %p134 = pneg %p70
      $region14: #{net_forward_losses.17} parent=11 // pred_check_branch
        %136 = sbr.rel (%p134) target = $region16
      $region15: #{net_forward_losses.17} parent=11 // pred_region
        _
      $region16: #{net_forward_losses.17} parent=11 // pred_fallthru
        _
      // Predicated region
      $region17: #{net_forward_losses.17} parent=11 // pred_check
        %p137 = pneg %p91
      $region18: #{net_forward_losses.17} parent=11 // pred_check_branch
        %139 = sbr.rel (%p137) target = $region20
      $region19: #{net_forward_losses.17} parent=11 // pred_region
        _
      $region20: #{net_forward_losses.17} parent=11 // pred_fallthru
        _
    $region12: #{net_forward_losses.17} parent=5 // pred_fallthru
      _
    %p140 = scmp.lt.s32.totalorder %s9, 3
    // Predicated region
    $region21: #{net_forward_losses.17} parent=5 // pred_check
      %p141 = pneg %p140
    $region22: #{net_forward_losses.17} parent=5 // pred_check_branch
      %143 = sbr.rel (%p141) target = $region24
    $region23: #{net_forward_losses.17} parent=5 // pred_region
      // Predicated region
      $region25: #{net_forward_losses.17} parent=23 // pred_check
        %p144 = pneg %p43
      $region26: #{net_forward_losses.17} parent=23 // pred_check_branch
        %146 = sbr.rel (%p144) target = $region28
      $region27: #{net_forward_losses.17} parent=23 // pred_region
        %p147 = scmp.lt.s32.totalorder %s16, 2
        %s148 = scalar_select %p147, %s16, 2
        %p149 = scmp.lt.s32.totalorder %s17, 0
        %s150 = scalar_select %p149, %s17, 0
        %s151 = smul.addr %s150, 2
        %s152 = smul.addr %s148, 2
        %s153 = sadd.s32 %s151, %s152
        %s154 = smul.addr %s153, 8
        %s155 = scalar_lea.vmem %s0, %s154
      $region28: #{net_forward_losses.17} parent=23 // pred_fallthru
        _
    $region24: #{net_forward_losses.17} parent=5 // pred_fallthru
      _
    %p156 = scmp.le.s32.totalorder 1, %s9
    %p157 = scmp.lt.s32.totalorder %s9, 4
    %p158 = pnand %p156, %p157
    %p159 = pneg %p158
    // Predicated region
    $region29: #{net_forward_losses.17} parent=5 // pred_check
      _
    $region30: #{net_forward_losses.17} parent=5 // pred_check_branch
      %161 = sbr.rel (%p158) target = $region32
    $region31: #{net_forward_losses.17} parent=5 // pred_region
      %s162 = ssub.s32 %s9, 1
      %p163 = scmp.lt.s32.totalorder %s18, 2
      %s164 = scalar_select %p163, %s18, 2
      %p165 = scmp.lt.s32.totalorder %s19, 0
      %s166 = scalar_select %p165, %s19, 0
      %s167 = smul.addr %s166, 2
      %s168 = smul.addr %s164, 2
      %s169 = sadd.s32 %s167, %s168
      %s170 = smul.addr %s169, 8
      %s171 = scalar_lea.vmem %s0, %s170
      %p172 = pneg %p49
      %p173 = pneg %p46
      %p174 = pneg %p70
      %p175 = pneg %p67
      %p176 = pneg %p91
      %p177 = pneg %p88
      %p178 = pneg %p119
      %p179 = pneg %p116
      %p180 = scmp.lt.s32.totalorder %s18, 2
      %s181 = scalar_select %p180, %s18, 2
      %p182 = scmp.lt.s32.totalorder %s19, 0
      %s183 = scalar_select %p182, %s19, 0
      %s184 = sadd.s32 %s183, %s181
      %s185 = smul.addr %s184, 8
      %s186 = scalar_lea.vmem %s3, %s185
      %p187 = scmp.lt.s32.totalorder %s18, 2
      %s188 = scalar_select %p187, %s18, 2
      %p189 = scmp.lt.s32.totalorder %s19, 0
      %s190 = scalar_select %p189, %s19, 0
      %s191 = smul.addr %s190, 2
      %s192 = smul.addr %s188, 2
      %s193 = sadd.s32 %s191, %s192
      %s194 = smul.addr %s193, 8
      %s195 = scalar_lea.vmem %s0, %s194
      %p196 = scmp.lt.s32.totalorder %s18, 2
      %s197 = scalar_select %p196, %s18, 2
      %p198 = scmp.lt.s32.totalorder %s19, 0
      %s199 = scalar_select %p198, %s19, 0
      %s200 = sadd.s32 %s199, %s197
      %s201 = smul.addr %s200, 8
      %s202 = scalar_lea.vmem %s3, %s201
      %s203 = smul.u32 %s19, 8
      %v204 = vld [vmem:[%s195] sm:$0xff]
      %v205 = vld [vmem:[%s195 + $0x8] sm:$0xff]
      %v206 = vadd.f32 %v204, %v205
      %207 = vadd.xlane.f32.xlu0 %v206
      %v208 = vpop.xlane.xlu0 %207
      %v209 = vmul.f32 %v204, %v204
      %v210 = vmul.f32 %v205, %v205
      %v211 = vadd.f32 %v209, %v210
      %212 = vadd.xlane.f32.xlu0 %v211
      %v213 = vpop.xlane.xlu0 %212
      %v214 = vmul.f32 %v208, 0.00390625
      %v215 = vmul.f32 %v214, 256.0
      %v216 = vmul.f32 %v215, %v214
      %v217 = vsub.f32 %v213, %v216
      %v218 = vmax.f32 %v217, 0.0
      %v219 = vmul.f32 %v218, 0.003921569
      %v220 = vadd.f32 %v219, 1e-05
      %v221 = vrsqrt.pop %v220
      %v222 = vmul.f32 %v221, %v220
      %v223 = vmul.f32 %v222, %v221
      %v224 = vmul.f32 0.5, %v223
      %v225 = vsub.f32 1.5, %v224
      %v226 = vmul.f32 %v221, %v225
      %vm227 = vweird.f32 %v220
      %vm228 = vweird.f32 %v221
      %vm229 = vmor %vm227, %vm228
      %v230 = vsel %vm229, %v221, %v226
      %v231 = vmul.f32 %v220, %v230
      %s232 = scalar_lea.vmem %s1, %s203
      %v233 = vld [vmem:[%s232] sm:$0xff]
      %v234 = vsub.f32 %v214, %v233
      %s235 = scalar_lea.vmem %s2, %s203
      %v236 = vld [vmem:[%s235] sm:$0xff]
      %v237 = vsub.f32 %v231, %v236
      %v238 = vmul.f32 %v234, %v234
      %v239 = vmul.f32 %v237, %v237
      %v240 = vadd.f32 %v238, %v239
      %v241 = vlaneseq
      %v242 = vshrl.u32 %v241, 7
      %v243 = vlaneseq
      %v244 = vand.u32 %v243, 127
      %vm245 = vcmp.eq.s32.totalorder %v242, 0
      %vm246 = vcmp.eq.s32.totalorder %v244, 0
      %vm247 = vmand %vm245, %vm246
      %vm248 = vcmask 7168
      %v249 = vsel %vm248, %v240, 0.0
      %250 = vadd.xlane.f32.xlu0 %v249
      %v251 = vpop.xlane.xlu0 %250
      %v252 = vrot.slane %v251, 4
      %v253 = vadd.f32 %v251, %v252
      %v254 = vrot.slane %v253, 2
      %v255 = vadd.f32 %v253, %v254
      %v256 = vrot.slane %v255, 1
      %v257 = vadd.f32 %v255, %v256
      %s258 = vtos %v257
      %v259 = vstv %s258
      %v260 = vsel %vm247, %v259, 0.0
      %261 = vst [vmem:[%s202] sm:$0xff] %v260
      %p262 = scmp.lt.s32.totalorder %s18, 2
      %s263 = scalar_select %p262, %s18, 2
      %p264 = scmp.lt.s32.totalorder %s19, 0
      %s265 = scalar_select %p264, %s19, 0
      %s266 = sadd.s32 %s265, %s263
      %s267 = smul.addr %s266, 8
      %s268 = scalar_lea.vmem %s3, %s267
      // Predicated region
      $region33: #{net_forward_losses.17} parent=31 // pred_check
        %p269 = pneg %p116
      $region34: #{net_forward_losses.17} parent=31 // pred_check_branch
        %271 = sbr.rel (%p269) target = $region36
      $region35: #{net_forward_losses.17} parent=31 // pred_region
        _
      $region36: #{net_forward_losses.17} parent=31 // pred_fallthru
        _
    $region32: #{net_forward_losses.17} parent=5 // pred_fallthru
      _
    %p272 = scmp.le.s32.totalorder 2, %s9
    // Predicated region
    $region37: #{net_forward_losses.17} parent=5 // pred_check
      %p273 = pneg %p272
    $region38: #{net_forward_losses.17} parent=5 // pred_check_branch
      %275 = sbr.rel (%p273) target = $region40
    $region39: #{net_forward_losses.17} parent=5 // pred_region
      %s276 = ssub.s32 %s9, 2
      // Predicated region
      $region41: #{net_forward_losses.17} parent=39 // pred_check
        %p277 = pneg %p122
      $region42: #{net_forward_losses.17} parent=39 // pred_check_branch
        %279 = sbr.rel (%p277) target = $region44
      $region43: #{net_forward_losses.17} parent=39 // pred_region
        %p280 = scmp.lt.s32.totalorder %s20, 2
        %s281 = scalar_select %p280, %s20, 2
        %p282 = scmp.lt.s32.totalorder %s21, 0
        %s283 = scalar_select %p282, %s21, 0
        %s284 = sadd.s32 %s283, %s281
        %s285 = smul.addr %s284, 8
        %s286 = scalar_lea.vmem %s3, %s285
      $region44: #{net_forward_losses.17} parent=39 // pred_fallthru
        _
    $region40: #{net_forward_losses.17} parent=5 // pred_fallthru
      _
  $region6: #{net_forward_losses.17} parent=0 // loop_footer
    %s13 = sadd.s32 1, %s9
  $region7: #{net_forward_losses.17} parent=0 // loop_footer_branch
    %8 = sbr.rel target = $region3
  $region8: #{net_forward_losses.17} parent=0 // loop_exit
    _

// kernel: net_forward_losses.13
$region0: #{net_forward_losses.13}
  #allocation0 [shape = 'u32[]', space=smem, size = 0x4, offset = 0x4, fixed_abs, tag = 'smem constant byte address 0x4 - core index']
  #allocation1 [shape = 'u32[72,128]{1,0:T(1,128)}', space=vmem, size = 0x9000, scoped, tag = 'internal scratch']
  %s0 = inlined_call_operand.vmem [shape: f32[32,16], index: 0, kind: input, shape index: {}]
  %s1 = inlined_call_operand.vmem [shape: f32[32,1], index: 1, kind: output, shape index: {0}]
  %s2 = inlined_call_operand.vmem [shape: f32[32,1], index: 2, kind: output, shape index: {1}]
  %3 = xla_tuple %s1, %s2
  %s4 = sld [smem:[#allocation0]]
  $region45: #{net_forward_losses.13} parent=0
    _
  %s6 = ssub.s32 1, %s4
  %s7 = scalar_select 0, %s6, %s4
  loop: start=0, step=1, limit=4
  $region2: #{net_forward_losses.13} parent=0 // loop_pre_header
    _
  $region3: #{net_forward_losses.13} parent=0 // loop_header
    %s9 = sphi 0, %s13
    %p10 = scmp.ge.s32.totalorder %s9, 4
    %s19 = sphi 0, %s21
    %s22 = sphi 0, %s19
    %s23 = sphi 0, %s22
    %s39 = sphi 0, %s23
    %s45 = sphi 0, %s47
    %s48 = sphi 0, %s45
    %s49 = sphi 0, %s48
    %s65 = sphi 0, %s49
    %s71 = sphi 0, %s73
    %s74 = sphi 0, %s71
    %s75 = sphi 0, %s74
    %s91 = sphi 0, %s75
  $region4: #{net_forward_losses.13} parent=0 // loop_header_branch
    %12 = sbr.rel (%p10) target = $region8
  $region5: #{net_forward_losses.13} parent=0 // loop_body
    %s14 = ssub.s32 %s9, 1
    %s15 = ssub.s32 %s9, 2
    %s16 = sadd.s32 %s9, 1
    %s17 = ssub.s32 %s9, %s16
    %p18 = scmp.eq.s32.totalorder %s17, 0
    %s20 = sadd.s32 %s19, 1
    %s21 = scalar_select %p18, %s19, %s20
    %p24 = pneg %p18
    %p25 = scmp.eq.s32.totalorder %s9, 1
    %p26 = por %p24, %p25
    %p27 = scmp.ne.s32.totalorder %s19, %s22
    %p28 = scmp.eq.s32.totalorder %s9, 0
    %p29 = por %p27, %p28
    %p30 = scmp.ne.s32.totalorder %s19, %s22
    %p31 = scmp.eq.s32.totalorder %s14, 1
    %p32 = por %p30, %p31
    %p33 = scmp.ne.s32.totalorder %s22, %s23
    %p34 = scmp.eq.s32.totalorder %s14, 0
    %p35 = por %p33, %p34
    %p36 = scmp.ne.s32.totalorder %s22, %s23
    %p37 = scmp.eq.s32.totalorder %s15, 1
    %p38 = por %p36, %p37
    %p40 = scmp.ne.s32.totalorder %s23, %s39
    %p41 = scmp.eq.s32.totalorder %s15, 0
    %p42 = por %p40, %p41
    %s43 = ssub.s32 %s9, %s16
    %p44 = scmp.eq.s32.totalorder %s43, 0
    %s46 = sadd.s32 %s45, 1
    %s47 = scalar_select %p44, %s45, %s46
    %p50 = pneg %p44
    %p51 = scmp.eq.s32.totalorder %s9, 1
    %p52 = por %p50, %p51
    %p53 = scmp.ne.s32.totalorder %s45, %s48
    %p54 = scmp.eq.s32.totalorder %s9, 0
    %p55 = por %p53, %p54
    %p56 = scmp.ne.s32.totalorder %s45, %s48
    %p57 = scmp.eq.s32.totalorder %s14, 1
    %p58 = por %p56, %p57
    %p59 = scmp.ne.s32.totalorder %s48, %s49
    %p60 = scmp.eq.s32.totalorder %s14, 0
    %p61 = por %p59, %p60
    %p62 = scmp.ne.s32.totalorder %s48, %s49
    %p63 = scmp.eq.s32.totalorder %s15, 1
    %p64 = por %p62, %p63
    %p66 = scmp.ne.s32.totalorder %s49, %s65
    %p67 = scmp.eq.s32.totalorder %s15, 0
    %p68 = por %p66, %p67
    %s69 = ssub.s32 %s9, %s16
    %p70 = scmp.eq.s32.totalorder %s69, 0
    %s72 = sadd.s32 %s71, 1
    %s73 = scalar_select %p70, %s71, %s72
    %p76 = pneg %p70
    %p77 = scmp.eq.s32.totalorder %s9, 1
    %p78 = por %p76, %p77
    %p79 = scmp.ne.s32.totalorder %s71, %s74
    %p80 = scmp.eq.s32.totalorder %s9, 0
    %p81 = por %p79, %p80
    %p82 = scmp.ne.s32.totalorder %s71, %s74
    %p83 = scmp.eq.s32.totalorder %s14, 1
    %p84 = por %p82, %p83
    %p85 = scmp.ne.s32.totalorder %s74, %s75
    %p86 = scmp.eq.s32.totalorder %s14, 0
    %p87 = por %p85, %p86
    %p88 = scmp.ne.s32.totalorder %s74, %s75
    %p89 = scmp.eq.s32.totalorder %s15, 1
    %p90 = por %p88, %p89
    %p92 = scmp.ne.s32.totalorder %s75, %s91
    %p93 = scmp.eq.s32.totalorder %s15, 0
    %p94 = por %p92, %p93
    %p95 = scmp.le.s32.totalorder 1, %s9
    %p96 = scmp.lt.s32.totalorder %s9, 3
    %p97 = pnand %p95, %p96
    %p98 = pneg %p97
    // Predicated region
    $region9: #{net_forward_losses.13} parent=5 // pred_check
      _
    $region10: #{net_forward_losses.13} parent=5 // pred_check_branch
      %100 = sbr.rel (%p97) target = $region12
    $region11: #{net_forward_losses.13} parent=5 // pred_region
      %s101 = ssub.s32 %s9, 1
    $region12: #{net_forward_losses.13} parent=5 // pred_fallthru
      _
    %p102 = scmp.lt.s32.totalorder %s9, 2
    // Predicated region
    $region13: #{net_forward_losses.13} parent=5 // pred_check
      %p103 = pneg %p102
    $region14: #{net_forward_losses.13} parent=5 // pred_check_branch
      %105 = sbr.rel (%p103) target = $region16
    $region15: #{net_forward_losses.13} parent=5 // pred_region
      // Predicated region
      $region17: #{net_forward_losses.13} parent=15 // pred_check
        %p106 = pneg %p29
      $region18: #{net_forward_losses.13} parent=15 // pred_check_branch
        %108 = sbr.rel (%p106) target = $region20
      $region19: #{net_forward_losses.13} parent=15 // pred_region
        %s109 = smul.u32 2, %s9
        %p110 = scmp.lt.s32.totalorder %s109, 3
        %s111 = scalar_select %p110, %s109, 3
        %s112 = smul.addr %s111, 8
        %s113 = scalar_lea.vmem %s0, %s112
        %s114 = smul.u32 2, %s9
      $region20: #{net_forward_losses.13} parent=15 // pred_fallthru
        _
    $region16: #{net_forward_losses.13} parent=5 // pred_fallthru
      _
    %p115 = scmp.le.s32.totalorder 1, %s9
    %p116 = scmp.lt.s32.totalorder %s9, 3
    %p117 = pnand %p115, %p116
    %p118 = pneg %p117
    // Predicated region
    $region21: #{net_forward_losses.13} parent=5 // pred_check
      _
    $region22: #{net_forward_losses.13} parent=5 // pred_check_branch
      %120 = sbr.rel (%p117) target = $region24
    $region23: #{net_forward_losses.13} parent=5 // pred_region
      %s121 = ssub.s32 %s9, 1
      %s122 = smul.u32 2, %s14
      %p123 = scmp.lt.s32.totalorder %s122, 3
      %s124 = scalar_select %p123, %s122, 3
      %s125 = smul.addr %s124, 8
      %s126 = scalar_lea.vmem %s0, %s125
      %p127 = pneg %p35
      %p128 = pneg %p32
      %p129 = pneg %p61
      %p130 = pneg %p58
      %s131 = smul.u32 2, %s14
      %p132 = scmp.lt.s32.totalorder %s131, 3
      %s133 = scalar_select %p132, %s131, 3
      %s134 = smul.addr %s133, 8
      %s135 = scalar_lea.vmem %s1, %s134
      %p136 = pneg %p87
      %p137 = pneg %p84
      %s138 = smul.u32 2, %s14
      %p139 = scmp.lt.s32.totalorder %s138, 3
      %s140 = scalar_select %p139, %s138, 3
      %s141 = smul.addr %s140, 8
      %s142 = scalar_lea.vmem %s2, %s141
      %s143 = smul.u32 2, %s14
      %p144 = scmp.lt.s32.totalorder %s143, 3
      %s145 = scalar_select %p144, %s143, 3
      %s146 = smul.addr %s145, 8
      %s147 = scalar_lea.vmem %s0, %s146
      %s148 = smul.u32 2, %s14
      %s149 = smul.u32 2, %s14
      %p150 = scmp.lt.s32.totalorder %s149, 3
      %s151 = scalar_select %p150, %s149, 3
      %s152 = smul.addr %s151, 8
      %s153 = scalar_lea.vmem %s1, %s152
      %s154 = smul.u32 2, %s14
      %s155 = smul.u32 2, %s14
      %p156 = scmp.lt.s32.totalorder %s155, 3
      %s157 = scalar_select %p156, %s155, 3
      %s158 = smul.addr %s157, 8
      %s159 = scalar_lea.vmem %s2, %s158
      %s160 = smul.u32 2, %s14
      %v161 = vld [vmem:[%s147] sm:$0xff]
      %v162 = vld [vmem:[%s147 + $0x8] sm:$0xff]
      %vm163 = vcmask 130048
      %v164 = vsel %vm163, %v161, 0.0
      %165 = vadd.xlane.f32.xlu0 %v164
      %v166 = vpop.xlane.xlu0 %165
      %v167 = vsel %vm163, %v162, 0.0
      %168 = vadd.xlane.f32.xlu0 %v167
      %v169 = vpop.xlane.xlu0 %168
      %v170 = vmul.f32 %v161, %v161
      %v171 = vmul.f32 %v162, %v162
      %v172 = vsel %vm163, %v170, 0.0
      %173 = vadd.xlane.f32.xlu0 %v172
      %v174 = vpop.xlane.xlu0 %173
      %v175 = vsel %vm163, %v171, 0.0
      %176 = vadd.xlane.f32.xlu0 %v175
      %v177 = vpop.xlane.xlu0 %176
      %v178 = vmul.f32 %v166, 0.0625
      %v179 = vmul.f32 %v169, 0.0625
      %v180 = vmul.f32 %v178, 16.0
      %v181 = vmul.f32 %v179, 16.0
      %v182 = vmul.f32 %v180, %v178
      %v183 = vmul.f32 %v181, %v179
      %v184 = vsub.f32 %v174, %v182
      %v185 = vsub.f32 %v177, %v183
      %v186 = vmax.f32 %v184, 0.0
      %v187 = vmax.f32 %v185, 0.0
      %v188 = vmul.f32 %v186, 0.06666667
      %v189 = vmul.f32 %v187, 0.06666667
      %v190 = vadd.f32 %v188, 1e-05
      %v191 = vadd.f32 %v189, 1e-05
      %vm192 = vcmask 7168
      %193 = vst.msk [vmem:[%s153] sm:$0xff] %vm192, %v178
      %194 = vst.msk [vmem:[%s153 + $0x8] sm:$0xff] %vm192, %v179
      %v195 = vrsqrt.pop %v190
      %v196 = vmul.f32 %v195, %v190
      %v197 = vmul.f32 %v196, %v195
      %v198 = vmul.f32 0.5, %v197
      %v199 = vsub.f32 1.5, %v198
      %v200 = vmul.f32 %v195, %v199
      %vm201 = vweird.f32 %v190
      %vm202 = vweird.f32 %v195
      %vm203 = vmor %vm201, %vm202
      %v204 = vsel %vm203, %v195, %v200
      %v205 = vrsqrt.pop %v191
      %v206 = vmul.f32 %v205, %v191
      %v207 = vmul.f32 %v206, %v205
      %v208 = vmul.f32 0.5, %v207
      %v209 = vsub.f32 1.5, %v208
      %v210 = vmul.f32 %v205, %v209
      %vm211 = vweird.f32 %v191
      %vm212 = vweird.f32 %v205
      %vm213 = vmor %vm211, %vm212
      %v214 = vsel %vm213, %v205, %v210
      %v215 = vmul.f32 %v190, %v204
      %v216 = vmul.f32 %v191, %v214
      %217 = vst.msk [vmem:[%s159] sm:$0xff] %vm192, %v215
      %218 = vst.msk [vmem:[%s159 + $0x8] sm:$0xff] %vm192, %v216
      %s219 = smul.u32 2, %s14
      %p220 = scmp.lt.s32.totalorder %s219, 3
      %s221 = scalar_select %p220, %s219, 3
      %s222 = smul.addr %s221, 8
      %s223 = scalar_lea.vmem %s1, %s222
      %s224 = smul.u32 2, %s14
      %p225 = scmp.lt.s32.totalorder %s224, 3
      %s226 = scalar_select %p225, %s224, 3
      %s227 = smul.addr %s226, 8
      %s228 = scalar_lea.vmem %s2, %s227
      // Predicated region
      $region25: #{net_forward_losses.13} parent=23 // pred_check
        %p229 = pneg %p58
      $region26: #{net_forward_losses.13} parent=23 // pred_check_branch
        %231 = sbr.rel (%p229) target = $region28
      $region27: #{net_forward_losses.13} parent=23 // pred_region
        %s232 = smul.u32 2, %s14
      $region28: #{net_forward_losses.13} parent=23 // pred_fallthru
        _
      // Predicated region
      $region29: #{net_forward_losses.13} parent=23 // pred_check
        %p233 = pneg %p84
      $region30: #{net_forward_losses.13} parent=23 // pred_check_branch
        %235 = sbr.rel (%p233) target = $region32
      $region31: #{net_forward_losses.13} parent=23 // pred_region
        %s236 = smul.u32 2, %s14
      $region32: #{net_forward_losses.13} parent=23 // pred_fallthru
        _
    $region24: #{net_forward_losses.13} parent=5 // pred_fallthru
      _
    %p237 = scmp.le.s32.totalorder 2, %s9
    // Predicated region
    $region33: #{net_forward_losses.13} parent=5 // pred_check
      %p238 = pneg %p237
    $region34: #{net_forward_losses.13} parent=5 // pred_check_branch
      %240 = sbr.rel (%p238) target = $region36
    $region35: #{net_forward_losses.13} parent=5 // pred_region
      %s241 = ssub.s32 %s9, 2
      // Predicated region
      $region37: #{net_forward_losses.13} parent=35 // pred_check
        %p242 = pneg %p64
      $region38: #{net_forward_losses.13} parent=35 // pred_check_branch
        %244 = sbr.rel (%p242) target = $region40
      $region39: #{net_forward_losses.13} parent=35 // pred_region
        %s245 = smul.u32 2, %s15
        %p246 = scmp.lt.s32.totalorder %s245, 3
        %s247 = scalar_select %p246, %s245, 3
        %s248 = smul.addr %s247, 8
        %s249 = scalar_lea.vmem %s1, %s248
      $region40: #{net_forward_losses.13} parent=35 // pred_fallthru
        _
      // Predicated region
      $region41: #{net_forward_losses.13} parent=35 // pred_check
        %p250 = pneg %p90
      $region42: #{net_forward_losses.13} parent=35 // pred_check_branch
        %252 = sbr.rel (%p250) target = $region44
      $region43: #{net_forward_losses.13} parent=35 // pred_region
        %s253 = smul.u32 2, %s15
        %p254 = scmp.lt.s32.totalorder %s253, 3
        %s255 = scalar_select %p254, %s253, 3
        %s256 = smul.addr %s255, 8
        %s257 = scalar_lea.vmem %s2, %s256
      $region44: #{net_forward_losses.13} parent=35 // pred_fallthru
        _
    $region36: #{net_forward_losses.13} parent=5 // pred_fallthru
      _
  $region6: #{net_forward_losses.13} parent=0 // loop_footer
    %s13 = sadd.s32 1, %s9
  $region7: #{net_forward_losses.13} parent=0 // loop_footer_branch
    %8 = sbr.rel target = $region3
  $region8: #{net_forward_losses.13} parent=0 // loop_exit
    _

// kernel: net_forward_losses.15
$region0: #{net_forward_losses.15}
  #allocation0 [shape = 'u32[]', space=smem, size = 0x4, offset = 0x4, fixed_abs, tag = 'smem constant byte address 0x4 - core index']
  #allocation1 [shape = 'u32[72,128]{1,0:T(1,128)}', space=vmem, size = 0x9000, scoped, tag = 'internal scratch']
  %s0 = inlined_call_operand.vmem [shape: f32[3,32,16], index: 0, kind: input, shape index: {}]
  %s1 = inlined_call_operand.vmem [shape: f32[3,32,16], index: 1, kind: input, shape index: {}]
  %s2 = inlined_call_operand.vmem [shape: f32[32,1], index: 2, kind: input, shape index: {}]
  %s3 = inlined_call_operand.vmem [shape: f32[32,1], index: 3, kind: input, shape index: {}]
  %s4 = inlined_call_operand.vmem [shape: f32[3,4,8,128], index: 4, kind: output, shape index: {0}]
  %s5 = inlined_call_operand.vmem [shape: f32[3,4,8,128], index: 5, kind: output, shape index: {1}]
  %6 = xla_tuple %s4, %s5
  %s7 = sld [smem:[#allocation0]]
  $region57: #{net_forward_losses.15} parent=0
    _
  %s9 = ssub.s32 1, %s7
  %s10 = scalar_select 0, %s9, %s7
  loop: start=0, step=1, limit=14
  $region2: #{net_forward_losses.15} parent=0 // loop_pre_header
    _
  $region3: #{net_forward_losses.15} parent=0 // loop_header
    %s12 = sphi 0, %s16
    %p13 = scmp.ge.s32.totalorder %s12, 14
    %s19 = sphi 0, %s31
    %s20 = sphi 0, %s27
    %s21 = sphi 0, %s19
    %s22 = sphi 0, %s20
    %s23 = sphi 0, %s21
    %s24 = sphi 0, %s22
    %s36 = sphi 0, %s38
    %s39 = sphi 0, %s36
    %s40 = sphi 0, %s39
    %s56 = sphi 0, %s40
    %s64 = sphi 0, %s66
    %s67 = sphi 0, %s64
    %s68 = sphi 0, %s67
    %s84 = sphi 0, %s68
    %s88 = sphi 0, %s88
    %s90 = sphi 0, %s88
    %s91 = sphi 0, %s90
    %s105 = sphi 0, %s91
    %s109 = sphi 0, %s109
    %s111 = sphi 0, %s109
    %s112 = sphi 0, %s111
    %s126 = sphi 0, %s112
    %s134 = sphi 0, %s136
    %s137 = sphi 0, %s134
    %s138 = sphi 0, %s137
    %s154 = sphi 0, %s138
    %s162 = sphi 0, %s164
    %s165 = sphi 0, %s162
    %s166 = sphi 0, %s165
    %s182 = sphi 0, %s166
  $region4: #{net_forward_losses.15} parent=0 // loop_header_branch
    %15 = sbr.rel (%p13) target = $region8
  $region5: #{net_forward_losses.15} parent=0 // loop_body
    %s17 = ssub.s32 %s12, 1
    %s18 = ssub.s32 %s12, 2
    %s25 = sadd.s32 1, %s20
    %p26 = scmp.ge.s32.totalorder %s25, 4
    %s27 = scalar_select %p26, 0, %s25
    %s28 = sadd.s32 1, %s19
    %s29 = scalar_select %p26, %s28, %s19
    %p30 = scmp.ge.s32.totalorder %s29, 3
    %s31 = scalar_select %p30, 0, %s29
    %s32 = ssub.s32 %s19, %s31
    %s33 = ssub.s32 %s20, %s27
    %s34 = sor.u32 %s32, %s33
    %p35 = scmp.eq.s32.totalorder %s34, 0
    %s37 = sadd.s32 %s36, 1
    %s38 = scalar_select %p35, %s36, %s37
    %p41 = pneg %p35
    %p42 = scmp.eq.s32.totalorder %s12, 11
    %p43 = por %p41, %p42
    %p44 = scmp.ne.s32.totalorder %s36, %s39
    %p45 = scmp.eq.s32.totalorder %s12, 0
    %p46 = por %p44, %p45
    %p47 = scmp.ne.s32.totalorder %s36, %s39
    %p48 = scmp.eq.s32.totalorder %s17, 11
    %p49 = por %p47, %p48
    %p50 = scmp.ne.s32.totalorder %s39, %s40
    %p51 = scmp.eq.s32.totalorder %s17, 0
    %p52 = por %p50, %p51
    %p53 = scmp.ne.s32.totalorder %s39, %s40
    %p54 = scmp.eq.s32.totalorder %s18, 11
    %p55 = por %p53, %p54
    %p57 = scmp.ne.s32.totalorder %s40, %s56
    %p58 = scmp.eq.s32.totalorder %s18, 0
    %p59 = por %p57, %p58
    %s60 = ssub.s32 %s19, %s31
    %s61 = ssub.s32 %s20, %s27
    %s62 = sor.u32 %s60, %s61
    %p63 = scmp.eq.s32.totalorder %s62, 0
    %s65 = sadd.s32 %s64, 1
    %s66 = scalar_select %p63, %s64, %s65
    %p69 = pneg %p63
    %p70 = scmp.eq.s32.totalorder %s12, 11
    %p71 = por %p69, %p70
    %p72 = scmp.ne.s32.totalorder %s64, %s67
    %p73 = scmp.eq.s32.totalorder %s12, 0
    %p74 = por %p72, %p73
    %p75 = scmp.ne.s32.totalorder %s64, %s67
    %p76 = scmp.eq.s32.totalorder %s17, 11
    %p77 = por %p75, %p76
    %p78 = scmp.ne.s32.totalorder %s67, %s68
    %p79 = scmp.eq.s32.totalorder %s17, 0
    %p80 = por %p78, %p79
    %p81 = scmp.ne.s32.totalorder %s67, %s68
    %p82 = scmp.eq.s32.totalorder %s18, 11
    %p83 = por %p81, %p82
    %p85 = scmp.ne.s32.totalorder %s68, %s84
    %p86 = scmp.eq.s32.totalorder %s18, 0
    %p87 = por %p85, %p86
    %s89 = sadd.s32 %s88, 1
    %p92 = scmp.eq.s32.totalorder %s12, 11
    %p93 = scmp.ne.s32.totalorder %s88, %s90
    %p94 = scmp.eq.s32.totalorder %s12, 0
    %p95 = por %p93, %p94
    %p96 = scmp.ne.s32.totalorder %s88, %s90
    %p97 = scmp.eq.s32.totalorder %s17, 11
    %p98 = por %p96, %p97
    %p99 = scmp.ne.s32.totalorder %s90, %s91
    %p100 = scmp.eq.s32.totalorder %s17, 0
    %p101 = por %p99, %p100
    %p102 = scmp.ne.s32.totalorder %s90, %s91
    %p103 = scmp.eq.s32.totalorder %s18, 11
    %p104 = por %p102, %p103
    %p106 = scmp.ne.s32.totalorder %s91, %s105
    %p107 = scmp.eq.s32.totalorder %s18, 0
    %p108 = por %p106, %p107
    %s110 = sadd.s32 %s109, 1
    %p113 = scmp.eq.s32.totalorder %s12, 11
    %p114 = scmp.ne.s32.totalorder %s109, %s111
    %p115 = scmp.eq.s32.totalorder %s12, 0
    %p116 = por %p114, %p115
    %p117 = scmp.ne.s32.totalorder %s109, %s111
    %p118 = scmp.eq.s32.totalorder %s17, 11
    %p119 = por %p117, %p118
    %p120 = scmp.ne.s32.totalorder %s111, %s112
    %p121 = scmp.eq.s32.totalorder %s17, 0
    %p122 = por %p120, %p121
    %p123 = scmp.ne.s32.totalorder %s111, %s112
    %p124 = scmp.eq.s32.totalorder %s18, 11
    %p125 = por %p123, %p124
    %p127 = scmp.ne.s32.totalorder %s112, %s126
    %p128 = scmp.eq.s32.totalorder %s18, 0
    %p129 = por %p127, %p128
    %s130 = ssub.s32 %s19, %s31
    %s131 = ssub.s32 %s20, %s27
    %s132 = sor.u32 %s130, %s131
    %p133 = scmp.eq.s32.totalorder %s132, 0
    %s135 = sadd.s32 %s134, 1
    %s136 = scalar_select %p133, %s134, %s135
    %p139 = pneg %p133
    %p140 = scmp.eq.s32.totalorder %s12, 11
    %p141 = por %p139, %p140
    %p142 = scmp.ne.s32.totalorder %s134, %s137
    %p143 = scmp.eq.s32.totalorder %s12, 0
    %p144 = por %p142, %p143
    %p145 = scmp.ne.s32.totalorder %s134, %s137
    %p146 = scmp.eq.s32.totalorder %s17, 11
    %p147 = por %p145, %p146
    %p148 = scmp.ne.s32.totalorder %s137, %s138
    %p149 = scmp.eq.s32.totalorder %s17, 0
    %p150 = por %p148, %p149
    %p151 = scmp.ne.s32.totalorder %s137, %s138
    %p152 = scmp.eq.s32.totalorder %s18, 11
    %p153 = por %p151, %p152
    %p155 = scmp.ne.s32.totalorder %s138, %s154
    %p156 = scmp.eq.s32.totalorder %s18, 0
    %p157 = por %p155, %p156
    %s158 = ssub.s32 %s19, %s31
    %s159 = ssub.s32 %s20, %s27
    %s160 = sor.u32 %s158, %s159
    %p161 = scmp.eq.s32.totalorder %s160, 0
    %s163 = sadd.s32 %s162, 1
    %s164 = scalar_select %p161, %s162, %s163
    %p167 = pneg %p161
    %p168 = scmp.eq.s32.totalorder %s12, 11
    %p169 = por %p167, %p168
    %p170 = scmp.ne.s32.totalorder %s162, %s165
    %p171 = scmp.eq.s32.totalorder %s12, 0
    %p172 = por %p170, %p171
    %p173 = scmp.ne.s32.totalorder %s162, %s165
    %p174 = scmp.eq.s32.totalorder %s17, 11
    %p175 = por %p173, %p174
    %p176 = scmp.ne.s32.totalorder %s165, %s166
    %p177 = scmp.eq.s32.totalorder %s17, 0
    %p178 = por %p176, %p177
    %p179 = scmp.ne.s32.totalorder %s165, %s166
    %p180 = scmp.eq.s32.totalorder %s18, 11
    %p181 = por %p179, %p180
    %p183 = scmp.ne.s32.totalorder %s166, %s182
    %p184 = scmp.eq.s32.totalorder %s18, 0
    %p185 = por %p183, %p184
    %p186 = scmp.le.s32.totalorder 1, %s12
    %p187 = scmp.lt.s32.totalorder %s12, 13
    %p188 = pnand %p186, %p187
    %p189 = pneg %p188
    // Predicated region
    $region9: #{net_forward_losses.15} parent=5 // pred_check
      _
    $region10: #{net_forward_losses.15} parent=5 // pred_check_branch
      %191 = sbr.rel (%p188) target = $region12
    $region11: #{net_forward_losses.15} parent=5 // pred_region
      %s192 = ssub.s32 %s12, 1
      // Predicated region
      $region13: #{net_forward_losses.15} parent=11 // pred_check
        %p193 = pneg %p101
      $region14: #{net_forward_losses.15} parent=11 // pred_check_branch
        %195 = sbr.rel (%p193) target = $region16
      $region15: #{net_forward_losses.15} parent=11 // pred_region
        _
      $region16: #{net_forward_losses.15} parent=11 // pred_fallthru
        _
      // Predicated region
      $region17: #{net_forward_losses.15} parent=11 // pred_check
        %p196 = pneg %p122
      $region18: #{net_forward_losses.15} parent=11 // pred_check_branch
        %198 = sbr.rel (%p196) target = $region20
      $region19: #{net_forward_losses.15} parent=11 // pred_region
        _
      $region20: #{net_forward_losses.15} parent=11 // pred_fallthru
        _
    $region12: #{net_forward_losses.15} parent=5 // pred_fallthru
      _
    %p199 = scmp.lt.s32.totalorder %s12, 12
    // Predicated region
    $region21: #{net_forward_losses.15} parent=5 // pred_check
      %p200 = pneg %p199
    $region22: #{net_forward_losses.15} parent=5 // pred_check_branch
      %202 = sbr.rel (%p200) target = $region24
    $region23: #{net_forward_losses.15} parent=5 // pred_region
      // Predicated region
      $region25: #{net_forward_losses.15} parent=23 // pred_check
        %p203 = pneg %p46
      $region26: #{net_forward_losses.15} parent=23 // pred_check_branch
        %205 = sbr.rel (%p203) target = $region28
      $region27: #{net_forward_losses.15} parent=23 // pred_region
        %p206 = scmp.lt.s32.totalorder %s19, 2
        %s207 = scalar_select %p206, %s19, 2
        %p208 = scmp.lt.s32.totalorder %s20, 3
        %s209 = scalar_select %p208, %s20, 3
        %s210 = smul.addr %s207, 4
        %s211 = sadd.s32 %s209, %s210
        %s212 = smul.addr %s211, 8
        %s213 = scalar_lea.vmem %s0, %s212
      $region28: #{net_forward_losses.15} parent=23 // pred_fallthru
        _
      // Predicated region
      $region29: #{net_forward_losses.15} parent=23 // pred_check
        %p214 = pneg %p74
      $region30: #{net_forward_losses.15} parent=23 // pred_check_branch
        %216 = sbr.rel (%p214) target = $region32
      $region31: #{net_forward_losses.15} parent=23 // pred_region
        %p217 = scmp.lt.s32.totalorder %s19, 2
        %s218 = scalar_select %p217, %s19, 2
        %p219 = scmp.lt.s32.totalorder %s20, 3
        %s220 = scalar_select %p219, %s20, 3
        %s221 = smul.addr %s218, 4
        %s222 = sadd.s32 %s220, %s221
        %s223 = smul.addr %s222, 8
        %s224 = scalar_lea.vmem %s1, %s223
      $region32: #{net_forward_losses.15} parent=23 // pred_fallthru
        _
    $region24: #{net_forward_losses.15} parent=5 // pred_fallthru
      _
    %p225 = scmp.le.s32.totalorder 1, %s12
    %p226 = scmp.lt.s32.totalorder %s12, 13
    %p227 = pnand %p225, %p226
    %p228 = pneg %p227
    // Predicated region
    $region33: #{net_forward_losses.15} parent=5 // pred_check
      _
    $region34: #{net_forward_losses.15} parent=5 // pred_check_branch
      %230 = sbr.rel (%p227) target = $region36
    $region35: #{net_forward_losses.15} parent=5 // pred_region
      %s231 = ssub.s32 %s12, 1
      %p232 = scmp.lt.s32.totalorder %s21, 2
      %s233 = scalar_select %p232, %s21, 2
      %p234 = scmp.lt.s32.totalorder %s22, 3
      %s235 = scalar_select %p234, %s22, 3
      %s236 = smul.addr %s233, 4
      %s237 = sadd.s32 %s235, %s236
      %s238 = smul.addr %s237, 8
      %s239 = scalar_lea.vmem %s0, %s238
      %p240 = pneg %p52
      %p241 = pneg %p49
      %p242 = scmp.lt.s32.totalorder %s21, 2
      %s243 = scalar_select %p242, %s21, 2
      %p244 = scmp.lt.s32.totalorder %s22, 3
      %s245 = scalar_select %p244, %s22, 3
      %s246 = smul.addr %s243, 4
      %s247 = sadd.s32 %s245, %s246
      %s248 = smul.addr %s247, 8
      %s249 = scalar_lea.vmem %s1, %s248
      %p250 = pneg %p80
      %p251 = pneg %p77
      %p252 = pneg %p101
      %p253 = pneg %p98
      %p254 = pneg %p122
      %p255 = pneg %p119
      %p256 = pneg %p150
      %p257 = pneg %p147
      %p258 = scmp.lt.s32.totalorder %s21, 2
      %s259 = scalar_select %p258, %s21, 2
      %p260 = scmp.lt.s32.totalorder %s22, 3
      %s261 = scalar_select %p260, %s22, 3
      %s262 = smul.addr %s259, 4
      %s263 = sadd.s32 %s261, %s262
      %s264 = smul.addr %s263, 8
      %s265 = scalar_lea.vmem %s4, %s264
      %p266 = pneg %p178
      %p267 = pneg %p175
      %p268 = scmp.lt.s32.totalorder %s21, 2
      %s269 = scalar_select %p268, %s21, 2
      %p270 = scmp.lt.s32.totalorder %s22, 3
      %s271 = scalar_select %p270, %s22, 3
      %s272 = smul.addr %s269, 4
      %s273 = sadd.s32 %s271, %s272
      %s274 = smul.addr %s273, 8
      %s275 = scalar_lea.vmem %s5, %s274
      %p276 = scmp.lt.s32.totalorder %s21, 2
      %s277 = scalar_select %p276, %s21, 2
      %p278 = scmp.lt.s32.totalorder %s22, 3
      %s279 = scalar_select %p278, %s22, 3
      %s280 = smul.addr %s277, 4
      %s281 = sadd.s32 %s279, %s280
      %s282 = smul.addr %s281, 8
      %s283 = scalar_lea.vmem %s0, %s282
      %p284 = scmp.lt.s32.totalorder %s21, 2
      %s285 = scalar_select %p284, %s21, 2
      %p286 = scmp.lt.s32.totalorder %s22, 3
      %s287 = scalar_select %p286, %s22, 3
      %s288 = smul.addr %s285, 4
      %s289 = sadd.s32 %s287, %s288
      %s290 = smul.addr %s289, 8
      %s291 = scalar_lea.vmem %s1, %s290
      %p292 = scmp.lt.s32.totalorder %s21, 2
      %s293 = scalar_select %p292, %s21, 2
      %p294 = scmp.lt.s32.totalorder %s22, 3
      %s295 = scalar_select %p294, %s22, 3
      %s296 = smul.addr %s293, 4
      %s297 = sadd.s32 %s295, %s296
      %s298 = smul.addr %s297, 8
      %s299 = scalar_lea.vmem %s4, %s298
      %p300 = scmp.lt.s32.totalorder %s21, 2
      %s301 = scalar_select %p300, %s21, 2
      %p302 = scmp.lt.s32.totalorder %s22, 3
      %s303 = scalar_select %p302, %s22, 3
      %s304 = smul.addr %s301, 4
      %s305 = sadd.s32 %s303, %s304
      %s306 = smul.addr %s305, 8
      %s307 = scalar_lea.vmem %s5, %s306
      %s308 = smul.u32 %s22, 8
      %v309 = vld [vmem:[%s283] sm:$0xff]
      %v310 = vld [vmem:[%s291] sm:$0xff]
      %vm311 = vcmask 130048
      %v312 = vsel %vm311, %v309, 0.0
      %313 = vadd.xlane.f32.xlu0 %v312
      %v314 = vpop.xlane.xlu0 %313
      %v315 = vmul.f32 %v309, %v309
      %v316 = vsel %vm311, %v315, 0.0
      %317 = vadd.xlane.f32.xlu0 %v316
      %v318 = vpop.xlane.xlu0 %317
      %v319 = vsel %vm311, %v310, 0.0
      %320 = vadd.xlane.f32.xlu0 %v319
      %v321 = vpop.xlane.xlu0 %320
      %v322 = vmul.f32 %v310, %v310
      %v323 = vsel %vm311, %v322, 0.0
      %324 = vadd.xlane.f32.xlu0 %v323
      %v325 = vpop.xlane.xlu0 %324
      %v326 = vmul.f32 %v309, %v310
      %v327 = vsel %vm311, %v326, 0.0
      %328 = vadd.xlane.f32.xlu0 %v327
      %v329 = vpop.xlane.xlu0 %328
      %v330 = vmul.f32 %v314, 0.0625
      %v331 = vmul.f32 %v321, 0.0625
      %v332 = vmul.f32 %v330, 16.0
      %v333 = vmul.f32 %v332, %v330
      %v334 = vsub.f32 %v318, %v333
      %v335 = vmax.f32 %v334, 0.0
      %v336 = vmul.f32 %v331, 16.0
      %v337 = vmul.f32 %v336, %v331
      %v338 = vsub.f32 %v325, %v337
      %v339 = vmax.f32 %v338, 0.0
      %v340 = vmul.f32 %v332, %v331
      %v341 = vsub.f32 %v329, %v340
      %v342 = vmul.f32 %v335, 0.06666667
      %v343 = vadd.f32 %v342, 1e-05
      %v344 = vmul.f32 %v339, 0.06666667
      %v345 = vadd.f32 %v344, 1e-05
      %v346 = vrsqrt.pop %v343
      %v347 = vmul.f32 %v346, %v343
      %v348 = vmul.f32 %v347, %v346
      %v349 = vmul.f32 0.5, %v348
      %v350 = vsub.f32 1.5, %v349
      %v351 = vmul.f32 %v346, %v350
      %vm352 = vweird.f32 %v343
      %vm353 = vweird.f32 %v346
      %vm354 = vmor %vm352, %vm353
      %v355 = vsel %vm354, %v346, %v351
      %v356 = vrsqrt.pop %v345
      %v357 = vmul.f32 %v356, %v345
      %v358 = vmul.f32 %v357, %v356
      %v359 = vmul.f32 0.5, %v358
      %v360 = vsub.f32 1.5, %v359
      %v361 = vmul.f32 %v356, %v360
      %vm362 = vweird.f32 %v345
      %vm363 = vweird.f32 %v356
      %vm364 = vmor %vm362, %vm363
      %v365 = vsel %vm364, %v356, %v361
      %v366 = vmul.f32 %v355, %v355
      %v367 = vmul.f32 %v335, %v366
      %v368 = vmul.f32 %v365, %v365
      %v369 = vmul.f32 %v339, %v368
      %v370 = vadd.f32 %v367, %v369
      %v371 = vmul.f32 %v341, 2.0
      %v372 = vmul.f32 %v355, %v365
      %v373 = vmul.f32 %v371, %v372
      %v374 = vsub.f32 %v370, %v373
      %v375 = vmul.f32 %v343, %v355
      %s376 = scalar_lea.vmem %s2, %s308
      %v377 = vld [vmem:[%s376] sm:$0xff]
      %v378 = vsub.f32 %v330, %v377
      %s379 = scalar_lea.vmem %s3, %s308
      %v380 = vld [vmem:[%s379] sm:$0xff]
      %v381 = vsub.f32 %v375, %v380
      %v382 = vmul.f32 %v378, %v378
      %v383 = vmul.f32 %v381, %v381
      %v384 = vadd.f32 %v382, %v383
      %v385 = vlaneseq
      %v386 = vshrl.u32 %v385, 7
      %v387 = vlaneseq
      %v388 = vand.u32 %v387, 127
      %vm389 = vcmp.eq.s32.totalorder %v386, 0
      %vm390 = vcmp.eq.s32.totalorder %v388, 0
      %vm391 = vmand %vm389, %vm390
      %vm392 = vcmask 7168
      %v393 = vsel %vm392, %v374, 0.0
      %394 = vadd.xlane.f32.xlu0 %v393
      %v395 = vpop.xlane.xlu0 %394
      %v396 = vrot.slane %v395, 4
      %v397 = vadd.f32 %v395, %v396
      %v398 = vrot.slane %v397, 2
      %v399 = vadd.f32 %v397, %v398
      %v400 = vrot.slane %v399, 1
      %v401 = vadd.f32 %v399, %v400
      %s402 = vtos %v401
      %v403 = vstv %s402
      %v404 = vsel %vm391, %v403, 0.0
      %405 = vst [vmem:[%s299] sm:$0xff] %v404
      %v406 = vsel %vm392, %v384, 0.0
      %407 = vadd.xlane.f32.xlu0 %v406
      %v408 = vpop.xlane.xlu0 %407
      %v409 = vrot.slane %v408, 4
      %v410 = vadd.f32 %v408, %v409
      %v411 = vrot.slane %v410, 2
      %v412 = vadd.f32 %v410, %v411
      %v413 = vrot.slane %v412, 1
      %v414 = vadd.f32 %v412, %v413
      %s415 = vtos %v414
      %v416 = vstv %s415
      %v417 = vsel %vm391, %v416, 0.0
      %418 = vst [vmem:[%s307] sm:$0xff] %v417
      %p419 = scmp.lt.s32.totalorder %s21, 2
      %s420 = scalar_select %p419, %s21, 2
      %p421 = scmp.lt.s32.totalorder %s22, 3
      %s422 = scalar_select %p421, %s22, 3
      %s423 = smul.addr %s420, 4
      %s424 = sadd.s32 %s422, %s423
      %s425 = smul.addr %s424, 8
      %s426 = scalar_lea.vmem %s4, %s425
      %p427 = scmp.lt.s32.totalorder %s21, 2
      %s428 = scalar_select %p427, %s21, 2
      %p429 = scmp.lt.s32.totalorder %s22, 3
      %s430 = scalar_select %p429, %s22, 3
      %s431 = smul.addr %s428, 4
      %s432 = sadd.s32 %s430, %s431
      %s433 = smul.addr %s432, 8
      %s434 = scalar_lea.vmem %s5, %s433
      // Predicated region
      $region37: #{net_forward_losses.15} parent=35 // pred_check
        %p435 = pneg %p147
      $region38: #{net_forward_losses.15} parent=35 // pred_check_branch
        %437 = sbr.rel (%p435) target = $region40
      $region39: #{net_forward_losses.15} parent=35 // pred_region
        _
      $region40: #{net_forward_losses.15} parent=35 // pred_fallthru
        _
      // Predicated region
      $region41: #{net_forward_losses.15} parent=35 // pred_check
        %p438 = pneg %p175
      $region42: #{net_forward_losses.15} parent=35 // pred_check_branch
        %440 = sbr.rel (%p438) target = $region44
      $region43: #{net_forward_losses.15} parent=35 // pred_region
        _
      $region44: #{net_forward_losses.15} parent=35 // pred_fallthru
        _
    $region36: #{net_forward_losses.15} parent=5 // pred_fallthru
      _
    %p441 = scmp.le.s32.totalorder 2, %s12
    // Predicated region
    $region45: #{net_forward_losses.15} parent=5 // pred_check
      %p442 = pneg %p441
    $region46: #{net_forward_losses.15} parent=5 // pred_check_branch
      %444 = sbr.rel (%p442) target = $region48
    $region47: #{net_forward_losses.15} parent=5 // pred_region
      %s445 = ssub.s32 %s12, 2
      // Predicated region
      $region49: #{net_forward_losses.15} parent=47 // pred_check
        %p446 = pneg %p153
      $region50: #{net_forward_losses.15} parent=47 // pred_check_branch
        %448 = sbr.rel (%p446) target = $region52
      $region51: #{net_forward_losses.15} parent=47 // pred_region
        %p449 = scmp.lt.s32.totalorder %s23, 2
        %s450 = scalar_select %p449, %s23, 2
        %p451 = scmp.lt.s32.totalorder %s24, 3
        %s452 = scalar_select %p451, %s24, 3
        %s453 = smul.addr %s450, 4
        %s454 = sadd.s32 %s452, %s453
        %s455 = smul.addr %s454, 8
        %s456 = scalar_lea.vmem %s4, %s455
      $region52: #{net_forward_losses.15} parent=47 // pred_fallthru
        _
      // Predicated region
      $region53: #{net_forward_losses.15} parent=47 // pred_check
        %p457 = pneg %p181
      $region54: #{net_forward_losses.15} parent=47 // pred_check_branch
        %459 = sbr.rel (%p457) target = $region56
      $region55: #{net_forward_losses.15} parent=47 // pred_region
        %p460 = scmp.lt.s32.totalorder %s23, 2
        %s461 = scalar_select %p460, %s23, 2
        %p462 = scmp.lt.s32.totalorder %s24, 3
        %s463 = scalar_select %p462, %s24, 3
        %s464 = smul.addr %s461, 4
        %s465 = sadd.s32 %s463, %s464
        %s466 = smul.addr %s465, 8
        %s467 = scalar_lea.vmem %s5, %s466
      $region56: #{net_forward_losses.15} parent=47 // pred_fallthru
        _
    $region48: #{net_forward_losses.15} parent=5 // pred_fallthru
      _
  $region6: #{net_forward_losses.15} parent=0 // loop_footer
    %s16 = sadd.s32 1, %s12
  $region7: #{net_forward_losses.15} parent=0 // loop_footer_branch
    %11 = sbr.rel target = $region3
  $region8: #{net_forward_losses.15} parent=0 // loop_exit
    _

</llo_original>
